<compile_context>
chip_gen: v7x
topology: tpu7x:2x2x1
jax: 0.10.0
libtpu: 0.0.40
codegen_flags: <defaults>
</compile_context>

<pallas_src>
import jax
import jax.numpy as jnp
from jax.experimental import pallas as pl
from jax.experimental.pallas import tpu as pltpu

# ---- model dimensions (match the PyTorch defaults) -------------------------
INPUT_SIZE = 4          # dtd-cell input size
LSTM_IN = INPUT_SIZE + 1
LATENT = 8              # latent_size == LSTM hidden size
STATE = 9               # state_size
MLP_SIZE = 16
PARAM = 28              # param_size of DTDSimCell.mlp2 output
BATCH_TILE = 8          # f32 sublane multiple; one grid step per batch tile

# ---------------- parameter slab layout (static, module-level) --------------
# One (rows, 32) f32 slab; each parameter lives at an 8-row-aligned offset so
# every in-kernel slice is a static, sublane-aligned view.
_SLAB_COLS = 4 * LATENT  # 32, widest parameter lane dim

_PARAM_SHAPES = (
    ("wih",  (LSTM_IN, 4 * LATENT)),
    ("whh",  (LATENT, 4 * LATENT)),
    ("bias", (1, 4 * LATENT)),                  # b_ih + b_hh, combined at pack time
    ("m1w1", (LATENT, MLP_SIZE)),   ("m1b1", (1, MLP_SIZE)),
    ("m1w2", (MLP_SIZE, MLP_SIZE)), ("m1b2", (1, MLP_SIZE)),
    ("m1w3", (MLP_SIZE, STATE - 1)), ("m1b3", (1, STATE - 1)),
    ("A",    (LATENT, LATENT)),
    ("B",    (INPUT_SIZE - 2, LATENT)),
    ("m2w1", (LATENT, MLP_SIZE)),   ("m2b1", (1, MLP_SIZE)),
    ("m2w2", (MLP_SIZE, MLP_SIZE)), ("m2b2", (1, MLP_SIZE)),
    ("m2w3", (MLP_SIZE, PARAM)),    ("m2b3", (1, PARAM)),
)


def _build_slab_layout():
    layout, off = {}, 0
    for name, (r, c) in _PARAM_SHAPES:
        layout[name] = (off, r, c)
        off += ((r + 7) // 8) * 8               # 8-row alignment per param
    return layout, off


_SLAB_LAYOUT, _SLAB_ROWS = _build_slab_layout()


def _mlp(x, w1, b1, w2, b2, w3, b3):
    """torchvision-style MLP: Linear->ReLU->Linear->ReLU->Linear."""
    h = jnp.maximum(jnp.dot(x, w1, preferred_element_type=jnp.float32) + b1, 0.0)
    h = jnp.maximum(jnp.dot(h, w2, preferred_element_type=jnp.float32) + b2, 0.0)
    return jnp.dot(h, w3, preferred_element_type=jnp.float32) + b3


def dtd_lstm_kernel(past_ref, s0_ref, x_ref, slab_ref, out_ref):
    Bsz, Tp, _ = past_ref.shape
    T = x_ref.shape[1]
    H = LATENT

    def param(name):
        off, r, c = _SLAB_LAYOUT[name]
        return slab_ref[off:off + r, 0:c]       # static, sublane-aligned view

    # ---------------- LSTM layer 0: hoisted input projection -----------------
    wih = param("wih")                          # (5, 4H)
    whh = param("whh")                          # (H, 4H)
    bias = param("bias")                        # (1, 4H), b_ih + b_hh pre-combined

    gx = jnp.dot(past_ref[...].reshape(Bsz * Tp, LSTM_IN), wih,
                 preferred_element_type=jnp.float32) + bias       # (B*Tp, 4H)
    gx = gx.reshape(Bsz, Tp, 4 * H)

    h = jnp.zeros((Bsz, H), jnp.float32)
    c = jnp.zeros((Bsz, H), jnp.float32)
    # TODO(synk): on v5e/v6e, benchmark replacing this tiny in-loop MXU matmul
    # with an 8-term VPU broadcast multiply-add (avoids per-step MXU fill/drain
    # latency on the serial chain); kept as MXU dot until measured.
    for t in range(Tp):                         # fully unrolled (static indices)
        gates = gx[:, t, :] + jnp.dot(h, whh, preferred_element_type=jnp.float32)
        sg = jax.nn.sigmoid(gates)              # one whole-tile EUP pass
        th = jnp.tanh(gates)                    # one whole-tile EUP pass
        i_g = sg[:, 0 * H:1 * H]
        f_g = sg[:, 1 * H:2 * H]
        g_g = th[:, 2 * H:3 * H]
        o_g = sg[:, 3 * H:4 * H]
        c = f_g * c + i_g * g_g
        h = o_g * jnp.tanh(c)

    # ------------- initial DTD hidden state: [Z0, S0] -------------------------
    mlp1_out = _mlp(h, param("m1w1"), param("m1b1"), param("m1w2"),
                    param("m1b2"), param("m1w3"), param("m1b3"))   # (B, STATE-1)
    Gp = s0_ref[...]                            # S[:, 0] = s[:, 0]
    Gt = mlp1_out[:, 0:1]
    Ip = mlp1_out[:, 1:2]
    Il = mlp1_out[:, 2:3]
    X = mlp1_out[:, 3:4]
    XL = mlp1_out[:, 4:5]
    Qsto1 = mlp1_out[:, 5:6]
    Qsto2 = mlp1_out[:, 6:7]
    Qgut = mlp1_out[:, 7:8]

    # ------------- Z trajectory (linear recurrence, independent of S) --------
    A = param("A")                              # (H, H)
    Bm = param("B")                             # (2, H)
    x_all = x_ref[...]                          # (B, T, 4)
    insulin_all = x_all[:, :, 0]                # (B, T)
    carb_all = x_all[:, :, 1]                   # (B, T)
    otherB = jnp.dot(x_all[:, :, 2:].reshape(Bsz * T, INPUT_SIZE - 2), Bm,
                     preferred_element_type=jnp.float32).reshape(Bsz, T, H)

    z = c                                       # Z_0 = c0[0] (layer-0 final cell)
    z_steps = []
    for j in range(T):                          # fully unrolled
        z = jnp.dot(z, A, preferred_element_type=jnp.float32) + otherB[:, j, :]
        z_steps.append(z)
    z_all = jnp.concatenate(z_steps, axis=0)    # (T*B, H), time-major

    # ------------- batched mlp2 over the whole horizon ------------------------
    K_all = jnp.abs(_mlp(z_all, param("m2w1"), param("m2b1"), param("m2w2"),
                         param("m2b2"), param("m2w3"), param("m2b3")))  # (T*B, 28)
    K_all = K_all.reshape(T, Bsz, PARAM)        # K_all[j] is one aligned (B,28) tile

    # ------------- pure-elementwise DTDSimCell recurrence ---------------------
    preds = []
    for j in range(T):                          # fully unrolled, state in vregs
        Kj = K_all[j]                           # (B, 28); slice lanes per step only
        col = lambda k: Kj[:, k:k + 1]          # noqa: E731
        k1, k2 = col(0), col(1)
        m1, m2, m3, m4 = col(2), col(3), col(4), col(5)
        kgri = col(6)
        # col(7) is the first "D" of the reference; overwritten by col(15) before use.
        kmin, kmax, kabs = col(8), col(9), col(10)
        alpha, beta, b_p, c_p = col(11), col(12), col(13), col(14)
        D, BW, f_p = col(15), col(16), col(17)
        kp1, kp2, kp3, ki = col(18), col(19), col(20), col(21)
        Uii, Vm0, Vmx = col(22), col(23), col(24)
        Km0, r1, p2u = col(25), col(26), col(27)
        insulin = insulin_all[:, j:j + 1]
        carb = carb_all[:, j:j + 1]

        EGP = kp1 - kp2 * Gp - kp3 * XL
        Qsto = Qsto1 + Qsto2
        # (kmax - kmin / 2): deliberate reproduction of the reference's operator
        # precedence, i.e. kmax - (kmin / 2).  Do NOT "fix" to (kmax - kmin)/2.
        kemptQ = kmin + (kmax - kmin / 2) * (
            jnp.tanh(alpha * (Qsto - b_p * D))
            - jnp.tanh(beta * (Qsto - c_p * D)) + 2.0)
        Ra = f_p * kabs * Qgut / BW
        Uid = (Vm0 + Vmx * X * r1) * Gt / (Km0 + jnp.abs(Gt))
        DQsto1 = -kgri * Qsto1 + D * carb
        DQsto2 = -kemptQ * Qsto2 + kgri * Qsto1
        DQgut = -kabs * Qgut + kemptQ * Qsto2
        DIp = -(m2 + m4) * Ip + m1 * Il + insulin
        DIl = -(m1 + m3) * Il + m2 * Ip
        DXL = -ki * (XL - Ip)
        DX = -p2u * X + p2u * Ip
        DGp = EGP + Ra - Uii - k1 * Gp + k2 * Gt
        DGt = -Uid + k1 * Gp - k2 * Gt

        Gp, Gt = Gp + DGp, Gt + DGt
        Ip, Il = Ip + DIp, Il + DIl
        X, XL = X + DX, XL + DXL
        Qsto1, Qsto2, Qgut = Qsto1 + DQsto1, Qsto2 + DQsto2, Qgut + DQgut
        preds.append(Gp)

    # single writeback: (B, T) slab, one store
    # TODO(synk): if T ever grows large, switch to a lane-dense (pad-to-128) layout.
    out_ref[...] = jnp.concatenate(preds, axis=-1)


def init_params(key):
    """Deterministic synthetic parameters (shapes from the module __init__)."""
    ks = jax.random.split(key, 20)
    n = lambda k, shp: (0.1 * jax.random.normal(k, shp)).astype(jnp.float32)
    params = [
        # LSTM layer 0 (weights stored transposed: (in, 4H))
        n(ks[0], (LSTM_IN, 4 * LATENT)),       # W_ih_l0^T
        n(ks[1], (LATENT, 4 * LATENT)),        # W_hh_l0^T
        n(ks[2], (1, 4 * LATENT)),             # b_ih_l0
        n(ks[3], (1, 4 * LATENT)),             # b_hh_l0
        # mlp1: latent -> 16 -> 16 -> state_size-1
        n(ks[4], (LATENT, MLP_SIZE)), n(ks[5], (1, MLP_SIZE)),
        n(ks[6], (MLP_SIZE, MLP_SIZE)), n(ks[7], (1, MLP_SIZE)),
        n(ks[8], (MLP_SIZE, STATE - 1)), n(ks[9], (1, STATE - 1)),
        # DTDSimCell A (latent, latent), B (input_size-2, latent)
        # (nn.Parameter(torch.zeros) in __init__; random here to exercise math)
        n(ks[10], (LATENT, LATENT)),
        n(ks[11], (INPUT_SIZE - 2, LATENT)),
        # mlp2: latent -> 16 -> 16 -> 28
        n(ks[12], (LATENT, MLP_SIZE)), n(ks[13], (1, MLP_SIZE)),
        n(ks[14], (MLP_SIZE, MLP_SIZE)), n(ks[15], (1, MLP_SIZE)),
        n(ks[16], (MLP_SIZE, PARAM)), n(ks[17], (1, PARAM)),
    ]
    return params


def pack_params(params):
    """One-time param-prep: pack all weights into one lane-padded f32 slab."""
    (wih, whh, bih, bhh,
     m1w1, m1b1, m1w2, m1b2, m1w3, m1b3,
     A, B,
     m2w1, m2b1, m2w2, m2b2, m2w3, m2b3) = [jnp.asarray(p, jnp.float32) for p in params]
    named = dict(
        wih=wih, whh=whh, bias=bih + bhh,       # b_ih + b_hh pre-combined here
        m1w1=m1w1, m1b1=m1b1, m1w2=m1w2, m1b2=m1b2, m1w3=m1w3, m1b3=m1b3,
        A=A, B=B,
        m2w1=m2w1, m2b1=m2b1, m2w2=m2w2, m2b2=m2b2, m2w3=m2w3, m2b3=m2b3)
    slab = jnp.zeros((_SLAB_ROWS, _SLAB_COLS), jnp.float32)
    for name, (off, r, c) in _SLAB_LAYOUT.items():
        assert named[name].shape == (r, c), (name, named[name].shape, (r, c))
        slab = slab.at[off:off + r, :c].set(named[name])
    return slab


def dtd_lstm_forward(past, s, x, slab):
    """past: (B, Tp, 5), s: (B, 1, 1), x: (B, T, 4), slab: packed params
    -> pred: (B, T, 1)."""
    Bsz, Tp, _ = past.shape
    T = x.shape[1]

    # Pad batch to the f32 sublane multiple (8).  Edge-replicate real rows so
    # the divide-heavy DTD math stays finite in pad lanes; pad rows are
    # independent and sliced off afterwards.
    B_pad = max(BATCH_TILE, ((Bsz + BATCH_TILE - 1) // BATCH_TILE) * BATCH_TILE)
    pad = B_pad - Bsz
    past_p = jnp.pad(past.astype(jnp.float32), ((0, pad), (0, 0), (0, 0)), mode="edge")
    x_p = jnp.pad(x.astype(jnp.float32), ((0, pad), (0, 0), (0, 0)), mode="edge")
    s0_p = jnp.pad(s[:, 0].astype(jnp.float32), ((0, pad), (0, 0)), mode="edge")

    nb = B_pad // BATCH_TILE

    out = pl.pallas_call(
        dtd_lstm_kernel,
        out_shape=jax.ShapeDtypeStruct((B_pad, T), jnp.float32),
        grid=(nb,),                             # batch tiles; "parallel" -> both v7x TCs
        in_specs=[
            pl.BlockSpec((BATCH_TILE, Tp, LSTM_IN), lambda b: (b, 0, 0)),
            pl.BlockSpec((BATCH_TILE, 1), lambda b: (b, 0)),
            pl.BlockSpec((BATCH_TILE, T, INPUT_SIZE), lambda b: (b, 0, 0)),
            pl.BlockSpec((_SLAB_ROWS, _SLAB_COLS), lambda b: (0, 0)),  # stays resident
        ],
        out_specs=pl.BlockSpec((BATCH_TILE, T), lambda b: (b, 0)),
        compiler_params=pltpu.CompilerParams(
            dimension_semantics=("parallel",)),
        cost_estimate=pl.CostEstimate(
            flops=160_000, transcendentals=5_000, bytes_accessed=32_768),
    )(past_p, s0_p, x_p, slab)

    return out[:Bsz, :, None]                   # (B, T, 1)


if __name__ == "__main__":
    key = jax.random.PRNGKey(0)
    k_past, k_s, k_x, k_params = jax.random.split(key, 4)

    Bsz, Tp, T = 2, 8, 6
    past = jax.random.normal(k_past, (Bsz, Tp, LSTM_IN), dtype=jnp.float32)
    s = jax.random.normal(k_s, (Bsz, 1, 1), dtype=jnp.float32)
    x = jax.random.normal(k_x, (Bsz, T, INPUT_SIZE), dtype=jnp.float32)

    slab = pack_params(init_params(k_params))   # one-time param prep

    pred = jax.jit(dtd_lstm_forward)(past, s, x, slab)
    pred = jax.block_until_ready(pred)

    assert pred.shape == (Bsz, T, 1), pred.shape
    assert jnp.all(jnp.isfinite(pred))
    print("KERNEL_OK")
</pallas_src>

<mosaic_0001>
module attributes {stable_mosaic.version = 11 : i64} {
  func.func @dtd_lstm_kernel(%arg0: i32, %arg1: memref<8x8x5xf32, #tpu.memory_space<vmem>>, %arg2: memref<8x1xf32, #tpu.memory_space<vmem>>, %arg3: memref<8x6x4xf32, #tpu.memory_space<vmem>>, %arg4: memref<168x32xf32, #tpu.memory_space<vmem>>, %arg5: memref<8x6xf32, #tpu.memory_space<vmem>>) attributes {dimension_semantics = [#tpu.dimension_semantics<parallel>], iteration_bounds = array<i64: 1>, scalar_prefetch = 0 : i64, scratch_operands = 0 : i64, tpu.core_type = #tpu.core_type<tc>, window_params = [{transform_indices = @transform_0, window_bounds = array<i64: 8, 8, 5>}, {transform_indices = @transform_1, window_bounds = array<i64: 8, 1>}, {transform_indices = @transform_2, window_bounds = array<i64: 8, 6, 4>}, {pipeline_mode = #tpu.pipeline_mode<synchronous>, transform_indices = @transform_3, window_bounds = array<i64: 168, 32>}, {transform_indices = @transform_4, window_bounds = array<i64: 8, 6>}]} {
    %c0 = arith.constant 0 : index
    %c0_0 = arith.constant 0 : index
    %0 = vector.load %arg4[%c0, %c0_0] : memref<168x32xf32, #tpu.memory_space<vmem>>, vector<5x32xf32>
    %c8 = arith.constant 8 : index
    %c0_1 = arith.constant 0 : index
    %1 = vector.load %arg4[%c8, %c0_1] : memref<168x32xf32, #tpu.memory_space<vmem>>, vector<8x32xf32>
    %c16 = arith.constant 16 : index
    %c0_2 = arith.constant 0 : index
    %2 = vector.load %arg4[%c16, %c0_2] : memref<168x32xf32, #tpu.memory_space<vmem>>, vector<1x32xf32>
    %c0_3 = arith.constant 0 : index
    %c0_4 = arith.constant 0 : index
    %c0_5 = arith.constant 0 : index
    %3 = vector.load %arg1[%c0_3, %c0_4, %c0_5] : memref<8x8x5xf32, #tpu.memory_space<vmem>>, vector<8x8x5xf32>
    %4 = vector.shape_cast %3 : vector<8x8x5xf32> to vector<64x5xf32>
    %cst = arith.constant dense<0.000000e+00> : vector<64x32xf32>
    %5 = tpu.matmul %4, %0, %cst {dimension_numbers = #tpu.dot_dimension_numbers<[1], [0], [0], [1], [0, 0, 1, 1], [], []>} : vector<64x5xf32>, vector<5x32xf32>, vector<64x32xf32> -> vector<64x32xf32>
    %6 = vector.broadcast %2 : vector<1x32xf32> to vector<64x32xf32>
    %7 = arith.addf %5, %6 : vector<64x32xf32>
    %8 = vector.shape_cast %7 : vector<64x32xf32> to vector<8x8x32xf32>
    %cst_6 = arith.constant 0.000000e+00 : f32
    %9 = vector.broadcast %cst_6 : f32 to vector<8x8xf32>
    %cst_7 = arith.constant 0.000000e+00 : f32
    %10 = vector.broadcast %cst_7 : f32 to vector<8x8xf32>
    %11 = vector.extract_strided_slice %8 {offsets = [0, 0, 0], sizes = [8, 1, 32], strides = [1, 1, 1]} : vector<8x8x32xf32> to vector<8x1x32xf32>
    %12 = vector.shape_cast %11 : vector<8x1x32xf32> to vector<8x32xf32>
    %cst_8 = arith.constant dense<0.000000e+00> : vector<8x32xf32>
    %13 = tpu.matmul %9, %1, %cst_8 {dimension_numbers = #tpu.dot_dimension_numbers<[1], [0], [0], [1], [0, 0, 1, 1], [], []>} : vector<8x8xf32>, vector<8x32xf32>, vector<8x32xf32> -> vector<8x32xf32>
    %14 = arith.addf %12, %13 : vector<8x32xf32>
    %15 = arith.negf %14 : vector<8x32xf32>
    %16 = math.exp %15 : vector<8x32xf32>
    %cst_9 = arith.constant 1.000000e+00 : f32
    %17 = vector.broadcast %cst_9 : f32 to vector<8x32xf32>
    %18 = arith.addf %17, %16 : vector<8x32xf32>
    %19 = arith.divf %17, %18 : vector<8x32xf32>
    %20 = math.tanh %14 : vector<8x32xf32>
    %21 = vector.extract_strided_slice %19 {offsets = [0, 0], sizes = [8, 8], strides = [1, 1]} : vector<8x32xf32> to vector<8x8xf32>
    %22 = vector.extract_strided_slice %19 {offsets = [0, 8], sizes = [8, 8], strides = [1, 1]} : vector<8x32xf32> to vector<8x8xf32>
    %23 = vector.extract_strided_slice %20 {offsets = [0, 16], sizes = [8, 8], strides = [1, 1]} : vector<8x32xf32> to vector<8x8xf32>
    %24 = vector.extract_strided_slice %19 {offsets = [0, 24], sizes = [8, 8], strides = [1, 1]} : vector<8x32xf32> to vector<8x8xf32>
    %25 = arith.mulf %22, %10 : vector<8x8xf32>
    %26 = arith.mulf %21, %23 : vector<8x8xf32>
    %27 = arith.addf %25, %26 : vector<8x8xf32>
    %28 = math.tanh %27 : vector<8x8xf32>
    %29 = arith.mulf %24, %28 : vector<8x8xf32>
    %30 = vector.extract_strided_slice %8 {offsets = [0, 1, 0], sizes = [8, 1, 32], strides = [1, 1, 1]} : vector<8x8x32xf32> to vector<8x1x32xf32>
    %31 = vector.shape_cast %30 : vector<8x1x32xf32> to vector<8x32xf32>
    %cst_10 = arith.constant dense<0.000000e+00> : vector<8x32xf32>
    %32 = tpu.matmul %29, %1, %cst_10 {dimension_numbers = #tpu.dot_dimension_numbers<[1], [0], [0], [1], [0, 0, 1, 1], [], []>} : vector<8x8xf32>, vector<8x32xf32>, vector<8x32xf32> -> vector<8x32xf32>
    %33 = arith.addf %31, %32 : vector<8x32xf32>
    %34 = arith.negf %33 : vector<8x32xf32>
    %35 = math.exp %34 : vector<8x32xf32>
    %cst_11 = arith.constant 1.000000e+00 : f32
    %36 = vector.broadcast %cst_11 : f32 to vector<8x32xf32>
    %37 = arith.addf %36, %35 : vector<8x32xf32>
    %38 = arith.divf %36, %37 : vector<8x32xf32>
    %39 = math.tanh %33 : vector<8x32xf32>
    %40 = vector.extract_strided_slice %38 {offsets = [0, 0], sizes = [8, 8], strides = [1, 1]} : vector<8x32xf32> to vector<8x8xf32>
    %41 = vector.extract_strided_slice %38 {offsets = [0, 8], sizes = [8, 8], strides = [1, 1]} : vector<8x32xf32> to vector<8x8xf32>
    %42 = vector.extract_strided_slice %39 {offsets = [0, 16], sizes = [8, 8], strides = [1, 1]} : vector<8x32xf32> to vector<8x8xf32>
    %43 = vector.extract_strided_slice %38 {offsets = [0, 24], sizes = [8, 8], strides = [1, 1]} : vector<8x32xf32> to vector<8x8xf32>
    %44 = arith.mulf %41, %27 : vector<8x8xf32>
    %45 = arith.mulf %40, %42 : vector<8x8xf32>
    %46 = arith.addf %44, %45 : vector<8x8xf32>
    %47 = math.tanh %46 : vector<8x8xf32>
    %48 = arith.mulf %43, %47 : vector<8x8xf32>
    %49 = vector.extract_strided_slice %8 {offsets = [0, 2, 0], sizes = [8, 1, 32], strides = [1, 1, 1]} : vector<8x8x32xf32> to vector<8x1x32xf32>
    %50 = vector.shape_cast %49 : vector<8x1x32xf32> to vector<8x32xf32>
    %cst_12 = arith.constant dense<0.000000e+00> : vector<8x32xf32>
    %51 = tpu.matmul %48, %1, %cst_12 {dimension_numbers = #tpu.dot_dimension_numbers<[1], [0], [0], [1], [0, 0, 1, 1], [], []>} : vector<8x8xf32>, vector<8x32xf32>, vector<8x32xf32> -> vector<8x32xf32>
    %52 = arith.addf %50, %51 : vector<8x32xf32>
    %53 = arith.negf %52 : vector<8x32xf32>
    %54 = math.exp %53 : vector<8x32xf32>
    %cst_13 = arith.constant 1.000000e+00 : f32
    %55 = vector.broadcast %cst_13 : f32 to vector<8x32xf32>
    %56 = arith.addf %55, %54 : vector<8x32xf32>
    %57 = arith.divf %55, %56 : vector<8x32xf32>
    %58 = math.tanh %52 : vector<8x32xf32>
    %59 = vector.extract_strided_slice %57 {offsets = [0, 0], sizes = [8, 8], strides = [1, 1]} : vector<8x32xf32> to vector<8x8xf32>
    %60 = vector.extract_strided_slice %57 {offsets = [0, 8], sizes = [8, 8], strides = [1, 1]} : vector<8x32xf32> to vector<8x8xf32>
    %61 = vector.extract_strided_slice %58 {offsets = [0, 16], sizes = [8, 8], strides = [1, 1]} : vector<8x32xf32> to vector<8x8xf32>
    %62 = vector.extract_strided_slice %57 {offsets = [0, 24], sizes = [8, 8], strides = [1, 1]} : vector<8x32xf32> to vector<8x8xf32>
    %63 = arith.mulf %60, %46 : vector<8x8xf32>
    %64 = arith.mulf %59, %61 : vector<8x8xf32>
    %65 = arith.addf %63, %64 : vector<8x8xf32>
    %66 = math.tanh %65 : vector<8x8xf32>
    %67 = arith.mulf %62, %66 : vector<8x8xf32>
    %68 = vector.extract_strided_slice %8 {offsets = [0, 3, 0], sizes = [8, 1, 32], strides = [1, 1, 1]} : vector<8x8x32xf32> to vector<8x1x32xf32>
    %69 = vector.shape_cast %68 : vector<8x1x32xf32> to vector<8x32xf32>
    %cst_14 = arith.constant dense<0.000000e+00> : vector<8x32xf32>
    %70 = tpu.matmul %67, %1, %cst_14 {dimension_numbers = #tpu.dot_dimension_numbers<[1], [0], [0], [1], [0, 0, 1, 1], [], []>} : vector<8x8xf32>, vector<8x32xf32>, vector<8x32xf32> -> vector<8x32xf32>
    %71 = arith.addf %69, %70 : vector<8x32xf32>
    %72 = arith.negf %71 : vector<8x32xf32>
    %73 = math.exp %72 : vector<8x32xf32>
    %cst_15 = arith.constant 1.000000e+00 : f32
    %74 = vector.broadcast %cst_15 : f32 to vector<8x32xf32>
    %75 = arith.addf %74, %73 : vector<8x32xf32>
    %76 = arith.divf %74, %75 : vector<8x32xf32>
    %77 = math.tanh %71 : vector<8x32xf32>
    %78 = vector.extract_strided_slice %76 {offsets = [0, 0], sizes = [8, 8], strides = [1, 1]} : vector<8x32xf32> to vector<8x8xf32>
    %79 = vector.extract_strided_slice %76 {offsets = [0, 8], sizes = [8, 8], strides = [1, 1]} : vector<8x32xf32> to vector<8x8xf32>
    %80 = vector.extract_strided_slice %77 {offsets = [0, 16], sizes = [8, 8], strides = [1, 1]} : vector<8x32xf32> to vector<8x8xf32>
    %81 = vector.extract_strided_slice %76 {offsets = [0, 24], sizes = [8, 8], strides = [1, 1]} : vector<8x32xf32> to vector<8x8xf32>
    %82 = arith.mulf %79, %65 : vector<8x8xf32>
    %83 = arith.mulf %78, %80 : vector<8x8xf32>
    %84 = arith.addf %82, %83 : vector<8x8xf32>
    %85 = math.tanh %84 : vector<8x8xf32>
    %86 = arith.mulf %81, %85 : vector<8x8xf32>
    %87 = vector.extract_strided_slice %8 {offsets = [0, 4, 0], sizes = [8, 1, 32], strides = [1, 1, 1]} : vector<8x8x32xf32> to vector<8x1x32xf32>
    %88 = vector.shape_cast %87 : vector<8x1x32xf32> to vector<8x32xf32>
    %cst_16 = arith.constant dense<0.000000e+00> : vector<8x32xf32>
    %89 = tpu.matmul %86, %1, %cst_16 {dimension_numbers = #tpu.dot_dimension_numbers<[1], [0], [0], [1], [0, 0, 1, 1], [], []>} : vector<8x8xf32>, vector<8x32xf32>, vector<8x32xf32> -> vector<8x32xf32>
    %90 = arith.addf %88, %89 : vector<8x32xf32>
    %91 = arith.negf %90 : vector<8x32xf32>
    %92 = math.exp %91 : vector<8x32xf32>
    %cst_17 = arith.constant 1.000000e+00 : f32
    %93 = vector.broadcast %cst_17 : f32 to vector<8x32xf32>
    %94 = arith.addf %93, %92 : vector<8x32xf32>
    %95 = arith.divf %93, %94 : vector<8x32xf32>
    %96 = math.tanh %90 : vector<8x32xf32>
    %97 = vector.extract_strided_slice %95 {offsets = [0, 0], sizes = [8, 8], strides = [1, 1]} : vector<8x32xf32> to vector<8x8xf32>
    %98 = vector.extract_strided_slice %95 {offsets = [0, 8], sizes = [8, 8], strides = [1, 1]} : vector<8x32xf32> to vector<8x8xf32>
    %99 = vector.extract_strided_slice %96 {offsets = [0, 16], sizes = [8, 8], strides = [1, 1]} : vector<8x32xf32> to vector<8x8xf32>
    %100 = vector.extract_strided_slice %95 {offsets = [0, 24], sizes = [8, 8], strides = [1, 1]} : vector<8x32xf32> to vector<8x8xf32>
    %101 = arith.mulf %98, %84 : vector<8x8xf32>
    %102 = arith.mulf %97, %99 : vector<8x8xf32>
    %103 = arith.addf %101, %102 : vector<8x8xf32>
    %104 = math.tanh %103 : vector<8x8xf32>
    %105 = arith.mulf %100, %104 : vector<8x8xf32>
    %106 = vector.extract_strided_slice %8 {offsets = [0, 5, 0], sizes = [8, 1, 32], strides = [1, 1, 1]} : vector<8x8x32xf32> to vector<8x1x32xf32>
    %107 = vector.shape_cast %106 : vector<8x1x32xf32> to vector<8x32xf32>
    %cst_18 = arith.constant dense<0.000000e+00> : vector<8x32xf32>
    %108 = tpu.matmul %105, %1, %cst_18 {dimension_numbers = #tpu.dot_dimension_numbers<[1], [0], [0], [1], [0, 0, 1, 1], [], []>} : vector<8x8xf32>, vector<8x32xf32>, vector<8x32xf32> -> vector<8x32xf32>
    %109 = arith.addf %107, %108 : vector<8x32xf32>
    %110 = arith.negf %109 : vector<8x32xf32>
    %111 = math.exp %110 : vector<8x32xf32>
    %cst_19 = arith.constant 1.000000e+00 : f32
    %112 = vector.broadcast %cst_19 : f32 to vector<8x32xf32>
    %113 = arith.addf %112, %111 : vector<8x32xf32>
    %114 = arith.divf %112, %113 : vector<8x32xf32>
    %115 = math.tanh %109 : vector<8x32xf32>
    %116 = vector.extract_strided_slice %114 {offsets = [0, 0], sizes = [8, 8], strides = [1, 1]} : vector<8x32xf32> to vector<8x8xf32>
    %117 = vector.extract_strided_slice %114 {offsets = [0, 8], sizes = [8, 8], strides = [1, 1]} : vector<8x32xf32> to vector<8x8xf32>
    %118 = vector.extract_strided_slice %115 {offsets = [0, 16], sizes = [8, 8], strides = [1, 1]} : vector<8x32xf32> to vector<8x8xf32>
    %119 = vector.extract_strided_slice %114 {offsets = [0, 24], sizes = [8, 8], strides = [1, 1]} : vector<8x32xf32> to vector<8x8xf32>
    %120 = arith.mulf %117, %103 : vector<8x8xf32>
    %121 = arith.mulf %116, %118 : vector<8x8xf32>
    %122 = arith.addf %120, %121 : vector<8x8xf32>
    %123 = math.tanh %122 : vector<8x8xf32>
    %124 = arith.mulf %119, %123 : vector<8x8xf32>
    %125 = vector.extract_strided_slice %8 {offsets = [0, 6, 0], sizes = [8, 1, 32], strides = [1, 1, 1]} : vector<8x8x32xf32> to vector<8x1x32xf32>
    %126 = vector.shape_cast %125 : vector<8x1x32xf32> to vector<8x32xf32>
    %cst_20 = arith.constant dense<0.000000e+00> : vector<8x32xf32>
    %127 = tpu.matmul %124, %1, %cst_20 {dimension_numbers = #tpu.dot_dimension_numbers<[1], [0], [0], [1], [0, 0, 1, 1], [], []>} : vector<8x8xf32>, vector<8x32xf32>, vector<8x32xf32> -> vector<8x32xf32>
    %128 = arith.addf %126, %127 : vector<8x32xf32>
    %129 = arith.negf %128 : vector<8x32xf32>
    %130 = math.exp %129 : vector<8x32xf32>
    %cst_21 = arith.constant 1.000000e+00 : f32
    %131 = vector.broadcast %cst_21 : f32 to vector<8x32xf32>
    %132 = arith.addf %131, %130 : vector<8x32xf32>
    %133 = arith.divf %131, %132 : vector<8x32xf32>
    %134 = math.tanh %128 : vector<8x32xf32>
    %135 = vector.extract_strided_slice %133 {offsets = [0, 0], sizes = [8, 8], strides = [1, 1]} : vector<8x32xf32> to vector<8x8xf32>
    %136 = vector.extract_strided_slice %133 {offsets = [0, 8], sizes = [8, 8], strides = [1, 1]} : vector<8x32xf32> to vector<8x8xf32>
    %137 = vector.extract_strided_slice %134 {offsets = [0, 16], sizes = [8, 8], strides = [1, 1]} : vector<8x32xf32> to vector<8x8xf32>
    %138 = vector.extract_strided_slice %133 {offsets = [0, 24], sizes = [8, 8], strides = [1, 1]} : vector<8x32xf32> to vector<8x8xf32>
    %139 = arith.mulf %136, %122 : vector<8x8xf32>
    %140 = arith.mulf %135, %137 : vector<8x8xf32>
    %141 = arith.addf %139, %140 : vector<8x8xf32>
    %142 = math.tanh %141 : vector<8x8xf32>
    %143 = arith.mulf %138, %142 : vector<8x8xf32>
    %144 = vector.extract_strided_slice %8 {offsets = [0, 7, 0], sizes = [8, 1, 32], strides = [1, 1, 1]} : vector<8x8x32xf32> to vector<8x1x32xf32>
    %145 = vector.shape_cast %144 : vector<8x1x32xf32> to vector<8x32xf32>
    %cst_22 = arith.constant dense<0.000000e+00> : vector<8x32xf32>
    %146 = tpu.matmul %143, %1, %cst_22 {dimension_numbers = #tpu.dot_dimension_numbers<[1], [0], [0], [1], [0, 0, 1, 1], [], []>} : vector<8x8xf32>, vector<8x32xf32>, vector<8x32xf32> -> vector<8x32xf32>
    %147 = arith.addf %145, %146 : vector<8x32xf32>
    %148 = arith.negf %147 : vector<8x32xf32>
    %149 = math.exp %148 : vector<8x32xf32>
    %cst_23 = arith.constant 1.000000e+00 : f32
    %150 = vector.broadcast %cst_23 : f32 to vector<8x32xf32>
    %151 = arith.addf %150, %149 : vector<8x32xf32>
    %152 = arith.divf %150, %151 : vector<8x32xf32>
    %153 = math.tanh %147 : vector<8x32xf32>
    %154 = vector.extract_strided_slice %152 {offsets = [0, 0], sizes = [8, 8], strides = [1, 1]} : vector<8x32xf32> to vector<8x8xf32>
    %155 = vector.extract_strided_slice %152 {offsets = [0, 8], sizes = [8, 8], strides = [1, 1]} : vector<8x32xf32> to vector<8x8xf32>
    %156 = vector.extract_strided_slice %153 {offsets = [0, 16], sizes = [8, 8], strides = [1, 1]} : vector<8x32xf32> to vector<8x8xf32>
    %157 = vector.extract_strided_slice %152 {offsets = [0, 24], sizes = [8, 8], strides = [1, 1]} : vector<8x32xf32> to vector<8x8xf32>
    %158 = arith.mulf %155, %141 : vector<8x8xf32>
    %159 = arith.mulf %154, %156 : vector<8x8xf32>
    %160 = arith.addf %158, %159 : vector<8x8xf32>
    %161 = math.tanh %160 : vector<8x8xf32>
    %162 = arith.mulf %157, %161 : vector<8x8xf32>
    %c24 = arith.constant 24 : index
    %c0_24 = arith.constant 0 : index
    %163 = vector.load %arg4[%c24, %c0_24] : memref<168x32xf32, #tpu.memory_space<vmem>>, vector<8x16xf32>
    %c32 = arith.constant 32 : index
    %c0_25 = arith.constant 0 : index
    %164 = vector.load %arg4[%c32, %c0_25] : memref<168x32xf32, #tpu.memory_space<vmem>>, vector<1x16xf32>
    %c40 = arith.constant 40 : index
    %c0_26 = arith.constant 0 : index
    %165 = vector.load %arg4[%c40, %c0_26] : memref<168x32xf32, #tpu.memory_space<vmem>>, vector<16x16xf32>
    %c56 = arith.constant 56 : index
    %c0_27 = arith.constant 0 : index
    %166 = vector.load %arg4[%c56, %c0_27] : memref<168x32xf32, #tpu.memory_space<vmem>>, vector<1x16xf32>
    %c64 = arith.constant 64 : index
    %c0_28 = arith.constant 0 : index
    %167 = vector.load %arg4[%c64, %c0_28] : memref<168x32xf32, #tpu.memory_space<vmem>>, vector<16x8xf32>
    %c80 = arith.constant 80 : index
    %c0_29 = arith.constant 0 : index
    %168 = vector.load %arg4[%c80, %c0_29] : memref<168x32xf32, #tpu.memory_space<vmem>>, vector<1x8xf32>
    %cst_30 = arith.constant dense<0.000000e+00> : vector<8x16xf32>
    %169 = tpu.matmul %162, %163, %cst_30 {dimension_numbers = #tpu.dot_dimension_numbers<[1], [0], [0], [1], [0, 0, 1, 1], [], []>} : vector<8x8xf32>, vector<8x16xf32>, vector<8x16xf32> -> vector<8x16xf32>
    %170 = vector.broadcast %164 : vector<1x16xf32> to vector<8x16xf32>
    %171 = arith.addf %169, %170 : vector<8x16xf32>
    %cst_31 = arith.constant 0.000000e+00 : f32
    %172 = vector.broadcast %cst_31 : f32 to vector<8x16xf32>
    %173 = arith.maximumf %171, %172 : vector<8x16xf32>
    %cst_32 = arith.constant dense<0.000000e+00> : vector<8x16xf32>
    %174 = tpu.matmul %173, %165, %cst_32 {dimension_numbers = #tpu.dot_dimension_numbers<[1], [0], [0], [1], [0, 0, 1, 1], [], []>} : vector<8x16xf32>, vector<16x16xf32>, vector<8x16xf32> -> vector<8x16xf32>
    %175 = vector.broadcast %166 : vector<1x16xf32> to vector<8x16xf32>
    %176 = arith.addf %174, %175 : vector<8x16xf32>
    %cst_33 = arith.constant 0.000000e+00 : f32
    %177 = vector.broadcast %cst_33 : f32 to vector<8x16xf32>
    %178 = arith.maximumf %176, %177 : vector<8x16xf32>
    %cst_34 = arith.constant dense<0.000000e+00> : vector<8x8xf32>
    %179 = tpu.matmul %178, %167, %cst_34 {dimension_numbers = #tpu.dot_dimension_numbers<[1], [0], [0], [1], [0, 0, 1, 1], [], []>} : vector<8x16xf32>, vector<16x8xf32>, vector<8x8xf32> -> vector<8x8xf32>
    %180 = vector.broadcast %168 : vector<1x8xf32> to vector<8x8xf32>
    %181 = arith.addf %179, %180 : vector<8x8xf32>
    %c0_35 = arith.constant 0 : index
    %c0_36 = arith.constant 0 : index
    %182 = vector.load %arg2[%c0_35, %c0_36] : memref<8x1xf32, #tpu.memory_space<vmem>>, vector<8x1xf32>
    %183 = vector.extract_strided_slice %181 {offsets = [0, 0], sizes = [8, 1], strides = [1, 1]} : vector<8x8xf32> to vector<8x1xf32>
    %184 = vector.extract_strided_slice %181 {offsets = [0, 1], sizes = [8, 1], strides = [1, 1]} : vector<8x8xf32> to vector<8x1xf32>
    %185 = vector.extract_strided_slice %181 {offsets = [0, 2], sizes = [8, 1], strides = [1, 1]} : vector<8x8xf32> to vector<8x1xf32>
    %186 = vector.extract_strided_slice %181 {offsets = [0, 3], sizes = [8, 1], strides = [1, 1]} : vector<8x8xf32> to vector<8x1xf32>
    %187 = vector.extract_strided_slice %181 {offsets = [0, 4], sizes = [8, 1], strides = [1, 1]} : vector<8x8xf32> to vector<8x1xf32>
    %188 = vector.extract_strided_slice %181 {offsets = [0, 5], sizes = [8, 1], strides = [1, 1]} : vector<8x8xf32> to vector<8x1xf32>
    %189 = vector.extract_strided_slice %181 {offsets = [0, 6], sizes = [8, 1], strides = [1, 1]} : vector<8x8xf32> to vector<8x1xf32>
    %190 = vector.extract_strided_slice %181 {offsets = [0, 7], sizes = [8, 1], strides = [1, 1]} : vector<8x8xf32> to vector<8x1xf32>
    %c88 = arith.constant 88 : index
    %c0_37 = arith.constant 0 : index
    %191 = vector.load %arg4[%c88, %c0_37] : memref<168x32xf32, #tpu.memory_space<vmem>>, vector<8x8xf32>
    %c96 = arith.constant 96 : index
    %c0_38 = arith.constant 0 : index
    %192 = vector.load %arg4[%c96, %c0_38] : memref<168x32xf32, #tpu.memory_space<vmem>>, vector<2x8xf32>
    %c0_39 = arith.constant 0 : index
    %c0_40 = arith.constant 0 : index
    %c0_41 = arith.constant 0 : index
    %193 = vector.load %arg3[%c0_39, %c0_40, %c0_41] : memref<8x6x4xf32, #tpu.memory_space<vmem>>, vector<8x6x4xf32>
    %194 = vector.extract_strided_slice %193 {offsets = [0, 0, 0], sizes = [8, 6, 1], strides = [1, 1, 1]} : vector<8x6x4xf32> to vector<8x6x1xf32>
    %195 = vector.shape_cast %194 : vector<8x6x1xf32> to vector<8x6xf32>
    %196 = vector.extract_strided_slice %193 {offsets = [0, 0, 1], sizes = [8, 6, 1], strides = [1, 1, 1]} : vector<8x6x4xf32> to vector<8x6x1xf32>
    %197 = vector.shape_cast %196 : vector<8x6x1xf32> to vector<8x6xf32>
    %198 = vector.extract_strided_slice %193 {offsets = [0, 0, 2], sizes = [8, 6, 2], strides = [1, 1, 1]} : vector<8x6x4xf32> to vector<8x6x2xf32>
    %199 = vector.shape_cast %198 : vector<8x6x2xf32> to vector<48x2xf32>
    %cst_42 = arith.constant dense<0.000000e+00> : vector<48x8xf32>
    %200 = tpu.matmul %199, %192, %cst_42 {dimension_numbers = #tpu.dot_dimension_numbers<[1], [0], [0], [1], [0, 0, 1, 1], [], []>} : vector<48x2xf32>, vector<2x8xf32>, vector<48x8xf32> -> vector<48x8xf32>
    %201 = vector.shape_cast %200 : vector<48x8xf32> to vector<8x6x8xf32>
    %cst_43 = arith.constant dense<0.000000e+00> : vector<8x8xf32>
    %202 = tpu.matmul %160, %191, %cst_43 {dimension_numbers = #tpu.dot_dimension_numbers<[1], [0], [0], [1], [0, 0, 1, 1], [], []>} : vector<8x8xf32>, vector<8x8xf32>, vector<8x8xf32> -> vector<8x8xf32>
    %203 = vector.extract_strided_slice %201 {offsets = [0, 0, 0], sizes = [8, 1, 8], strides = [1, 1, 1]} : vector<8x6x8xf32> to vector<8x1x8xf32>
    %204 = vector.shape_cast %203 : vector<8x1x8xf32> to vector<8x8xf32>
    %205 = arith.addf %202, %204 : vector<8x8xf32>
    %cst_44 = arith.constant dense<0.000000e+00> : vector<8x8xf32>
    %206 = tpu.matmul %205, %191, %cst_44 {dimension_numbers = #tpu.dot_dimension_numbers<[1], [0], [0], [1], [0, 0, 1, 1], [], []>} : vector<8x8xf32>, vector<8x8xf32>, vector<8x8xf32> -> vector<8x8xf32>
    %207 = vector.extract_strided_slice %201 {offsets = [0, 1, 0], sizes = [8, 1, 8], strides = [1, 1, 1]} : vector<8x6x8xf32> to vector<8x1x8xf32>
    %208 = vector.shape_cast %207 : vector<8x1x8xf32> to vector<8x8xf32>
    %209 = arith.addf %206, %208 : vector<8x8xf32>
    %cst_45 = arith.constant dense<0.000000e+00> : vector<8x8xf32>
    %210 = tpu.matmul %209, %191, %cst_45 {dimension_numbers = #tpu.dot_dimension_numbers<[1], [0], [0], [1], [0, 0, 1, 1], [], []>} : vector<8x8xf32>, vector<8x8xf32>, vector<8x8xf32> -> vector<8x8xf32>
    %211 = vector.extract_strided_slice %201 {offsets = [0, 2, 0], sizes = [8, 1, 8], strides = [1, 1, 1]} : vector<8x6x8xf32> to vector<8x1x8xf32>
    %212 = vector.shape_cast %211 : vector<8x1x8xf32> to vector<8x8xf32>
    %213 = arith.addf %210, %212 : vector<8x8xf32>
    %cst_46 = arith.constant dense<0.000000e+00> : vector<8x8xf32>
    %214 = tpu.matmul %213, %191, %cst_46 {dimension_numbers = #tpu.dot_dimension_numbers<[1], [0], [0], [1], [0, 0, 1, 1], [], []>} : vector<8x8xf32>, vector<8x8xf32>, vector<8x8xf32> -> vector<8x8xf32>
    %215 = vector.extract_strided_slice %201 {offsets = [0, 3, 0], sizes = [8, 1, 8], strides = [1, 1, 1]} : vector<8x6x8xf32> to vector<8x1x8xf32>
    %216 = vector.shape_cast %215 : vector<8x1x8xf32> to vector<8x8xf32>
    %217 = arith.addf %214, %216 : vector<8x8xf32>
    %cst_47 = arith.constant dense<0.000000e+00> : vector<8x8xf32>
    %218 = tpu.matmul %217, %191, %cst_47 {dimension_numbers = #tpu.dot_dimension_numbers<[1], [0], [0], [1], [0, 0, 1, 1], [], []>} : vector<8x8xf32>, vector<8x8xf32>, vector<8x8xf32> -> vector<8x8xf32>
    %219 = vector.extract_strided_slice %201 {offsets = [0, 4, 0], sizes = [8, 1, 8], strides = [1, 1, 1]} : vector<8x6x8xf32> to vector<8x1x8xf32>
    %220 = vector.shape_cast %219 : vector<8x1x8xf32> to vector<8x8xf32>
    %221 = arith.addf %218, %220 : vector<8x8xf32>
    %cst_48 = arith.constant dense<0.000000e+00> : vector<8x8xf32>
    %222 = tpu.matmul %221, %191, %cst_48 {dimension_numbers = #tpu.dot_dimension_numbers<[1], [0], [0], [1], [0, 0, 1, 1], [], []>} : vector<8x8xf32>, vector<8x8xf32>, vector<8x8xf32> -> vector<8x8xf32>
    %223 = vector.extract_strided_slice %201 {offsets = [0, 5, 0], sizes = [8, 1, 8], strides = [1, 1, 1]} : vector<8x6x8xf32> to vector<8x1x8xf32>
    %224 = vector.shape_cast %223 : vector<8x1x8xf32> to vector<8x8xf32>
    %225 = arith.addf %222, %224 : vector<8x8xf32>
    %226 = tpu.concatenate %205, %209, %213, %217, %221, %225 in 0 : vector<8x8xf32>, vector<8x8xf32>, vector<8x8xf32>, vector<8x8xf32>, vector<8x8xf32>, vector<8x8xf32> -> vector<48x8xf32>
    %c104 = arith.constant 104 : index
    %c0_49 = arith.constant 0 : index
    %227 = vector.load %arg4[%c104, %c0_49] : memref<168x32xf32, #tpu.memory_space<vmem>>, vector<8x16xf32>
    %c112 = arith.constant 112 : index
    %c0_50 = arith.constant 0 : index
    %228 = vector.load %arg4[%c112, %c0_50] : memref<168x32xf32, #tpu.memory_space<vmem>>, vector<1x16xf32>
    %c120 = arith.constant 120 : index
    %c0_51 = arith.constant 0 : index
    %229 = vector.load %arg4[%c120, %c0_51] : memref<168x32xf32, #tpu.memory_space<vmem>>, vector<16x16xf32>
    %c136 = arith.constant 136 : index
    %c0_52 = arith.constant 0 : index
    %230 = vector.load %arg4[%c136, %c0_52] : memref<168x32xf32, #tpu.memory_space<vmem>>, vector<1x16xf32>
    %c144 = arith.constant 144 : index
    %c0_53 = arith.constant 0 : index
    %231 = vector.load %arg4[%c144, %c0_53] : memref<168x32xf32, #tpu.memory_space<vmem>>, vector<16x28xf32>
    %c160 = arith.constant 160 : index
    %c0_54 = arith.constant 0 : index
    %232 = vector.load %arg4[%c160, %c0_54] : memref<168x32xf32, #tpu.memory_space<vmem>>, vector<1x28xf32>
    %cst_55 = arith.constant dense<0.000000e+00> : vector<48x16xf32>
    %233 = tpu.matmul %226, %227, %cst_55 {dimension_numbers = #tpu.dot_dimension_numbers<[1], [0], [0], [1], [0, 0, 1, 1], [], []>} : vector<48x8xf32>, vector<8x16xf32>, vector<48x16xf32> -> vector<48x16xf32>
    %234 = vector.broadcast %228 : vector<1x16xf32> to vector<48x16xf32>
    %235 = arith.addf %233, %234 : vector<48x16xf32>
    %cst_56 = arith.constant 0.000000e+00 : f32
    %236 = vector.broadcast %cst_56 : f32 to vector<48x16xf32>
    %237 = arith.maximumf %235, %236 : vector<48x16xf32>
    %cst_57 = arith.constant dense<0.000000e+00> : vector<48x16xf32>
    %238 = tpu.matmul %237, %229, %cst_57 {dimension_numbers = #tpu.dot_dimension_numbers<[1], [0], [0], [1], [0, 0, 1, 1], [], []>} : vector<48x16xf32>, vector<16x16xf32>, vector<48x16xf32> -> vector<48x16xf32>
    %239 = vector.broadcast %230 : vector<1x16xf32> to vector<48x16xf32>
    %240 = arith.addf %238, %239 : vector<48x16xf32>
    %cst_58 = arith.constant 0.000000e+00 : f32
    %241 = vector.broadcast %cst_58 : f32 to vector<48x16xf32>
    %242 = arith.maximumf %240, %241 : vector<48x16xf32>
    %cst_59 = arith.constant dense<0.000000e+00> : vector<48x28xf32>
    %243 = tpu.matmul %242, %231, %cst_59 {dimension_numbers = #tpu.dot_dimension_numbers<[1], [0], [0], [1], [0, 0, 1, 1], [], []>} : vector<48x16xf32>, vector<16x28xf32>, vector<48x28xf32> -> vector<48x28xf32>
    %244 = vector.broadcast %232 : vector<1x28xf32> to vector<48x28xf32>
    %245 = arith.addf %243, %244 : vector<48x28xf32>
    %246 = math.absf %245 : vector<48x28xf32>
    %247 = vector.shape_cast %246 : vector<48x28xf32> to vector<6x8x28xf32>
    %248 = vector.extract_strided_slice %247 {offsets = [0, 0, 0], sizes = [1, 8, 28], strides = [1, 1, 1]} : vector<6x8x28xf32> to vector<1x8x28xf32>
    %249 = vector.shape_cast %248 : vector<1x8x28xf32> to vector<8x28xf32>
    %250 = vector.extract_strided_slice %249 {offsets = [0, 0], sizes = [8, 1], strides = [1, 1]} : vector<8x28xf32> to vector<8x1xf32>
    %251 = vector.extract_strided_slice %249 {offsets = [0, 1], sizes = [8, 1], strides = [1, 1]} : vector<8x28xf32> to vector<8x1xf32>
    %252 = vector.extract_strided_slice %249 {offsets = [0, 2], sizes = [8, 1], strides = [1, 1]} : vector<8x28xf32> to vector<8x1xf32>
    %253 = vector.extract_strided_slice %249 {offsets = [0, 3], sizes = [8, 1], strides = [1, 1]} : vector<8x28xf32> to vector<8x1xf32>
    %254 = vector.extract_strided_slice %249 {offsets = [0, 4], sizes = [8, 1], strides = [1, 1]} : vector<8x28xf32> to vector<8x1xf32>
    %255 = vector.extract_strided_slice %249 {offsets = [0, 5], sizes = [8, 1], strides = [1, 1]} : vector<8x28xf32> to vector<8x1xf32>
    %256 = vector.extract_strided_slice %249 {offsets = [0, 6], sizes = [8, 1], strides = [1, 1]} : vector<8x28xf32> to vector<8x1xf32>
    %257 = vector.extract_strided_slice %249 {offsets = [0, 8], sizes = [8, 1], strides = [1, 1]} : vector<8x28xf32> to vector<8x1xf32>
    %258 = vector.extract_strided_slice %249 {offsets = [0, 9], sizes = [8, 1], strides = [1, 1]} : vector<8x28xf32> to vector<8x1xf32>
    %259 = vector.extract_strided_slice %249 {offsets = [0, 10], sizes = [8, 1], strides = [1, 1]} : vector<8x28xf32> to vector<8x1xf32>
    %260 = vector.extract_strided_slice %249 {offsets = [0, 11], sizes = [8, 1], strides = [1, 1]} : vector<8x28xf32> to vector<8x1xf32>
    %261 = vector.extract_strided_slice %249 {offsets = [0, 12], sizes = [8, 1], strides = [1, 1]} : vector<8x28xf32> to vector<8x1xf32>
    %262 = vector.extract_strided_slice %249 {offsets = [0, 13], sizes = [8, 1], strides = [1, 1]} : vector<8x28xf32> to vector<8x1xf32>
    %263 = vector.extract_strided_slice %249 {offsets = [0, 14], sizes = [8, 1], strides = [1, 1]} : vector<8x28xf32> to vector<8x1xf32>
    %264 = vector.extract_strided_slice %249 {offsets = [0, 15], sizes = [8, 1], strides = [1, 1]} : vector<8x28xf32> to vector<8x1xf32>
    %265 = vector.extract_strided_slice %249 {offsets = [0, 16], sizes = [8, 1], strides = [1, 1]} : vector<8x28xf32> to vector<8x1xf32>
    %266 = vector.extract_strided_slice %249 {offsets = [0, 17], sizes = [8, 1], strides = [1, 1]} : vector<8x28xf32> to vector<8x1xf32>
    %267 = vector.extract_strided_slice %249 {offsets = [0, 18], sizes = [8, 1], strides = [1, 1]} : vector<8x28xf32> to vector<8x1xf32>
    %268 = vector.extract_strided_slice %249 {offsets = [0, 19], sizes = [8, 1], strides = [1, 1]} : vector<8x28xf32> to vector<8x1xf32>
    %269 = vector.extract_strided_slice %249 {offsets = [0, 20], sizes = [8, 1], strides = [1, 1]} : vector<8x28xf32> to vector<8x1xf32>
    %270 = vector.extract_strided_slice %249 {offsets = [0, 21], sizes = [8, 1], strides = [1, 1]} : vector<8x28xf32> to vector<8x1xf32>
    %271 = vector.extract_strided_slice %249 {offsets = [0, 22], sizes = [8, 1], strides = [1, 1]} : vector<8x28xf32> to vector<8x1xf32>
    %272 = vector.extract_strided_slice %249 {offsets = [0, 23], sizes = [8, 1], strides = [1, 1]} : vector<8x28xf32> to vector<8x1xf32>
    %273 = vector.extract_strided_slice %249 {offsets = [0, 24], sizes = [8, 1], strides = [1, 1]} : vector<8x28xf32> to vector<8x1xf32>
    %274 = vector.extract_strided_slice %249 {offsets = [0, 25], sizes = [8, 1], strides = [1, 1]} : vector<8x28xf32> to vector<8x1xf32>
    %275 = vector.extract_strided_slice %249 {offsets = [0, 26], sizes = [8, 1], strides = [1, 1]} : vector<8x28xf32> to vector<8x1xf32>
    %276 = vector.extract_strided_slice %249 {offsets = [0, 27], sizes = [8, 1], strides = [1, 1]} : vector<8x28xf32> to vector<8x1xf32>
    %277 = vector.extract_strided_slice %195 {offsets = [0, 0], sizes = [8, 1], strides = [1, 1]} : vector<8x6xf32> to vector<8x1xf32>
    %278 = vector.extract_strided_slice %197 {offsets = [0, 0], sizes = [8, 1], strides = [1, 1]} : vector<8x6xf32> to vector<8x1xf32>
    %279 = arith.mulf %268, %182 : vector<8x1xf32>
    %280 = arith.subf %267, %279 : vector<8x1xf32>
    %281 = arith.mulf %269, %187 : vector<8x1xf32>
    %282 = arith.subf %280, %281 : vector<8x1xf32>
    %283 = arith.addf %188, %189 : vector<8x1xf32>
    %cst_60 = arith.constant 2.000000e+00 : f32
    %284 = vector.broadcast %cst_60 : f32 to vector<8x1xf32>
    %285 = arith.divf %257, %284 : vector<8x1xf32>
    %286 = arith.subf %258, %285 : vector<8x1xf32>
    %287 = arith.mulf %262, %264 : vector<8x1xf32>
    %288 = arith.subf %283, %287 : vector<8x1xf32>
    %289 = arith.mulf %260, %288 : vector<8x1xf32>
    %290 = math.tanh %289 : vector<8x1xf32>
    %291 = arith.mulf %263, %264 : vector<8x1xf32>
    %292 = arith.subf %283, %291 : vector<8x1xf32>
    %293 = arith.mulf %261, %292 : vector<8x1xf32>
    %294 = math.tanh %293 : vector<8x1xf32>
    %295 = arith.subf %290, %294 : vector<8x1xf32>
    %cst_61 = arith.constant 2.000000e+00 : f32
    %296 = vector.broadcast %cst_61 : f32 to vector<8x1xf32>
    %297 = arith.addf %295, %296 : vector<8x1xf32>
    %298 = arith.mulf %286, %297 : vector<8x1xf32>
    %299 = arith.addf %257, %298 : vector<8x1xf32>
    %300 = arith.mulf %266, %259 : vector<8x1xf32>
    %301 = arith.mulf %300, %190 : vector<8x1xf32>
    %302 = arith.divf %301, %265 : vector<8x1xf32>
    %303 = arith.mulf %273, %186 : vector<8x1xf32>
    %304 = arith.mulf %303, %275 : vector<8x1xf32>
    %305 = arith.addf %272, %304 : vector<8x1xf32>
    %306 = arith.mulf %305, %183 : vector<8x1xf32>
    %307 = math.absf %183 : vector<8x1xf32>
    %308 = arith.addf %274, %307 : vector<8x1xf32>
    %309 = arith.divf %306, %308 : vector<8x1xf32>
    %cst_62 = arith.constant 0.000000e+00 : f32
    %310 = vector.broadcast %cst_62 : f32 to vector<8x1xf32>
    %311 = arith.subf %310, %256 : vector<8x1xf32>
    %312 = arith.mulf %311, %188 : vector<8x1xf32>
    %313 = arith.mulf %264, %278 : vector<8x1xf32>
    %314 = arith.addf %312, %313 : vector<8x1xf32>
    %cst_63 = arith.constant 0.000000e+00 : f32
    %315 = vector.broadcast %cst_63 : f32 to vector<8x1xf32>
    %316 = arith.subf %315, %299 : vector<8x1xf32>
    %317 = arith.mulf %316, %189 : vector<8x1xf32>
    %318 = arith.mulf %256, %188 : vector<8x1xf32>
    %319 = arith.addf %317, %318 : vector<8x1xf32>
    %cst_64 = arith.constant 0.000000e+00 : f32
    %320 = vector.broadcast %cst_64 : f32 to vector<8x1xf32>
    %321 = arith.subf %320, %259 : vector<8x1xf32>
    %322 = arith.mulf %321, %190 : vector<8x1xf32>
    %323 = arith.mulf %299, %189 : vector<8x1xf32>
    %324 = arith.addf %322, %323 : vector<8x1xf32>
    %325 = arith.addf %253, %255 : vector<8x1xf32>
    %cst_65 = arith.constant 0.000000e+00 : f32
    %326 = vector.broadcast %cst_65 : f32 to vector<8x1xf32>
    %327 = arith.subf %326, %325 : vector<8x1xf32>
    %328 = arith.mulf %327, %184 : vector<8x1xf32>
    %329 = arith.mulf %252, %185 : vector<8x1xf32>
    %330 = arith.addf %328, %329 : vector<8x1xf32>
    %331 = arith.addf %330, %277 : vector<8x1xf32>
    %332 = arith.addf %252, %254 : vector<8x1xf32>
    %cst_66 = arith.constant 0.000000e+00 : f32
    %333 = vector.broadcast %cst_66 : f32 to vector<8x1xf32>
    %334 = arith.subf %333, %332 : vector<8x1xf32>
    %335 = arith.mulf %334, %185 : vector<8x1xf32>
    %336 = arith.mulf %253, %184 : vector<8x1xf32>
    %337 = arith.addf %335, %336 : vector<8x1xf32>
    %cst_67 = arith.constant 0.000000e+00 : f32
    %338 = vector.broadcast %cst_67 : f32 to vector<8x1xf32>
    %339 = arith.subf %338, %270 : vector<8x1xf32>
    %340 = arith.subf %187, %184 : vector<8x1xf32>
    %341 = arith.mulf %339, %340 : vector<8x1xf32>
    %cst_68 = arith.constant 0.000000e+00 : f32
    %342 = vector.broadcast %cst_68 : f32 to vector<8x1xf32>
    %343 = arith.subf %342, %276 : vector<8x1xf32>
    %344 = arith.mulf %343, %186 : vector<8x1xf32>
    %345 = arith.mulf %276, %184 : vector<8x1xf32>
    %346 = arith.addf %344, %345 : vector<8x1xf32>
    %347 = arith.addf %282, %302 : vector<8x1xf32>
    %348 = arith.subf %347, %271 : vector<8x1xf32>
    %349 = arith.mulf %250, %182 : vector<8x1xf32>
    %350 = arith.subf %348, %349 : vector<8x1xf32>
    %351 = arith.mulf %251, %183 : vector<8x1xf32>
    %352 = arith.addf %350, %351 : vector<8x1xf32>
    %cst_69 = arith.constant 0.000000e+00 : f32
    %353 = vector.broadcast %cst_69 : f32 to vector<8x1xf32>
    %354 = arith.subf %353, %309 : vector<8x1xf32>
    %355 = arith.mulf %250, %182 : vector<8x1xf32>
    %356 = arith.addf %354, %355 : vector<8x1xf32>
    %357 = arith.mulf %251, %183 : vector<8x1xf32>
    %358 = arith.subf %356, %357 : vector<8x1xf32>
    %359 = arith.addf %182, %352 : vector<8x1xf32>
    %360 = arith.addf %183, %358 : vector<8x1xf32>
    %361 = arith.addf %184, %331 : vector<8x1xf32>
    %362 = arith.addf %185, %337 : vector<8x1xf32>
    %363 = arith.addf %186, %346 : vector<8x1xf32>
    %364 = arith.addf %187, %341 : vector<8x1xf32>
    %365 = arith.addf %188, %314 : vector<8x1xf32>
    %366 = arith.addf %189, %319 : vector<8x1xf32>
    %367 = arith.addf %190, %324 : vector<8x1xf32>
    %368 = vector.extract_strided_slice %247 {offsets = [1, 0, 0], sizes = [1, 8, 28], strides = [1, 1, 1]} : vector<6x8x28xf32> to vector<1x8x28xf32>
    %369 = vector.shape_cast %368 : vector<1x8x28xf32> to vector<8x28xf32>
    %370 = vector.extract_strided_slice %369 {offsets = [0, 0], sizes = [8, 1], strides = [1, 1]} : vector<8x28xf32> to vector<8x1xf32>
    %371 = vector.extract_strided_slice %369 {offsets = [0, 1], sizes = [8, 1], strides = [1, 1]} : vector<8x28xf32> to vector<8x1xf32>
    %372 = vector.extract_strided_slice %369 {offsets = [0, 2], sizes = [8, 1], strides = [1, 1]} : vector<8x28xf32> to vector<8x1xf32>
    %373 = vector.extract_strided_slice %369 {offsets = [0, 3], sizes = [8, 1], strides = [1, 1]} : vector<8x28xf32> to vector<8x1xf32>
    %374 = vector.extract_strided_slice %369 {offsets = [0, 4], sizes = [8, 1], strides = [1, 1]} : vector<8x28xf32> to vector<8x1xf32>
    %375 = vector.extract_strided_slice %369 {offsets = [0, 5], sizes = [8, 1], strides = [1, 1]} : vector<8x28xf32> to vector<8x1xf32>
    %376 = vector.extract_strided_slice %369 {offsets = [0, 6], sizes = [8, 1], strides = [1, 1]} : vector<8x28xf32> to vector<8x1xf32>
    %377 = vector.extract_strided_slice %369 {offsets = [0, 8], sizes = [8, 1], strides = [1, 1]} : vector<8x28xf32> to vector<8x1xf32>
    %378 = vector.extract_strided_slice %369 {offsets = [0, 9], sizes = [8, 1], strides = [1, 1]} : vector<8x28xf32> to vector<8x1xf32>
    %379 = vector.extract_strided_slice %369 {offsets = [0, 10], sizes = [8, 1], strides = [1, 1]} : vector<8x28xf32> to vector<8x1xf32>
    %380 = vector.extract_strided_slice %369 {offsets = [0, 11], sizes = [8, 1], strides = [1, 1]} : vector<8x28xf32> to vector<8x1xf32>
    %381 = vector.extract_strided_slice %369 {offsets = [0, 12], sizes = [8, 1], strides = [1, 1]} : vector<8x28xf32> to vector<8x1xf32>
    %382 = vector.extract_strided_slice %369 {offsets = [0, 13], sizes = [8, 1], strides = [1, 1]} : vector<8x28xf32> to vector<8x1xf32>
    %383 = vector.extract_strided_slice %369 {offsets = [0, 14], sizes = [8, 1], strides = [1, 1]} : vector<8x28xf32> to vector<8x1xf32>
    %384 = vector.extract_strided_slice %369 {offsets = [0, 15], sizes = [8, 1], strides = [1, 1]} : vector<8x28xf32> to vector<8x1xf32>
    %385 = vector.extract_strided_slice %369 {offsets = [0, 16], sizes = [8, 1], strides = [1, 1]} : vector<8x28xf32> to vector<8x1xf32>
    %386 = vector.extract_strided_slice %369 {offsets = [0, 17], sizes = [8, 1], strides = [1, 1]} : vector<8x28xf32> to vector<8x1xf32>
    %387 = vector.extract_strided_slice %369 {offsets = [0, 18], sizes = [8, 1], strides = [1, 1]} : vector<8x28xf32> to vector<8x1xf32>
    %388 = vector.extract_strided_slice %369 {offsets = [0, 19], sizes = [8, 1], strides = [1, 1]} : vector<8x28xf32> to vector<8x1xf32>
    %389 = vector.extract_strided_slice %369 {offsets = [0, 20], sizes = [8, 1], strides = [1, 1]} : vector<8x28xf32> to vector<8x1xf32>
    %390 = vector.extract_strided_slice %369 {offsets = [0, 21], sizes = [8, 1], strides = [1, 1]} : vector<8x28xf32> to vector<8x1xf32>
    %391 = vector.extract_strided_slice %369 {offsets = [0, 22], sizes = [8, 1], strides = [1, 1]} : vector<8x28xf32> to vector<8x1xf32>
    %392 = vector.extract_strided_slice %369 {offsets = [0, 23], sizes = [8, 1], strides = [1, 1]} : vector<8x28xf32> to vector<8x1xf32>
    %393 = vector.extract_strided_slice %369 {offsets = [0, 24], sizes = [8, 1], strides = [1, 1]} : vector<8x28xf32> to vector<8x1xf32>
    %394 = vector.extract_strided_slice %369 {offsets = [0, 25], sizes = [8, 1], strides = [1, 1]} : vector<8x28xf32> to vector<8x1xf32>
    %395 = vector.extract_strided_slice %369 {offsets = [0, 26], sizes = [8, 1], strides = [1, 1]} : vector<8x28xf32> to vector<8x1xf32>
    %396 = vector.extract_strided_slice %369 {offsets = [0, 27], sizes = [8, 1], strides = [1, 1]} : vector<8x28xf32> to vector<8x1xf32>
    %397 = vector.extract_strided_slice %195 {offsets = [0, 1], sizes = [8, 1], strides = [1, 1]} : vector<8x6xf32> to vector<8x1xf32>
    %398 = vector.extract_strided_slice %197 {offsets = [0, 1], sizes = [8, 1], strides = [1, 1]} : vector<8x6xf32> to vector<8x1xf32>
    %399 = arith.mulf %388, %359 : vector<8x1xf32>
    %400 = arith.subf %387, %399 : vector<8x1xf32>
    %401 = arith.mulf %389, %364 : vector<8x1xf32>
    %402 = arith.subf %400, %401 : vector<8x1xf32>
    %403 = arith.addf %365, %366 : vector<8x1xf32>
    %cst_70 = arith.constant 2.000000e+00 : f32
    %404 = vector.broadcast %cst_70 : f32 to vector<8x1xf32>
    %405 = arith.divf %377, %404 : vector<8x1xf32>
    %406 = arith.subf %378, %405 : vector<8x1xf32>
    %407 = arith.mulf %382, %384 : vector<8x1xf32>
    %408 = arith.subf %403, %407 : vector<8x1xf32>
    %409 = arith.mulf %380, %408 : vector<8x1xf32>
    %410 = math.tanh %409 : vector<8x1xf32>
    %411 = arith.mulf %383, %384 : vector<8x1xf32>
    %412 = arith.subf %403, %411 : vector<8x1xf32>
    %413 = arith.mulf %381, %412 : vector<8x1xf32>
    %414 = math.tanh %413 : vector<8x1xf32>
    %415 = arith.subf %410, %414 : vector<8x1xf32>
    %cst_71 = arith.constant 2.000000e+00 : f32
    %416 = vector.broadcast %cst_71 : f32 to vector<8x1xf32>
    %417 = arith.addf %415, %416 : vector<8x1xf32>
    %418 = arith.mulf %406, %417 : vector<8x1xf32>
    %419 = arith.addf %377, %418 : vector<8x1xf32>
    %420 = arith.mulf %386, %379 : vector<8x1xf32>
    %421 = arith.mulf %420, %367 : vector<8x1xf32>
    %422 = arith.divf %421, %385 : vector<8x1xf32>
    %423 = arith.mulf %393, %363 : vector<8x1xf32>
    %424 = arith.mulf %423, %395 : vector<8x1xf32>
    %425 = arith.addf %392, %424 : vector<8x1xf32>
    %426 = arith.mulf %425, %360 : vector<8x1xf32>
    %427 = math.absf %360 : vector<8x1xf32>
    %428 = arith.addf %394, %427 : vector<8x1xf32>
    %429 = arith.divf %426, %428 : vector<8x1xf32>
    %cst_72 = arith.constant 0.000000e+00 : f32
    %430 = vector.broadcast %cst_72 : f32 to vector<8x1xf32>
    %431 = arith.subf %430, %376 : vector<8x1xf32>
    %432 = arith.mulf %431, %365 : vector<8x1xf32>
    %433 = arith.mulf %384, %398 : vector<8x1xf32>
    %434 = arith.addf %432, %433 : vector<8x1xf32>
    %cst_73 = arith.constant 0.000000e+00 : f32
    %435 = vector.broadcast %cst_73 : f32 to vector<8x1xf32>
    %436 = arith.subf %435, %419 : vector<8x1xf32>
    %437 = arith.mulf %436, %366 : vector<8x1xf32>
    %438 = arith.mulf %376, %365 : vector<8x1xf32>
    %439 = arith.addf %437, %438 : vector<8x1xf32>
    %cst_74 = arith.constant 0.000000e+00 : f32
    %440 = vector.broadcast %cst_74 : f32 to vector<8x1xf32>
    %441 = arith.subf %440, %379 : vector<8x1xf32>
    %442 = arith.mulf %441, %367 : vector<8x1xf32>
    %443 = arith.mulf %419, %366 : vector<8x1xf32>
    %444 = arith.addf %442, %443 : vector<8x1xf32>
    %445 = arith.addf %373, %375 : vector<8x1xf32>
    %cst_75 = arith.constant 0.000000e+00 : f32
    %446 = vector.broadcast %cst_75 : f32 to vector<8x1xf32>
    %447 = arith.subf %446, %445 : vector<8x1xf32>
    %448 = arith.mulf %447, %361 : vector<8x1xf32>
    %449 = arith.mulf %372, %362 : vector<8x1xf32>
    %450 = arith.addf %448, %449 : vector<8x1xf32>
    %451 = arith.addf %450, %397 : vector<8x1xf32>
    %452 = arith.addf %372, %374 : vector<8x1xf32>
    %cst_76 = arith.constant 0.000000e+00 : f32
    %453 = vector.broadcast %cst_76 : f32 to vector<8x1xf32>
    %454 = arith.subf %453, %452 : vector<8x1xf32>
    %455 = arith.mulf %454, %362 : vector<8x1xf32>
    %456 = arith.mulf %373, %361 : vector<8x1xf32>
    %457 = arith.addf %455, %456 : vector<8x1xf32>
    %cst_77 = arith.constant 0.000000e+00 : f32
    %458 = vector.broadcast %cst_77 : f32 to vector<8x1xf32>
    %459 = arith.subf %458, %390 : vector<8x1xf32>
    %460 = arith.subf %364, %361 : vector<8x1xf32>
    %461 = arith.mulf %459, %460 : vector<8x1xf32>
    %cst_78 = arith.constant 0.000000e+00 : f32
    %462 = vector.broadcast %cst_78 : f32 to vector<8x1xf32>
    %463 = arith.subf %462, %396 : vector<8x1xf32>
    %464 = arith.mulf %463, %363 : vector<8x1xf32>
    %465 = arith.mulf %396, %361 : vector<8x1xf32>
    %466 = arith.addf %464, %465 : vector<8x1xf32>
    %467 = arith.addf %402, %422 : vector<8x1xf32>
    %468 = arith.subf %467, %391 : vector<8x1xf32>
    %469 = arith.mulf %370, %359 : vector<8x1xf32>
    %470 = arith.subf %468, %469 : vector<8x1xf32>
    %471 = arith.mulf %371, %360 : vector<8x1xf32>
    %472 = arith.addf %470, %471 : vector<8x1xf32>
    %cst_79 = arith.constant 0.000000e+00 : f32
    %473 = vector.broadcast %cst_79 : f32 to vector<8x1xf32>
    %474 = arith.subf %473, %429 : vector<8x1xf32>
    %475 = arith.mulf %370, %359 : vector<8x1xf32>
    %476 = arith.addf %474, %475 : vector<8x1xf32>
    %477 = arith.mulf %371, %360 : vector<8x1xf32>
    %478 = arith.subf %476, %477 : vector<8x1xf32>
    %479 = arith.addf %359, %472 : vector<8x1xf32>
    %480 = arith.addf %360, %478 : vector<8x1xf32>
    %481 = arith.addf %361, %451 : vector<8x1xf32>
    %482 = arith.addf %362, %457 : vector<8x1xf32>
    %483 = arith.addf %363, %466 : vector<8x1xf32>
    %484 = arith.addf %364, %461 : vector<8x1xf32>
    %485 = arith.addf %365, %434 : vector<8x1xf32>
    %486 = arith.addf %366, %439 : vector<8x1xf32>
    %487 = arith.addf %367, %444 : vector<8x1xf32>
    %488 = vector.extract_strided_slice %247 {offsets = [2, 0, 0], sizes = [1, 8, 28], strides = [1, 1, 1]} : vector<6x8x28xf32> to vector<1x8x28xf32>
    %489 = vector.shape_cast %488 : vector<1x8x28xf32> to vector<8x28xf32>
    %490 = vector.extract_strided_slice %489 {offsets = [0, 0], sizes = [8, 1], strides = [1, 1]} : vector<8x28xf32> to vector<8x1xf32>
    %491 = vector.extract_strided_slice %489 {offsets = [0, 1], sizes = [8, 1], strides = [1, 1]} : vector<8x28xf32> to vector<8x1xf32>
    %492 = vector.extract_strided_slice %489 {offsets = [0, 2], sizes = [8, 1], strides = [1, 1]} : vector<8x28xf32> to vector<8x1xf32>
    %493 = vector.extract_strided_slice %489 {offsets = [0, 3], sizes = [8, 1], strides = [1, 1]} : vector<8x28xf32> to vector<8x1xf32>
    %494 = vector.extract_strided_slice %489 {offsets = [0, 4], sizes = [8, 1], strides = [1, 1]} : vector<8x28xf32> to vector<8x1xf32>
    %495 = vector.extract_strided_slice %489 {offsets = [0, 5], sizes = [8, 1], strides = [1, 1]} : vector<8x28xf32> to vector<8x1xf32>
    %496 = vector.extract_strided_slice %489 {offsets = [0, 6], sizes = [8, 1], strides = [1, 1]} : vector<8x28xf32> to vector<8x1xf32>
    %497 = vector.extract_strided_slice %489 {offsets = [0, 8], sizes = [8, 1], strides = [1, 1]} : vector<8x28xf32> to vector<8x1xf32>
    %498 = vector.extract_strided_slice %489 {offsets = [0, 9], sizes = [8, 1], strides = [1, 1]} : vector<8x28xf32> to vector<8x1xf32>
    %499 = vector.extract_strided_slice %489 {offsets = [0, 10], sizes = [8, 1], strides = [1, 1]} : vector<8x28xf32> to vector<8x1xf32>
    %500 = vector.extract_strided_slice %489 {offsets = [0, 11], sizes = [8, 1], strides = [1, 1]} : vector<8x28xf32> to vector<8x1xf32>
    %501 = vector.extract_strided_slice %489 {offsets = [0, 12], sizes = [8, 1], strides = [1, 1]} : vector<8x28xf32> to vector<8x1xf32>
    %502 = vector.extract_strided_slice %489 {offsets = [0, 13], sizes = [8, 1], strides = [1, 1]} : vector<8x28xf32> to vector<8x1xf32>
    %503 = vector.extract_strided_slice %489 {offsets = [0, 14], sizes = [8, 1], strides = [1, 1]} : vector<8x28xf32> to vector<8x1xf32>
    %504 = vector.extract_strided_slice %489 {offsets = [0, 15], sizes = [8, 1], strides = [1, 1]} : vector<8x28xf32> to vector<8x1xf32>
    %505 = vector.extract_strided_slice %489 {offsets = [0, 16], sizes = [8, 1], strides = [1, 1]} : vector<8x28xf32> to vector<8x1xf32>
    %506 = vector.extract_strided_slice %489 {offsets = [0, 17], sizes = [8, 1], strides = [1, 1]} : vector<8x28xf32> to vector<8x1xf32>
    %507 = vector.extract_strided_slice %489 {offsets = [0, 18], sizes = [8, 1], strides = [1, 1]} : vector<8x28xf32> to vector<8x1xf32>
    %508 = vector.extract_strided_slice %489 {offsets = [0, 19], sizes = [8, 1], strides = [1, 1]} : vector<8x28xf32> to vector<8x1xf32>
    %509 = vector.extract_strided_slice %489 {offsets = [0, 20], sizes = [8, 1], strides = [1, 1]} : vector<8x28xf32> to vector<8x1xf32>
    %510 = vector.extract_strided_slice %489 {offsets = [0, 21], sizes = [8, 1], strides = [1, 1]} : vector<8x28xf32> to vector<8x1xf32>
    %511 = vector.extract_strided_slice %489 {offsets = [0, 22], sizes = [8, 1], strides = [1, 1]} : vector<8x28xf32> to vector<8x1xf32>
    %512 = vector.extract_strided_slice %489 {offsets = [0, 23], sizes = [8, 1], strides = [1, 1]} : vector<8x28xf32> to vector<8x1xf32>
    %513 = vector.extract_strided_slice %489 {offsets = [0, 24], sizes = [8, 1], strides = [1, 1]} : vector<8x28xf32> to vector<8x1xf32>
    %514 = vector.extract_strided_slice %489 {offsets = [0, 25], sizes = [8, 1], strides = [1, 1]} : vector<8x28xf32> to vector<8x1xf32>
    %515 = vector.extract_strided_slice %489 {offsets = [0, 26], sizes = [8, 1], strides = [1, 1]} : vector<8x28xf32> to vector<8x1xf32>
    %516 = vector.extract_strided_slice %489 {offsets = [0, 27], sizes = [8, 1], strides = [1, 1]} : vector<8x28xf32> to vector<8x1xf32>
    %517 = vector.extract_strided_slice %195 {offsets = [0, 2], sizes = [8, 1], strides = [1, 1]} : vector<8x6xf32> to vector<8x1xf32>
    %518 = vector.extract_strided_slice %197 {offsets = [0, 2], sizes = [8, 1], strides = [1, 1]} : vector<8x6xf32> to vector<8x1xf32>
    %519 = arith.mulf %508, %479 : vector<8x1xf32>
    %520 = arith.subf %507, %519 : vector<8x1xf32>
    %521 = arith.mulf %509, %484 : vector<8x1xf32>
    %522 = arith.subf %520, %521 : vector<8x1xf32>
    %523 = arith.addf %485, %486 : vector<8x1xf32>
    %cst_80 = arith.constant 2.000000e+00 : f32
    %524 = vector.broadcast %cst_80 : f32 to vector<8x1xf32>
    %525 = arith.divf %497, %524 : vector<8x1xf32>
    %526 = arith.subf %498, %525 : vector<8x1xf32>
    %527 = arith.mulf %502, %504 : vector<8x1xf32>
    %528 = arith.subf %523, %527 : vector<8x1xf32>
    %529 = arith.mulf %500, %528 : vector<8x1xf32>
    %530 = math.tanh %529 : vector<8x1xf32>
    %531 = arith.mulf %503, %504 : vector<8x1xf32>
    %532 = arith.subf %523, %531 : vector<8x1xf32>
    %533 = arith.mulf %501, %532 : vector<8x1xf32>
    %534 = math.tanh %533 : vector<8x1xf32>
    %535 = arith.subf %530, %534 : vector<8x1xf32>
    %cst_81 = arith.constant 2.000000e+00 : f32
    %536 = vector.broadcast %cst_81 : f32 to vector<8x1xf32>
    %537 = arith.addf %535, %536 : vector<8x1xf32>
    %538 = arith.mulf %526, %537 : vector<8x1xf32>
    %539 = arith.addf %497, %538 : vector<8x1xf32>
    %540 = arith.mulf %506, %499 : vector<8x1xf32>
    %541 = arith.mulf %540, %487 : vector<8x1xf32>
    %542 = arith.divf %541, %505 : vector<8x1xf32>
    %543 = arith.mulf %513, %483 : vector<8x1xf32>
    %544 = arith.mulf %543, %515 : vector<8x1xf32>
    %545 = arith.addf %512, %544 : vector<8x1xf32>
    %546 = arith.mulf %545, %480 : vector<8x1xf32>
    %547 = math.absf %480 : vector<8x1xf32>
    %548 = arith.addf %514, %547 : vector<8x1xf32>
    %549 = arith.divf %546, %548 : vector<8x1xf32>
    %cst_82 = arith.constant 0.000000e+00 : f32
    %550 = vector.broadcast %cst_82 : f32 to vector<8x1xf32>
    %551 = arith.subf %550, %496 : vector<8x1xf32>
    %552 = arith.mulf %551, %485 : vector<8x1xf32>
    %553 = arith.mulf %504, %518 : vector<8x1xf32>
    %554 = arith.addf %552, %553 : vector<8x1xf32>
    %cst_83 = arith.constant 0.000000e+00 : f32
    %555 = vector.broadcast %cst_83 : f32 to vector<8x1xf32>
    %556 = arith.subf %555, %539 : vector<8x1xf32>
    %557 = arith.mulf %556, %486 : vector<8x1xf32>
    %558 = arith.mulf %496, %485 : vector<8x1xf32>
    %559 = arith.addf %557, %558 : vector<8x1xf32>
    %cst_84 = arith.constant 0.000000e+00 : f32
    %560 = vector.broadcast %cst_84 : f32 to vector<8x1xf32>
    %561 = arith.subf %560, %499 : vector<8x1xf32>
    %562 = arith.mulf %561, %487 : vector<8x1xf32>
    %563 = arith.mulf %539, %486 : vector<8x1xf32>
    %564 = arith.addf %562, %563 : vector<8x1xf32>
    %565 = arith.addf %493, %495 : vector<8x1xf32>
    %cst_85 = arith.constant 0.000000e+00 : f32
    %566 = vector.broadcast %cst_85 : f32 to vector<8x1xf32>
    %567 = arith.subf %566, %565 : vector<8x1xf32>
    %568 = arith.mulf %567, %481 : vector<8x1xf32>
    %569 = arith.mulf %492, %482 : vector<8x1xf32>
    %570 = arith.addf %568, %569 : vector<8x1xf32>
    %571 = arith.addf %570, %517 : vector<8x1xf32>
    %572 = arith.addf %492, %494 : vector<8x1xf32>
    %cst_86 = arith.constant 0.000000e+00 : f32
    %573 = vector.broadcast %cst_86 : f32 to vector<8x1xf32>
    %574 = arith.subf %573, %572 : vector<8x1xf32>
    %575 = arith.mulf %574, %482 : vector<8x1xf32>
    %576 = arith.mulf %493, %481 : vector<8x1xf32>
    %577 = arith.addf %575, %576 : vector<8x1xf32>
    %cst_87 = arith.constant 0.000000e+00 : f32
    %578 = vector.broadcast %cst_87 : f32 to vector<8x1xf32>
    %579 = arith.subf %578, %510 : vector<8x1xf32>
    %580 = arith.subf %484, %481 : vector<8x1xf32>
    %581 = arith.mulf %579, %580 : vector<8x1xf32>
    %cst_88 = arith.constant 0.000000e+00 : f32
    %582 = vector.broadcast %cst_88 : f32 to vector<8x1xf32>
    %583 = arith.subf %582, %516 : vector<8x1xf32>
    %584 = arith.mulf %583, %483 : vector<8x1xf32>
    %585 = arith.mulf %516, %481 : vector<8x1xf32>
    %586 = arith.addf %584, %585 : vector<8x1xf32>
    %587 = arith.addf %522, %542 : vector<8x1xf32>
    %588 = arith.subf %587, %511 : vector<8x1xf32>
    %589 = arith.mulf %490, %479 : vector<8x1xf32>
    %590 = arith.subf %588, %589 : vector<8x1xf32>
    %591 = arith.mulf %491, %480 : vector<8x1xf32>
    %592 = arith.addf %590, %591 : vector<8x1xf32>
    %cst_89 = arith.constant 0.000000e+00 : f32
    %593 = vector.broadcast %cst_89 : f32 to vector<8x1xf32>
    %594 = arith.subf %593, %549 : vector<8x1xf32>
    %595 = arith.mulf %490, %479 : vector<8x1xf32>
    %596 = arith.addf %594, %595 : vector<8x1xf32>
    %597 = arith.mulf %491, %480 : vector<8x1xf32>
    %598 = arith.subf %596, %597 : vector<8x1xf32>
    %599 = arith.addf %479, %592 : vector<8x1xf32>
    %600 = arith.addf %480, %598 : vector<8x1xf32>
    %601 = arith.addf %481, %571 : vector<8x1xf32>
    %602 = arith.addf %482, %577 : vector<8x1xf32>
    %603 = arith.addf %483, %586 : vector<8x1xf32>
    %604 = arith.addf %484, %581 : vector<8x1xf32>
    %605 = arith.addf %485, %554 : vector<8x1xf32>
    %606 = arith.addf %486, %559 : vector<8x1xf32>
    %607 = arith.addf %487, %564 : vector<8x1xf32>
    %608 = vector.extract_strided_slice %247 {offsets = [3, 0, 0], sizes = [1, 8, 28], strides = [1, 1, 1]} : vector<6x8x28xf32> to vector<1x8x28xf32>
    %609 = vector.shape_cast %608 : vector<1x8x28xf32> to vector<8x28xf32>
    %610 = vector.extract_strided_slice %609 {offsets = [0, 0], sizes = [8, 1], strides = [1, 1]} : vector<8x28xf32> to vector<8x1xf32>
    %611 = vector.extract_strided_slice %609 {offsets = [0, 1], sizes = [8, 1], strides = [1, 1]} : vector<8x28xf32> to vector<8x1xf32>
    %612 = vector.extract_strided_slice %609 {offsets = [0, 2], sizes = [8, 1], strides = [1, 1]} : vector<8x28xf32> to vector<8x1xf32>
    %613 = vector.extract_strided_slice %609 {offsets = [0, 3], sizes = [8, 1], strides = [1, 1]} : vector<8x28xf32> to vector<8x1xf32>
    %614 = vector.extract_strided_slice %609 {offsets = [0, 5], sizes = [8, 1], strides = [1, 1]} : vector<8x28xf32> to vector<8x1xf32>
    %615 = vector.extract_strided_slice %609 {offsets = [0, 6], sizes = [8, 1], strides = [1, 1]} : vector<8x28xf32> to vector<8x1xf32>
    %616 = vector.extract_strided_slice %609 {offsets = [0, 8], sizes = [8, 1], strides = [1, 1]} : vector<8x28xf32> to vector<8x1xf32>
    %617 = vector.extract_strided_slice %609 {offsets = [0, 9], sizes = [8, 1], strides = [1, 1]} : vector<8x28xf32> to vector<8x1xf32>
    %618 = vector.extract_strided_slice %609 {offsets = [0, 10], sizes = [8, 1], strides = [1, 1]} : vector<8x28xf32> to vector<8x1xf32>
    %619 = vector.extract_strided_slice %609 {offsets = [0, 11], sizes = [8, 1], strides = [1, 1]} : vector<8x28xf32> to vector<8x1xf32>
    %620 = vector.extract_strided_slice %609 {offsets = [0, 12], sizes = [8, 1], strides = [1, 1]} : vector<8x28xf32> to vector<8x1xf32>
    %621 = vector.extract_strided_slice %609 {offsets = [0, 13], sizes = [8, 1], strides = [1, 1]} : vector<8x28xf32> to vector<8x1xf32>
    %622 = vector.extract_strided_slice %609 {offsets = [0, 14], sizes = [8, 1], strides = [1, 1]} : vector<8x28xf32> to vector<8x1xf32>
    %623 = vector.extract_strided_slice %609 {offsets = [0, 15], sizes = [8, 1], strides = [1, 1]} : vector<8x28xf32> to vector<8x1xf32>
    %624 = vector.extract_strided_slice %609 {offsets = [0, 16], sizes = [8, 1], strides = [1, 1]} : vector<8x28xf32> to vector<8x1xf32>
    %625 = vector.extract_strided_slice %609 {offsets = [0, 17], sizes = [8, 1], strides = [1, 1]} : vector<8x28xf32> to vector<8x1xf32>
    %626 = vector.extract_strided_slice %609 {offsets = [0, 18], sizes = [8, 1], strides = [1, 1]} : vector<8x28xf32> to vector<8x1xf32>
    %627 = vector.extract_strided_slice %609 {offsets = [0, 19], sizes = [8, 1], strides = [1, 1]} : vector<8x28xf32> to vector<8x1xf32>
    %628 = vector.extract_strided_slice %609 {offsets = [0, 20], sizes = [8, 1], strides = [1, 1]} : vector<8x28xf32> to vector<8x1xf32>
    %629 = vector.extract_strided_slice %609 {offsets = [0, 21], sizes = [8, 1], strides = [1, 1]} : vector<8x28xf32> to vector<8x1xf32>
    %630 = vector.extract_strided_slice %609 {offsets = [0, 22], sizes = [8, 1], strides = [1, 1]} : vector<8x28xf32> to vector<8x1xf32>
    %631 = vector.extract_strided_slice %609 {offsets = [0, 23], sizes = [8, 1], strides = [1, 1]} : vector<8x28xf32> to vector<8x1xf32>
    %632 = vector.extract_strided_slice %609 {offsets = [0, 24], sizes = [8, 1], strides = [1, 1]} : vector<8x28xf32> to vector<8x1xf32>
    %633 = vector.extract_strided_slice %609 {offsets = [0, 25], sizes = [8, 1], strides = [1, 1]} : vector<8x28xf32> to vector<8x1xf32>
    %634 = vector.extract_strided_slice %609 {offsets = [0, 26], sizes = [8, 1], strides = [1, 1]} : vector<8x28xf32> to vector<8x1xf32>
    %635 = vector.extract_strided_slice %609 {offsets = [0, 27], sizes = [8, 1], strides = [1, 1]} : vector<8x28xf32> to vector<8x1xf32>
    %636 = vector.extract_strided_slice %195 {offsets = [0, 3], sizes = [8, 1], strides = [1, 1]} : vector<8x6xf32> to vector<8x1xf32>
    %637 = vector.extract_strided_slice %197 {offsets = [0, 3], sizes = [8, 1], strides = [1, 1]} : vector<8x6xf32> to vector<8x1xf32>
    %638 = arith.mulf %627, %599 : vector<8x1xf32>
    %639 = arith.subf %626, %638 : vector<8x1xf32>
    %640 = arith.mulf %628, %604 : vector<8x1xf32>
    %641 = arith.subf %639, %640 : vector<8x1xf32>
    %642 = arith.addf %605, %606 : vector<8x1xf32>
    %cst_90 = arith.constant 2.000000e+00 : f32
    %643 = vector.broadcast %cst_90 : f32 to vector<8x1xf32>
    %644 = arith.divf %616, %643 : vector<8x1xf32>
    %645 = arith.subf %617, %644 : vector<8x1xf32>
    %646 = arith.mulf %621, %623 : vector<8x1xf32>
    %647 = arith.subf %642, %646 : vector<8x1xf32>
    %648 = arith.mulf %619, %647 : vector<8x1xf32>
    %649 = math.tanh %648 : vector<8x1xf32>
    %650 = arith.mulf %622, %623 : vector<8x1xf32>
    %651 = arith.subf %642, %650 : vector<8x1xf32>
    %652 = arith.mulf %620, %651 : vector<8x1xf32>
    %653 = math.tanh %652 : vector<8x1xf32>
    %654 = arith.subf %649, %653 : vector<8x1xf32>
    %cst_91 = arith.constant 2.000000e+00 : f32
    %655 = vector.broadcast %cst_91 : f32 to vector<8x1xf32>
    %656 = arith.addf %654, %655 : vector<8x1xf32>
    %657 = arith.mulf %645, %656 : vector<8x1xf32>
    %658 = arith.addf %616, %657 : vector<8x1xf32>
    %659 = arith.mulf %625, %618 : vector<8x1xf32>
    %660 = arith.mulf %659, %607 : vector<8x1xf32>
    %661 = arith.divf %660, %624 : vector<8x1xf32>
    %662 = arith.mulf %632, %603 : vector<8x1xf32>
    %663 = arith.mulf %662, %634 : vector<8x1xf32>
    %664 = arith.addf %631, %663 : vector<8x1xf32>
    %665 = arith.mulf %664, %600 : vector<8x1xf32>
    %666 = math.absf %600 : vector<8x1xf32>
    %667 = arith.addf %633, %666 : vector<8x1xf32>
    %668 = arith.divf %665, %667 : vector<8x1xf32>
    %cst_92 = arith.constant 0.000000e+00 : f32
    %669 = vector.broadcast %cst_92 : f32 to vector<8x1xf32>
    %670 = arith.subf %669, %615 : vector<8x1xf32>
    %671 = arith.mulf %670, %605 : vector<8x1xf32>
    %672 = arith.mulf %623, %637 : vector<8x1xf32>
    %673 = arith.addf %671, %672 : vector<8x1xf32>
    %cst_93 = arith.constant 0.000000e+00 : f32
    %674 = vector.broadcast %cst_93 : f32 to vector<8x1xf32>
    %675 = arith.subf %674, %658 : vector<8x1xf32>
    %676 = arith.mulf %675, %606 : vector<8x1xf32>
    %677 = arith.mulf %615, %605 : vector<8x1xf32>
    %678 = arith.addf %676, %677 : vector<8x1xf32>
    %cst_94 = arith.constant 0.000000e+00 : f32
    %679 = vector.broadcast %cst_94 : f32 to vector<8x1xf32>
    %680 = arith.subf %679, %618 : vector<8x1xf32>
    %681 = arith.mulf %680, %607 : vector<8x1xf32>
    %682 = arith.mulf %658, %606 : vector<8x1xf32>
    %683 = arith.addf %681, %682 : vector<8x1xf32>
    %684 = arith.addf %613, %614 : vector<8x1xf32>
    %cst_95 = arith.constant 0.000000e+00 : f32
    %685 = vector.broadcast %cst_95 : f32 to vector<8x1xf32>
    %686 = arith.subf %685, %684 : vector<8x1xf32>
    %687 = arith.mulf %686, %601 : vector<8x1xf32>
    %688 = arith.mulf %612, %602 : vector<8x1xf32>
    %689 = arith.addf %687, %688 : vector<8x1xf32>
    %690 = arith.addf %689, %636 : vector<8x1xf32>
    %cst_96 = arith.constant 0.000000e+00 : f32
    %691 = vector.broadcast %cst_96 : f32 to vector<8x1xf32>
    %692 = arith.subf %691, %629 : vector<8x1xf32>
    %693 = arith.subf %604, %601 : vector<8x1xf32>
    %694 = arith.mulf %692, %693 : vector<8x1xf32>
    %cst_97 = arith.constant 0.000000e+00 : f32
    %695 = vector.broadcast %cst_97 : f32 to vector<8x1xf32>
    %696 = arith.subf %695, %635 : vector<8x1xf32>
    %697 = arith.mulf %696, %603 : vector<8x1xf32>
    %698 = arith.mulf %635, %601 : vector<8x1xf32>
    %699 = arith.addf %697, %698 : vector<8x1xf32>
    %700 = arith.addf %641, %661 : vector<8x1xf32>
    %701 = arith.subf %700, %630 : vector<8x1xf32>
    %702 = arith.mulf %610, %599 : vector<8x1xf32>
    %703 = arith.subf %701, %702 : vector<8x1xf32>
    %704 = arith.mulf %611, %600 : vector<8x1xf32>
    %705 = arith.addf %703, %704 : vector<8x1xf32>
    %cst_98 = arith.constant 0.000000e+00 : f32
    %706 = vector.broadcast %cst_98 : f32 to vector<8x1xf32>
    %707 = arith.subf %706, %668 : vector<8x1xf32>
    %708 = arith.mulf %610, %599 : vector<8x1xf32>
    %709 = arith.addf %707, %708 : vector<8x1xf32>
    %710 = arith.mulf %611, %600 : vector<8x1xf32>
    %711 = arith.subf %709, %710 : vector<8x1xf32>
    %712 = arith.addf %599, %705 : vector<8x1xf32>
    %713 = arith.addf %600, %711 : vector<8x1xf32>
    %714 = arith.addf %601, %690 : vector<8x1xf32>
    %715 = arith.addf %603, %699 : vector<8x1xf32>
    %716 = arith.addf %604, %694 : vector<8x1xf32>
    %717 = arith.addf %605, %673 : vector<8x1xf32>
    %718 = arith.addf %606, %678 : vector<8x1xf32>
    %719 = arith.addf %607, %683 : vector<8x1xf32>
    %720 = vector.extract_strided_slice %247 {offsets = [4, 0, 0], sizes = [1, 8, 28], strides = [1, 1, 1]} : vector<6x8x28xf32> to vector<1x8x28xf32>
    %721 = vector.shape_cast %720 : vector<1x8x28xf32> to vector<8x28xf32>
    %722 = vector.extract_strided_slice %721 {offsets = [0, 0], sizes = [8, 1], strides = [1, 1]} : vector<8x28xf32> to vector<8x1xf32>
    %723 = vector.extract_strided_slice %721 {offsets = [0, 1], sizes = [8, 1], strides = [1, 1]} : vector<8x28xf32> to vector<8x1xf32>
    %724 = vector.extract_strided_slice %721 {offsets = [0, 8], sizes = [8, 1], strides = [1, 1]} : vector<8x28xf32> to vector<8x1xf32>
    %725 = vector.extract_strided_slice %721 {offsets = [0, 9], sizes = [8, 1], strides = [1, 1]} : vector<8x28xf32> to vector<8x1xf32>
    %726 = vector.extract_strided_slice %721 {offsets = [0, 10], sizes = [8, 1], strides = [1, 1]} : vector<8x28xf32> to vector<8x1xf32>
    %727 = vector.extract_strided_slice %721 {offsets = [0, 11], sizes = [8, 1], strides = [1, 1]} : vector<8x28xf32> to vector<8x1xf32>
    %728 = vector.extract_strided_slice %721 {offsets = [0, 12], sizes = [8, 1], strides = [1, 1]} : vector<8x28xf32> to vector<8x1xf32>
    %729 = vector.extract_strided_slice %721 {offsets = [0, 13], sizes = [8, 1], strides = [1, 1]} : vector<8x28xf32> to vector<8x1xf32>
    %730 = vector.extract_strided_slice %721 {offsets = [0, 14], sizes = [8, 1], strides = [1, 1]} : vector<8x28xf32> to vector<8x1xf32>
    %731 = vector.extract_strided_slice %721 {offsets = [0, 15], sizes = [8, 1], strides = [1, 1]} : vector<8x28xf32> to vector<8x1xf32>
    %732 = vector.extract_strided_slice %721 {offsets = [0, 16], sizes = [8, 1], strides = [1, 1]} : vector<8x28xf32> to vector<8x1xf32>
    %733 = vector.extract_strided_slice %721 {offsets = [0, 17], sizes = [8, 1], strides = [1, 1]} : vector<8x28xf32> to vector<8x1xf32>
    %734 = vector.extract_strided_slice %721 {offsets = [0, 18], sizes = [8, 1], strides = [1, 1]} : vector<8x28xf32> to vector<8x1xf32>
    %735 = vector.extract_strided_slice %721 {offsets = [0, 19], sizes = [8, 1], strides = [1, 1]} : vector<8x28xf32> to vector<8x1xf32>
    %736 = vector.extract_strided_slice %721 {offsets = [0, 20], sizes = [8, 1], strides = [1, 1]} : vector<8x28xf32> to vector<8x1xf32>
    %737 = vector.extract_strided_slice %721 {offsets = [0, 21], sizes = [8, 1], strides = [1, 1]} : vector<8x28xf32> to vector<8x1xf32>
    %738 = vector.extract_strided_slice %721 {offsets = [0, 22], sizes = [8, 1], strides = [1, 1]} : vector<8x28xf32> to vector<8x1xf32>
    %739 = vector.extract_strided_slice %721 {offsets = [0, 23], sizes = [8, 1], strides = [1, 1]} : vector<8x28xf32> to vector<8x1xf32>
    %740 = vector.extract_strided_slice %721 {offsets = [0, 24], sizes = [8, 1], strides = [1, 1]} : vector<8x28xf32> to vector<8x1xf32>
    %741 = vector.extract_strided_slice %721 {offsets = [0, 25], sizes = [8, 1], strides = [1, 1]} : vector<8x28xf32> to vector<8x1xf32>
    %742 = vector.extract_strided_slice %721 {offsets = [0, 26], sizes = [8, 1], strides = [1, 1]} : vector<8x28xf32> to vector<8x1xf32>
    %743 = arith.mulf %735, %712 : vector<8x1xf32>
    %744 = arith.subf %734, %743 : vector<8x1xf32>
    %745 = arith.mulf %736, %716 : vector<8x1xf32>
    %746 = arith.subf %744, %745 : vector<8x1xf32>
    %747 = arith.addf %717, %718 : vector<8x1xf32>
    %cst_99 = arith.constant 2.000000e+00 : f32
    %748 = vector.broadcast %cst_99 : f32 to vector<8x1xf32>
    %749 = arith.divf %724, %748 : vector<8x1xf32>
    %750 = arith.subf %725, %749 : vector<8x1xf32>
    %751 = arith.mulf %729, %731 : vector<8x1xf32>
    %752 = arith.subf %747, %751 : vector<8x1xf32>
    %753 = arith.mulf %727, %752 : vector<8x1xf32>
    %754 = math.tanh %753 : vector<8x1xf32>
    %755 = arith.mulf %730, %731 : vector<8x1xf32>
    %756 = arith.subf %747, %755 : vector<8x1xf32>
    %757 = arith.mulf %728, %756 : vector<8x1xf32>
    %758 = math.tanh %757 : vector<8x1xf32>
    %759 = arith.subf %754, %758 : vector<8x1xf32>
    %cst_100 = arith.constant 2.000000e+00 : f32
    %760 = vector.broadcast %cst_100 : f32 to vector<8x1xf32>
    %761 = arith.addf %759, %760 : vector<8x1xf32>
    %762 = arith.mulf %750, %761 : vector<8x1xf32>
    %763 = arith.addf %724, %762 : vector<8x1xf32>
    %764 = arith.mulf %733, %726 : vector<8x1xf32>
    %765 = arith.mulf %764, %719 : vector<8x1xf32>
    %766 = arith.divf %765, %732 : vector<8x1xf32>
    %767 = arith.mulf %740, %715 : vector<8x1xf32>
    %768 = arith.mulf %767, %742 : vector<8x1xf32>
    %769 = arith.addf %739, %768 : vector<8x1xf32>
    %770 = arith.mulf %769, %713 : vector<8x1xf32>
    %771 = math.absf %713 : vector<8x1xf32>
    %772 = arith.addf %741, %771 : vector<8x1xf32>
    %773 = arith.divf %770, %772 : vector<8x1xf32>
    %cst_101 = arith.constant 0.000000e+00 : f32
    %774 = vector.broadcast %cst_101 : f32 to vector<8x1xf32>
    %775 = arith.subf %774, %726 : vector<8x1xf32>
    %776 = arith.mulf %775, %719 : vector<8x1xf32>
    %777 = arith.mulf %763, %718 : vector<8x1xf32>
    %778 = arith.addf %776, %777 : vector<8x1xf32>
    %cst_102 = arith.constant 0.000000e+00 : f32
    %779 = vector.broadcast %cst_102 : f32 to vector<8x1xf32>
    %780 = arith.subf %779, %737 : vector<8x1xf32>
    %781 = arith.subf %716, %714 : vector<8x1xf32>
    %782 = arith.mulf %780, %781 : vector<8x1xf32>
    %783 = arith.addf %746, %766 : vector<8x1xf32>
    %784 = arith.subf %783, %738 : vector<8x1xf32>
    %785 = arith.mulf %722, %712 : vector<8x1xf32>
    %786 = arith.subf %784, %785 : vector<8x1xf32>
    %787 = arith.mulf %723, %713 : vector<8x1xf32>
    %788 = arith.addf %786, %787 : vector<8x1xf32>
    %cst_103 = arith.constant 0.000000e+00 : f32
    %789 = vector.broadcast %cst_103 : f32 to vector<8x1xf32>
    %790 = arith.subf %789, %773 : vector<8x1xf32>
    %791 = arith.mulf %722, %712 : vector<8x1xf32>
    %792 = arith.addf %790, %791 : vector<8x1xf32>
    %793 = arith.mulf %723, %713 : vector<8x1xf32>
    %794 = arith.subf %792, %793 : vector<8x1xf32>
    %795 = arith.addf %712, %788 : vector<8x1xf32>
    %796 = arith.addf %713, %794 : vector<8x1xf32>
    %797 = arith.addf %716, %782 : vector<8x1xf32>
    %798 = arith.addf %719, %778 : vector<8x1xf32>
    %799 = vector.extract_strided_slice %247 {offsets = [5, 0, 0], sizes = [1, 8, 28], strides = [1, 1, 1]} : vector<6x8x28xf32> to vector<1x8x28xf32>
    %800 = vector.shape_cast %799 : vector<1x8x28xf32> to vector<8x28xf32>
    %801 = vector.extract_strided_slice %800 {offsets = [0, 0], sizes = [8, 1], strides = [1, 1]} : vector<8x28xf32> to vector<8x1xf32>
    %802 = vector.extract_strided_slice %800 {offsets = [0, 1], sizes = [8, 1], strides = [1, 1]} : vector<8x28xf32> to vector<8x1xf32>
    %803 = vector.extract_strided_slice %800 {offsets = [0, 10], sizes = [8, 1], strides = [1, 1]} : vector<8x28xf32> to vector<8x1xf32>
    %804 = vector.extract_strided_slice %800 {offsets = [0, 16], sizes = [8, 1], strides = [1, 1]} : vector<8x28xf32> to vector<8x1xf32>
    %805 = vector.extract_strided_slice %800 {offsets = [0, 17], sizes = [8, 1], strides = [1, 1]} : vector<8x28xf32> to vector<8x1xf32>
    %806 = vector.extract_strided_slice %800 {offsets = [0, 18], sizes = [8, 1], strides = [1, 1]} : vector<8x28xf32> to vector<8x1xf32>
    %807 = vector.extract_strided_slice %800 {offsets = [0, 19], sizes = [8, 1], strides = [1, 1]} : vector<8x28xf32> to vector<8x1xf32>
    %808 = vector.extract_strided_slice %800 {offsets = [0, 20], sizes = [8, 1], strides = [1, 1]} : vector<8x28xf32> to vector<8x1xf32>
    %809 = vector.extract_strided_slice %800 {offsets = [0, 22], sizes = [8, 1], strides = [1, 1]} : vector<8x28xf32> to vector<8x1xf32>
    %810 = arith.mulf %807, %795 : vector<8x1xf32>
    %811 = arith.subf %806, %810 : vector<8x1xf32>
    %812 = arith.mulf %808, %797 : vector<8x1xf32>
    %813 = arith.subf %811, %812 : vector<8x1xf32>
    %814 = arith.mulf %805, %803 : vector<8x1xf32>
    %815 = arith.mulf %814, %798 : vector<8x1xf32>
    %816 = arith.divf %815, %804 : vector<8x1xf32>
    %817 = arith.addf %813, %816 : vector<8x1xf32>
    %818 = arith.subf %817, %809 : vector<8x1xf32>
    %819 = arith.mulf %801, %795 : vector<8x1xf32>
    %820 = arith.subf %818, %819 : vector<8x1xf32>
    %821 = arith.mulf %802, %796 : vector<8x1xf32>
    %822 = arith.addf %820, %821 : vector<8x1xf32>
    %823 = arith.addf %795, %822 : vector<8x1xf32>
    %824 = tpu.concatenate %359, %479, %599, %712, %795, %823 in 1 : vector<8x1xf32>, vector<8x1xf32>, vector<8x1xf32>, vector<8x1xf32>, vector<8x1xf32>, vector<8x1xf32> -> vector<8x6xf32>
    %c0_104 = arith.constant 0 : index
    %c0_105 = arith.constant 0 : index
    %825 = vector.load %arg5[%c0_104, %c0_105] : memref<8x6xf32, #tpu.memory_space<vmem>>, vector<8x6xf32>
    tpu.vector_store %arg5[%c0_104, %c0_105], %824 {strides = array<i32>} : memref<8x6xf32, #tpu.memory_space<vmem>>, vector<8x6xf32>,
    return
  }
  func.func @transform_0(%arg0: i32) -> (i32, i32, i32) {
    %c0_i32 = arith.constant 0 : i32
    %c0_i32_0 = arith.constant 0 : i32
    %c0_i32_1 = arith.constant 0 : i32
    return %arg0, %c0_i32, %c0_i32_0 : i32, i32, i32
  }
  func.func @transform_1(%arg0: i32) -> (i32, i32) {
    %c0_i32 = arith.constant 0 : i32
    %c0_i32_0 = arith.constant 0 : i32
    return %arg0, %c0_i32 : i32, i32
  }
  func.func @transform_2(%arg0: i32) -> (i32, i32, i32) {
    %c0_i32 = arith.constant 0 : i32
    %c0_i32_0 = arith.constant 0 : i32
    %c0_i32_1 = arith.constant 0 : i32
    return %arg0, %c0_i32, %c0_i32_0 : i32, i32, i32
  }
  func.func @transform_3(%arg0: i32) -> (i32, i32) {
    %c0_i32 = arith.constant 0 : i32
    %c0_i32_0 = arith.constant 0 : i32
    %c0_i32_1 = arith.constant 0 : i32
    return %c0_i32, %c0_i32_0 : i32, i32
  }
  func.func @transform_4(%arg0: i32) -> (i32, i32) {
    %c0_i32 = arith.constant 0 : i32
    %c0_i32_0 = arith.constant 0 : i32
    return %arg0, %c0_i32 : i32, i32
  }
}

</mosaic_0001>

<llo_original>
// kernel: dtd_lstm_forward.1
$region0: #{dtd_lstm_forward.1}
  #allocation0 [shape = 'u32[]', space=smem, size = 0x4, offset = 0x4, fixed_abs, tag = 'smem constant byte address 0x4 - core index']
  #allocation1 [shape = 'u32[144,128]{1,0:T(1,128)}', space=vmem, size = 0x12000, scoped, tag = 'internal scratch']
  %s0 = inlined_call_operand.vmem [shape: f32[8,8,5], index: 0, kind: input, shape index: {}]
  %s1 = inlined_call_operand.vmem [shape: f32[8,1], index: 1, kind: input, shape index: {}]
  %s2 = inlined_call_operand.vmem [shape: f32[8,6,4], index: 2, kind: input, shape index: {}]
  %s3 = inlined_call_operand.vmem [shape: f32[168,32], index: 3, kind: input, shape index: {}]
  %s4 = inlined_call_operand.vmem [shape: f32[8,6], index: 4, kind: output, shape index: {}]
  %s5 = sld [smem:[#allocation0]]
  $region26: #{dtd_lstm_forward.1} parent=0
    _
  %s7 = ssub.s32 1, %s5
  %s8 = scalar_select 0, %s7, %s5
  // Predicated region
  $region2: #{dtd_lstm_forward.1} parent=0 // pred_check
    _
  $region3: #{dtd_lstm_forward.1} parent=0 // pred_check_branch
    %10 = sbr.rel (0) target = $region5
  $region4: #{dtd_lstm_forward.1} parent=0 // pred_region
    _
  $region5: #{dtd_lstm_forward.1} parent=0 // pred_fallthru
    _
  // Predicated region
  $region6: #{dtd_lstm_forward.1} parent=0 // pred_check
    _
  $region7: #{dtd_lstm_forward.1} parent=0 // pred_check_branch
    %12 = sbr.rel (0) target = $region9
  $region8: #{dtd_lstm_forward.1} parent=0 // pred_region
    _
  $region9: #{dtd_lstm_forward.1} parent=0 // pred_fallthru
    _
  // Predicated region
  $region10: #{dtd_lstm_forward.1} parent=0 // pred_check
    _
  $region11: #{dtd_lstm_forward.1} parent=0 // pred_check_branch
    %14 = sbr.rel (0) target = $region13
  $region12: #{dtd_lstm_forward.1} parent=0 // pred_region
    _
  $region13: #{dtd_lstm_forward.1} parent=0 // pred_fallthru
    _
  // Predicated region
  $region14: #{dtd_lstm_forward.1} parent=0 // pred_check
    _
  $region15: #{dtd_lstm_forward.1} parent=0 // pred_check_branch
    %16 = sbr.rel (0) target = $region17
  $region16: #{dtd_lstm_forward.1} parent=0 // pred_region
    _
  $region17: #{dtd_lstm_forward.1} parent=0 // pred_fallthru
    _
  %v17 = vld [vmem:[%s3] sm:$0x1f]
  %v18 = vld [vmem:[%s3 + $0x8] sm:$0xff]
  %v19 = vld [vmem:[%s3 + $0x10] sm:$0x1]
  %v20 = vld [vmem:[%s0] sm:$0xff]
  %v21 = vld [vmem:[%s0 + $0x8] sm:$0xff]
  %v22 = vld [vmem:[%s0 + $0x10] sm:$0xff]
  %v23 = vld [vmem:[%s0 + $0x18] sm:$0xff]
  %v24 = vld [vmem:[%s0 + $0x20] sm:$0xff]
  %v25 = vld [vmem:[%s0 + $0x28] sm:$0xff]
  %v26 = vld [vmem:[%s0 + $0x30] sm:$0xff]
  %v27 = vld [vmem:[%s0 + $0x38] sm:$0xff]
  %v28 = vlaneseq
  %v29 = vshrl.u32 %v28, 7
  %v30 = vsub.s32 0, %v29
  %v31 = vrot.slane %v19, %v30
  %vm32 = vcmask 39936
  %v34 = vsel %vm32, %v20, 0
  %v37 = vsel %vm32, %v21, 0
  %v40 = vsel %vm32, %v22, 0
  %v43 = vsel %vm32, %v23, 0
  %v46 = vsel %vm32, %v24, 0
  %v49 = vsel %vm32, %v25, 0
  %v52 = vsel %vm32, %v26, 0
  %v55 = vsel %vm32, %v27, 0
  %vm57 = vcmask 1044480
  %v59 = vsel %vm57, %v17, 0
  %61 = vmatprep.subr.mxu0 0.0
  %62 = vmatpush1.msra.mxu0 %v59
  %63 = vmatprep.subr.mxu0 0.0
  %64 = vmatpush1.msra.mxu0 0.0
  %65 = vmatprep.subr.mxu0 0.0
  %66 = vmatpush1.msra.mxu0 0.0
  %67 = vmatprep.subr.mxu0 0.0
  %68 = vmatpush1.msra.mxu0 0.0
  %69 = vmatprep.subr.mxu0 0.0
  %70 = vmatpush1.msra.mxu0 0.0
  %71 = vmatprep.subr.mxu0 0.0
  %72 = vmatpush1.msra.mxu0 0.0
  %73 = vmatprep.subr.mxu0 0.0
  %74 = vmatpush1.msra.mxu0 0.0
  %75 = vmatprep.subr.mxu0 0.0
  %76 = vmatpush1.msra.mxu0 0.0
  %77 = vmatprep.subr.mxu0 0.0
  %78 = vmatpush1.msra.mxu0 0.0
  %79 = vmatprep.subr.mxu0 0.0
  %80 = vmatpush1.msra.mxu0 0.0
  %81 = vmatprep.subr.mxu0 0.0
  %82 = vmatpush1.msra.mxu0 0.0
  %83 = vmatprep.subr.mxu0 0.0
  %84 = vmatpush1.msra.mxu0 0.0
  %85 = vmatprep.subr.mxu0 0.0
  %86 = vmatpush1.msra.mxu0 0.0
  %87 = vmatprep.subr.mxu0 0.0
  %88 = vmatpush1.msra.mxu0 0.0
  %89 = vmatprep.subr.mxu0 0.0
  %90 = vmatpush1.msra.mxu0 0.0
  %91 = vmatprep.subr.mxu0 0.0
  %92 = vmatpush1.msra.mxu0 0.0
  %93 = vmatprep.subr.mxu0 0.0
  %94 = vmatpush1.msra.mxu0 0.0
  %95 = vmatprep.subr.mxu0 0.0
  %96 = vmatpush1.msra.mxu0 0.0
  %97 = vmatprep.subr.mxu0 0.0
  %98 = vmatpush1.msra.mxu0 0.0
  %99 = vmatprep.subr.mxu0 0.0
  %100 = vmatpush1.msra.mxu0 0.0
  %101 = vmatprep.subr.mxu0 0.0
  %102 = vmatpush1.msra.mxu0 0.0
  %103 = vmatprep.subr.mxu0 0.0
  %104 = vmatpush1.msra.mxu0 0.0
  %105 = vmatprep.subr.mxu0 0.0
  %106 = vmatpush1.msra.mxu0 0.0
  %107 = vmatprep.subr.mxu0 0.0
  %108 = vmatpush1.msra.mxu0 0.0
  %109 = vmatprep.subr.mxu0 0.0
  %110 = vmatpush1.msra.mxu0 0.0
  %111 = vmatprep.subr.mxu0 0.0
  %112 = vmatpush1.msra.mxu0 0.0
  %113 = vmatprep.subr.mxu0 0.0
  %114 = vmatpush1.msra.mxu0 0.0
  %115 = vmatprep.subr.mxu0 0.0
  %116 = vmatpush1.msra.mxu0 0.0
  %117 = vmatprep.subr.mxu0 0.0
  %118 = vmatpush1.msra.mxu0 0.0
  %119 = vmatprep.subr.mxu0 0.0
  %120 = vmatpush1.msra.mxu0 0.0
  %121 = vmatprep.subr.mxu0 0.0
  %122 = vmatpush1.msra.mxu0 0.0
  %123 = vmatprep.subr.mxu0 0.0
  %124 = vmatpush1.msra.mxu0 0.0
  %125 = vmatprep.mubr.f32.mxu0 0.0
  %126 = vmatmul.mubr.f32.gmra.mrb[0].mxu0 %v34
  %v127 = vpop.f32.mrb[0].mxu0
  %v128 = vadd.f32 %v31, %v127
  %v129 = vpop.f32.mrb[0].mxu0
  %130 = vmatprep.mubr.f32.mxu0 0.0
  %131 = vmatmul.mubr.f32.gmra.mrb[0].mxu0 %v37
  %v132 = vpop.f32.mrb[0].mxu0
  %v133 = vadd.f32 %v31, %v132
  %v134 = vpop.f32.mrb[0].mxu0
  %135 = vmatprep.mubr.f32.mxu0 0.0
  %136 = vmatmul.mubr.f32.gmra.mrb[0].mxu0 %v40
  %v137 = vpop.f32.mrb[0].mxu0
  %v138 = vadd.f32 %v31, %v137
  %v139 = vpop.f32.mrb[0].mxu0
  %140 = vmatprep.mubr.f32.mxu0 0.0
  %141 = vmatmul.mubr.f32.gmra.mrb[0].mxu0 %v43
  %v142 = vpop.f32.mrb[0].mxu0
  %v143 = vadd.f32 %v31, %v142
  %v144 = vpop.f32.mrb[0].mxu0
  %145 = vmatprep.mubr.f32.mxu0 0.0
  %146 = vmatmul.mubr.f32.gmra.mrb[0].mxu0 %v46
  %v147 = vpop.f32.mrb[0].mxu0
  %v148 = vadd.f32 %v31, %v147
  %v149 = vpop.f32.mrb[0].mxu0
  %150 = vmatprep.mubr.f32.mxu0 0.0
  %151 = vmatmul.mubr.f32.gmra.mrb[0].mxu0 %v49
  %v152 = vpop.f32.mrb[0].mxu0
  %v153 = vadd.f32 %v31, %v152
  %v154 = vpop.f32.mrb[0].mxu0
  %155 = vmatprep.mubr.f32.mxu0 0.0
  %156 = vmatmul.mubr.f32.gmra.mrb[0].mxu0 %v52
  %v157 = vpop.f32.mrb[0].mxu0
  %v158 = vadd.f32 %v31, %v157
  %v159 = vpop.f32.mrb[0].mxu0
  %160 = vmatprep.mubr.f32.mxu0 0.0
  %161 = vmatmul.mubr.f32.gmra.mrb[0].mxu0 %v55
  %v162 = vpop.f32.mrb[0].mxu0
  %v163 = vadd.f32 %v31, %v162
  %v164 = vpop.f32.mrb[0].mxu0
  %165 = vdwg.mxu0
  %vm166 = vcmask 64512
  %v168 = vsel %vm166, 0.0, 0
  %170 = vmatprep.subr.mxu0 0.0
  %171 = vmatpush1.msra.mxu0 %v18
  %172 = vmatprep.subr.mxu0 0.0
  %173 = vmatpush1.msra.mxu0 0.0
  %174 = vmatprep.subr.mxu0 0.0
  %175 = vmatpush1.msra.mxu0 0.0
  %176 = vmatprep.subr.mxu0 0.0
  %177 = vmatpush1.msra.mxu0 0.0
  %178 = vmatprep.subr.mxu0 0.0
  %179 = vmatpush1.msra.mxu0 0.0
  %180 = vmatprep.subr.mxu0 0.0
  %181 = vmatpush1.msra.mxu0 0.0
  %182 = vmatprep.subr.mxu0 0.0
  %183 = vmatpush1.msra.mxu0 0.0
  %184 = vmatprep.subr.mxu0 0.0
  %185 = vmatpush1.msra.mxu0 0.0
  %186 = vmatprep.subr.mxu0 0.0
  %187 = vmatpush1.msra.mxu0 0.0
  %188 = vmatprep.subr.mxu0 0.0
  %189 = vmatpush1.msra.mxu0 0.0
  %190 = vmatprep.subr.mxu0 0.0
  %191 = vmatpush1.msra.mxu0 0.0
  %192 = vmatprep.subr.mxu0 0.0
  %193 = vmatpush1.msra.mxu0 0.0
  %194 = vmatprep.subr.mxu0 0.0
  %195 = vmatpush1.msra.mxu0 0.0
  %196 = vmatprep.subr.mxu0 0.0
  %197 = vmatpush1.msra.mxu0 0.0
  %198 = vmatprep.subr.mxu0 0.0
  %199 = vmatpush1.msra.mxu0 0.0
  %200 = vmatprep.subr.mxu0 0.0
  %201 = vmatpush1.msra.mxu0 0.0
  %202 = vmatprep.subr.mxu0 0.0
  %203 = vmatpush1.msra.mxu0 0.0
  %204 = vmatprep.subr.mxu0 0.0
  %205 = vmatpush1.msra.mxu0 0.0
  %206 = vmatprep.subr.mxu0 0.0
  %207 = vmatpush1.msra.mxu0 0.0
  %208 = vmatprep.subr.mxu0 0.0
  %209 = vmatpush1.msra.mxu0 0.0
  %210 = vmatprep.subr.mxu0 0.0
  %211 = vmatpush1.msra.mxu0 0.0
  %212 = vmatprep.subr.mxu0 0.0
  %213 = vmatpush1.msra.mxu0 0.0
  %214 = vmatprep.subr.mxu0 0.0
  %215 = vmatpush1.msra.mxu0 0.0
  %216 = vmatprep.subr.mxu0 0.0
  %217 = vmatpush1.msra.mxu0 0.0
  %218 = vmatprep.subr.mxu0 0.0
  %219 = vmatpush1.msra.mxu0 0.0
  %220 = vmatprep.subr.mxu0 0.0
  %221 = vmatpush1.msra.mxu0 0.0
  %222 = vmatprep.subr.mxu0 0.0
  %223 = vmatpush1.msra.mxu0 0.0
  %224 = vmatprep.subr.mxu0 0.0
  %225 = vmatpush1.msra.mxu0 0.0
  %226 = vmatprep.subr.mxu0 0.0
  %227 = vmatpush1.msra.mxu0 0.0
  %228 = vmatprep.subr.mxu0 0.0
  %229 = vmatpush1.msra.mxu0 0.0
  %230 = vmatprep.subr.mxu0 0.0
  %231 = vmatpush1.msra.mxu0 0.0
  %232 = vmatprep.subr.mxu0 0.0
  %233 = vmatpush1.msra.mxu0 0.0
  %234 = vmatprep.mubr.f32.mxu0 0.0
  %235 = vmatmul.mubr.f32.gmra.mrb[0].mxu0 %v168
  %v236 = vpop.f32.mrb[0].mxu0
  %v237 = vadd.f32 0.0, %v236
  %v238 = vpop.f32.mrb[0].mxu0
  %239 = vdwg.mxu0
  %v241 = vrot.slane %v237, 1
  %v242 = vrot.slane %v237, 2
  %v243 = vrot.slane %v237, 3
  %v244 = vrot.slane %v237, 4
  %v245 = vrot.slane %v237, 5
  %v246 = vrot.slane %v237, 6
  %v247 = vrot.slane %v237, 7
  %v256 = vadd.f32 %v128, %v237
  %v257 = vadd.f32 %v133, %v241
  %v258 = vadd.f32 %v138, %v242
  %v259 = vadd.f32 %v143, %v243
  %v260 = vadd.f32 %v148, %v244
  %v261 = vadd.f32 %v153, %v245
  %v262 = vadd.f32 %v158, %v246
  %v263 = vadd.f32 %v163, %v247
  %v264 = vxor.u32 %v256, 2147483648
  %v265 = vxor.u32 %v257, 2147483648
  %v266 = vxor.u32 %v258, 2147483648
  %v267 = vxor.u32 %v259, 2147483648
  %v268 = vxor.u32 %v260, 2147483648
  %v269 = vxor.u32 %v261, 2147483648
  %v270 = vxor.u32 %v262, 2147483648
  %v271 = vxor.u32 %v263, 2147483648
  %v272 = vmul.f32 %v264, 1.442695
  %v273 = vpow.pop %v272
  %v274 = vmul.f32 %v265, 1.442695
  %v275 = vpow.pop %v274
  %v276 = vmul.f32 %v266, 1.442695
  %v277 = vpow.pop %v276
  %v278 = vmul.f32 %v267, 1.442695
  %v279 = vpow.pop %v278
  %v280 = vmul.f32 %v268, 1.442695
  %v281 = vpow.pop %v280
  %v282 = vmul.f32 %v269, 1.442695
  %v283 = vpow.pop %v282
  %v284 = vmul.f32 %v270, 1.442695
  %v285 = vpow.pop %v284
  %v286 = vmul.f32 %v271, 1.442695
  %v287 = vpow.pop %v286
  %v288 = vadd.f32 %v273, 1.0
  %v289 = vadd.f32 %v275, 1.0
  %v290 = vadd.f32 %v277, 1.0
  %v291 = vadd.f32 %v279, 1.0
  %v292 = vadd.f32 %v281, 1.0
  %v293 = vadd.f32 %v283, 1.0
  %v294 = vadd.f32 %v285, 1.0
  %v295 = vadd.f32 %v287, 1.0
  %v296 = vrcp.pop %v288
  %v297 = vmul.f32 1.0, %v296
  %v298 = vrcp.pop %v289
  %v299 = vmul.f32 1.0, %v298
  %v300 = vrcp.pop %v290
  %v301 = vmul.f32 1.0, %v300
  %v302 = vrcp.pop %v291
  %v303 = vmul.f32 1.0, %v302
  %v304 = vrcp.pop %v292
  %v305 = vmul.f32 1.0, %v304
  %v306 = vrcp.pop %v293
  %v307 = vmul.f32 1.0, %v306
  %v308 = vrcp.pop %v294
  %v309 = vmul.f32 1.0, %v308
  %v310 = vrcp.pop %v295
  %v311 = vmul.f32 1.0, %v310
  %v312 = vtanh.pop %v256
  %v313 = vtanh.pop %v257
  %v314 = vtanh.pop %v258
  %v315 = vtanh.pop %v259
  %v316 = vtanh.pop %v260
  %v317 = vtanh.pop %v261
  %v318 = vtanh.pop %v262
  %v319 = vtanh.pop %v263
  %v320 = vmul.f32 %v297, 0.0
  %v321 = vmul.f32 %v299, 0.0
  %v322 = vmul.f32 %v301, 0.0
  %v323 = vmul.f32 %v303, 0.0
  %v324 = vmul.f32 %v305, 0.0
  %v325 = vmul.f32 %v307, 0.0
  %v326 = vmul.f32 %v309, 0.0
  %v327 = vmul.f32 %v311, 0.0
  %336 = vrot.lane.b32.xlu0 %v312, 112
  %v337 = vpop.permute.xlu0 %336
  %338 = vrot.lane.b32.xlu0 %v313, 112
  %v339 = vpop.permute.xlu0 %338
  %340 = vrot.lane.b32.xlu0 %v314, 112
  %v341 = vpop.permute.xlu0 %340
  %342 = vrot.lane.b32.xlu0 %v315, 112
  %v343 = vpop.permute.xlu0 %342
  %344 = vrot.lane.b32.xlu0 %v316, 112
  %v345 = vpop.permute.xlu0 %344
  %346 = vrot.lane.b32.xlu0 %v317, 112
  %v347 = vpop.permute.xlu0 %346
  %348 = vrot.lane.b32.xlu0 %v318, 112
  %v349 = vpop.permute.xlu0 %348
  %350 = vrot.lane.b32.xlu0 %v319, 112
  %v351 = vpop.permute.xlu0 %350
  %v360 = vmul.f32 %v297, %v337
  %v361 = vmul.f32 %v299, %v339
  %v362 = vmul.f32 %v301, %v341
  %v363 = vmul.f32 %v303, %v343
  %v364 = vmul.f32 %v305, %v345
  %v365 = vmul.f32 %v307, %v347
  %v366 = vmul.f32 %v309, %v349
  %v367 = vmul.f32 %v311, %v351
  %376 = vrot.lane.b32.xlu0 %v360, 8
  %v377 = vpop.permute.xlu0 %376
  %378 = vrot.lane.b32.xlu0 %v361, 8
  %v379 = vpop.permute.xlu0 %378
  %380 = vrot.lane.b32.xlu0 %v362, 8
  %v381 = vpop.permute.xlu0 %380
  %382 = vrot.lane.b32.xlu0 %v363, 8
  %v383 = vpop.permute.xlu0 %382
  %384 = vrot.lane.b32.xlu0 %v364, 8
  %v385 = vpop.permute.xlu0 %384
  %386 = vrot.lane.b32.xlu0 %v365, 8
  %v387 = vpop.permute.xlu0 %386
  %388 = vrot.lane.b32.xlu0 %v366, 8
  %v389 = vpop.permute.xlu0 %388
  %390 = vrot.lane.b32.xlu0 %v367, 8
  %v391 = vpop.permute.xlu0 %390
  %v400 = vadd.f32 %v320, %v377
  %v401 = vadd.f32 %v321, %v379
  %v402 = vadd.f32 %v322, %v381
  %v403 = vadd.f32 %v323, %v383
  %v404 = vadd.f32 %v324, %v385
  %v405 = vadd.f32 %v325, %v387
  %v406 = vadd.f32 %v326, %v389
  %v407 = vadd.f32 %v327, %v391
  %v408 = vtanh.pop %v400
  %v409 = vtanh.pop %v401
  %v410 = vtanh.pop %v402
  %v411 = vtanh.pop %v403
  %v412 = vtanh.pop %v404
  %v413 = vtanh.pop %v405
  %v414 = vtanh.pop %v406
  %v415 = vtanh.pop %v407
  %424 = vrot.lane.b32.xlu0 %v408, 16
  %v425 = vpop.permute.xlu0 %424
  %426 = vrot.lane.b32.xlu0 %v409, 16
  %v427 = vpop.permute.xlu0 %426
  %428 = vrot.lane.b32.xlu0 %v410, 16
  %v429 = vpop.permute.xlu0 %428
  %430 = vrot.lane.b32.xlu0 %v411, 16
  %v431 = vpop.permute.xlu0 %430
  %432 = vrot.lane.b32.xlu0 %v412, 16
  %v433 = vpop.permute.xlu0 %432
  %434 = vrot.lane.b32.xlu0 %v413, 16
  %v435 = vpop.permute.xlu0 %434
  %436 = vrot.lane.b32.xlu0 %v414, 16
  %v437 = vpop.permute.xlu0 %436
  %438 = vrot.lane.b32.xlu0 %v415, 16
  %v439 = vpop.permute.xlu0 %438
  %v448 = vmul.f32 %v297, %v425
  %v449 = vmul.f32 %v299, %v427
  %v450 = vmul.f32 %v301, %v429
  %v451 = vmul.f32 %v303, %v431
  %v452 = vmul.f32 %v305, %v433
  %v453 = vmul.f32 %v307, %v435
  %v454 = vmul.f32 %v309, %v437
  %v455 = vmul.f32 %v311, %v439
  %v464 = vrot.slane %v449, 7
  %vm465 = vcmask 1041409
  %v466 = vsel %vm465, %v464, %v448
  %v467 = vrot.slane %v450, 6
  %vm468 = vcmask 1042434
  %v469 = vsel %vm468, %v467, %v466
  %v470 = vrot.slane %v451, 5
  %vm471 = vcmask 1043459
  %v472 = vsel %vm471, %v470, %v469
  %v473 = vrot.slane %v452, 4
  %vm474 = vcmask 1044484
  %v475 = vsel %vm474, %v473, %v472
  %v476 = vrot.slane %v453, 3
  %vm477 = vcmask 1045509
  %v478 = vsel %vm477, %v476, %v475
  %v479 = vrot.slane %v454, 2
  %vm480 = vcmask 1046534
  %v481 = vsel %vm480, %v479, %v478
  %v482 = vrot.slane %v455, 1
  %vm483 = vcmask 1047559
  %v484 = vsel %vm483, %v482, %v481
  %485 = vrot.lane.b32.xlu0 %v484, 104
  %v486 = vpop.permute.xlu0 %485
  %v487 = vsel %vm166, %v486, 0
  %489 = vmatprep.subr.mxu0 0.0
  %490 = vmatpush1.msra.mxu0 %v18
  %491 = vmatprep.subr.mxu0 0.0
  %492 = vmatpush1.msra.mxu0 0.0
  %493 = vmatprep.subr.mxu0 0.0
  %494 = vmatpush1.msra.mxu0 0.0
  %495 = vmatprep.subr.mxu0 0.0
  %496 = vmatpush1.msra.mxu0 0.0
  %497 = vmatprep.subr.mxu0 0.0
  %498 = vmatpush1.msra.mxu0 0.0
  %499 = vmatprep.subr.mxu0 0.0
  %500 = vmatpush1.msra.mxu0 0.0
  %501 = vmatprep.subr.mxu0 0.0
  %502 = vmatpush1.msra.mxu0 0.0
  %503 = vmatprep.subr.mxu0 0.0
  %504 = vmatpush1.msra.mxu0 0.0
  %505 = vmatprep.subr.mxu0 0.0
  %506 = vmatpush1.msra.mxu0 0.0
  %507 = vmatprep.subr.mxu0 0.0
  %508 = vmatpush1.msra.mxu0 0.0
  %509 = vmatprep.subr.mxu0 0.0
  %510 = vmatpush1.msra.mxu0 0.0
  %511 = vmatprep.subr.mxu0 0.0
  %512 = vmatpush1.msra.mxu0 0.0
  %513 = vmatprep.subr.mxu0 0.0
  %514 = vmatpush1.msra.mxu0 0.0
  %515 = vmatprep.subr.mxu0 0.0
  %516 = vmatpush1.msra.mxu0 0.0
  %517 = vmatprep.subr.mxu0 0.0
  %518 = vmatpush1.msra.mxu0 0.0
  %519 = vmatprep.subr.mxu0 0.0
  %520 = vmatpush1.msra.mxu0 0.0
  %521 = vmatprep.subr.mxu0 0.0
  %522 = vmatpush1.msra.mxu0 0.0
  %523 = vmatprep.subr.mxu0 0.0
  %524 = vmatpush1.msra.mxu0 0.0
  %525 = vmatprep.subr.mxu0 0.0
  %526 = vmatpush1.msra.mxu0 0.0
  %527 = vmatprep.subr.mxu0 0.0
  %528 = vmatpush1.msra.mxu0 0.0
  %529 = vmatprep.subr.mxu0 0.0
  %530 = vmatpush1.msra.mxu0 0.0
  %531 = vmatprep.subr.mxu0 0.0
  %532 = vmatpush1.msra.mxu0 0.0
  %533 = vmatprep.subr.mxu0 0.0
  %534 = vmatpush1.msra.mxu0 0.0
  %535 = vmatprep.subr.mxu0 0.0
  %536 = vmatpush1.msra.mxu0 0.0
  %537 = vmatprep.subr.mxu0 0.0
  %538 = vmatpush1.msra.mxu0 0.0
  %539 = vmatprep.subr.mxu0 0.0
  %540 = vmatpush1.msra.mxu0 0.0
  %541 = vmatprep.subr.mxu0 0.0
  %542 = vmatpush1.msra.mxu0 0.0
  %543 = vmatprep.subr.mxu0 0.0
  %544 = vmatpush1.msra.mxu0 0.0
  %545 = vmatprep.subr.mxu0 0.0
  %546 = vmatpush1.msra.mxu0 0.0
  %547 = vmatprep.subr.mxu0 0.0
  %548 = vmatpush1.msra.mxu0 0.0
  %549 = vmatprep.subr.mxu0 0.0
  %550 = vmatpush1.msra.mxu0 0.0
  %551 = vmatprep.subr.mxu0 0.0
  %552 = vmatpush1.msra.mxu0 0.0
  %553 = vmatprep.mubr.f32.mxu0 0.0
  %554 = vmatmul.mubr.f32.gmra.mrb[0].mxu0 %v487
  %v555 = vpop.f32.mrb[0].mxu0
  %v556 = vadd.f32 0.0, %v555
  %v557 = vpop.f32.mrb[0].mxu0
  %558 = vdwg.mxu0
  %v560 = vrot.slane %v556, 7
  %v561 = vrot.slane %v556, 1
  %v562 = vrot.slane %v556, 2
  %v563 = vrot.slane %v556, 3
  %v564 = vrot.slane %v556, 4
  %v565 = vrot.slane %v556, 5
  %v566 = vrot.slane %v556, 6
  %v575 = vadd.f32 %v128, %v560
  %v576 = vadd.f32 %v133, %v556
  %v577 = vadd.f32 %v138, %v561
  %v578 = vadd.f32 %v143, %v562
  %v579 = vadd.f32 %v148, %v563
  %v580 = vadd.f32 %v153, %v564
  %v581 = vadd.f32 %v158, %v565
  %v582 = vadd.f32 %v163, %v566
  %v583 = vxor.u32 %v575, 2147483648
  %v584 = vxor.u32 %v576, 2147483648
  %v585 = vxor.u32 %v577, 2147483648
  %v586 = vxor.u32 %v578, 2147483648
  %v587 = vxor.u32 %v579, 2147483648
  %v588 = vxor.u32 %v580, 2147483648
  %v589 = vxor.u32 %v581, 2147483648
  %v590 = vxor.u32 %v582, 2147483648
  %v591 = vmul.f32 %v583, 1.442695
  %v592 = vpow.pop %v591
  %v593 = vmul.f32 %v584, 1.442695
  %v594 = vpow.pop %v593
  %v595 = vmul.f32 %v585, 1.442695
  %v596 = vpow.pop %v595
  %v597 = vmul.f32 %v586, 1.442695
  %v598 = vpow.pop %v597
  %v599 = vmul.f32 %v587, 1.442695
  %v600 = vpow.pop %v599
  %v601 = vmul.f32 %v588, 1.442695
  %v602 = vpow.pop %v601
  %v603 = vmul.f32 %v589, 1.442695
  %v604 = vpow.pop %v603
  %v605 = vmul.f32 %v590, 1.442695
  %v606 = vpow.pop %v605
  %v607 = vadd.f32 %v592, 1.0
  %v608 = vadd.f32 %v594, 1.0
  %v609 = vadd.f32 %v596, 1.0
  %v610 = vadd.f32 %v598, 1.0
  %v611 = vadd.f32 %v600, 1.0
  %v612 = vadd.f32 %v602, 1.0
  %v613 = vadd.f32 %v604, 1.0
  %v614 = vadd.f32 %v606, 1.0
  %v615 = vrcp.pop %v607
  %v616 = vmul.f32 1.0, %v615
  %v617 = vrcp.pop %v608
  %v618 = vmul.f32 1.0, %v617
  %v619 = vrcp.pop %v609
  %v620 = vmul.f32 1.0, %v619
  %v621 = vrcp.pop %v610
  %v622 = vmul.f32 1.0, %v621
  %v623 = vrcp.pop %v611
  %v624 = vmul.f32 1.0, %v623
  %v625 = vrcp.pop %v612
  %v626 = vmul.f32 1.0, %v625
  %v627 = vrcp.pop %v613
  %v628 = vmul.f32 1.0, %v627
  %v629 = vrcp.pop %v614
  %v630 = vmul.f32 1.0, %v629
  %v631 = vtanh.pop %v575
  %v632 = vtanh.pop %v576
  %v633 = vtanh.pop %v577
  %v634 = vtanh.pop %v578
  %v635 = vtanh.pop %v579
  %v636 = vtanh.pop %v580
  %v637 = vtanh.pop %v581
  %v638 = vtanh.pop %v582
  %v647 = vrot.slane %v400, 7
  %v648 = vrot.slane %v401, 7
  %v649 = vrot.slane %v402, 7
  %v650 = vrot.slane %v403, 7
  %v651 = vrot.slane %v404, 7
  %v652 = vrot.slane %v405, 7
  %v653 = vrot.slane %v406, 7
  %v654 = vrot.slane %v407, 7
  %v663 = vmul.f32 %v616, %v647
  %v664 = vmul.f32 %v618, %v648
  %v665 = vmul.f32 %v620, %v649
  %v666 = vmul.f32 %v622, %v650
  %v667 = vmul.f32 %v624, %v651
  %v668 = vmul.f32 %v626, %v652
  %v669 = vmul.f32 %v628, %v653
  %v670 = vmul.f32 %v630, %v654
  %679 = vrot.lane.b32.xlu0 %v631, 112
  %v680 = vpop.permute.xlu0 %679
  %681 = vrot.lane.b32.xlu0 %v632, 112
  %v682 = vpop.permute.xlu0 %681
  %683 = vrot.lane.b32.xlu0 %v633, 112
  %v684 = vpop.permute.xlu0 %683
  %685 = vrot.lane.b32.xlu0 %v634, 112
  %v686 = vpop.permute.xlu0 %685
  %687 = vrot.lane.b32.xlu0 %v635, 112
  %v688 = vpop.permute.xlu0 %687
  %689 = vrot.lane.b32.xlu0 %v636, 112
  %v690 = vpop.permute.xlu0 %689
  %691 = vrot.lane.b32.xlu0 %v637, 112
  %v692 = vpop.permute.xlu0 %691
  %693 = vrot.lane.b32.xlu0 %v638, 112
  %v694 = vpop.permute.xlu0 %693
  %v703 = vmul.f32 %v616, %v680
  %v704 = vmul.f32 %v618, %v682
  %v705 = vmul.f32 %v620, %v684
  %v706 = vmul.f32 %v622, %v686
  %v707 = vmul.f32 %v624, %v688
  %v708 = vmul.f32 %v626, %v690
  %v709 = vmul.f32 %v628, %v692
  %v710 = vmul.f32 %v630, %v694
  %719 = vrot.lane.b32.xlu0 %v703, 8
  %v720 = vpop.permute.xlu0 %719
  %721 = vrot.lane.b32.xlu0 %v704, 8
  %v722 = vpop.permute.xlu0 %721
  %723 = vrot.lane.b32.xlu0 %v705, 8
  %v724 = vpop.permute.xlu0 %723
  %725 = vrot.lane.b32.xlu0 %v706, 8
  %v726 = vpop.permute.xlu0 %725
  %727 = vrot.lane.b32.xlu0 %v707, 8
  %v728 = vpop.permute.xlu0 %727
  %729 = vrot.lane.b32.xlu0 %v708, 8
  %v730 = vpop.permute.xlu0 %729
  %731 = vrot.lane.b32.xlu0 %v709, 8
  %v732 = vpop.permute.xlu0 %731
  %733 = vrot.lane.b32.xlu0 %v710, 8
  %v734 = vpop.permute.xlu0 %733
  %v743 = vadd.f32 %v663, %v720
  %v744 = vadd.f32 %v664, %v722
  %v745 = vadd.f32 %v665, %v724
  %v746 = vadd.f32 %v666, %v726
  %v747 = vadd.f32 %v667, %v728
  %v748 = vadd.f32 %v668, %v730
  %v749 = vadd.f32 %v669, %v732
  %v750 = vadd.f32 %v670, %v734
  %v751 = vtanh.pop %v743
  %v752 = vtanh.pop %v744
  %v753 = vtanh.pop %v745
  %v754 = vtanh.pop %v746
  %v755 = vtanh.pop %v747
  %v756 = vtanh.pop %v748
  %v757 = vtanh.pop %v749
  %v758 = vtanh.pop %v750
  %767 = vrot.lane.b32.xlu0 %v751, 16
  %v768 = vpop.permute.xlu0 %767
  %769 = vrot.lane.b32.xlu0 %v752, 16
  %v770 = vpop.permute.xlu0 %769
  %771 = vrot.lane.b32.xlu0 %v753, 16
  %v772 = vpop.permute.xlu0 %771
  %773 = vrot.lane.b32.xlu0 %v754, 16
  %v774 = vpop.permute.xlu0 %773
  %775 = vrot.lane.b32.xlu0 %v755, 16
  %v776 = vpop.permute.xlu0 %775
  %777 = vrot.lane.b32.xlu0 %v756, 16
  %v778 = vpop.permute.xlu0 %777
  %779 = vrot.lane.b32.xlu0 %v757, 16
  %v780 = vpop.permute.xlu0 %779
  %781 = vrot.lane.b32.xlu0 %v758, 16
  %v782 = vpop.permute.xlu0 %781
  %v791 = vmul.f32 %v616, %v768
  %v792 = vmul.f32 %v618, %v770
  %v793 = vmul.f32 %v620, %v772
  %v794 = vmul.f32 %v622, %v774
  %v795 = vmul.f32 %v624, %v776
  %v796 = vmul.f32 %v626, %v778
  %v797 = vmul.f32 %v628, %v780
  %v798 = vmul.f32 %v630, %v782
  %v807 = vrot.slane %v791, 1
  %v808 = vsel %vm465, %v792, %v807
  %v809 = vrot.slane %v793, 7
  %v810 = vsel %vm468, %v809, %v808
  %v811 = vrot.slane %v794, 6
  %v812 = vsel %vm471, %v811, %v810
  %v813 = vrot.slane %v795, 5
  %v814 = vsel %vm474, %v813, %v812
  %v815 = vrot.slane %v796, 4
  %v816 = vsel %vm477, %v815, %v814
  %v817 = vrot.slane %v797, 3
  %v818 = vsel %vm480, %v817, %v816
  %v819 = vrot.slane %v798, 2
  %v820 = vsel %vm483, %v819, %v818
  %821 = vrot.lane.b32.xlu0 %v820, 104
  %v822 = vpop.permute.xlu0 %821
  %v823 = vsel %vm166, %v822, 0
  %825 = vmatprep.subr.mxu0 0.0
  %826 = vmatpush1.msra.mxu0 %v18
  %827 = vmatprep.subr.mxu0 0.0
  %828 = vmatpush1.msra.mxu0 0.0
  %829 = vmatprep.subr.mxu0 0.0
  %830 = vmatpush1.msra.mxu0 0.0
  %831 = vmatprep.subr.mxu0 0.0
  %832 = vmatpush1.msra.mxu0 0.0
  %833 = vmatprep.subr.mxu0 0.0
  %834 = vmatpush1.msra.mxu0 0.0
  %835 = vmatprep.subr.mxu0 0.0
  %836 = vmatpush1.msra.mxu0 0.0
  %837 = vmatprep.subr.mxu0 0.0
  %838 = vmatpush1.msra.mxu0 0.0
  %839 = vmatprep.subr.mxu0 0.0
  %840 = vmatpush1.msra.mxu0 0.0
  %841 = vmatprep.subr.mxu0 0.0
  %842 = vmatpush1.msra.mxu0 0.0
  %843 = vmatprep.subr.mxu0 0.0
  %844 = vmatpush1.msra.mxu0 0.0
  %845 = vmatprep.subr.mxu0 0.0
  %846 = vmatpush1.msra.mxu0 0.0
  %847 = vmatprep.subr.mxu0 0.0
  %848 = vmatpush1.msra.mxu0 0.0
  %849 = vmatprep.subr.mxu0 0.0
  %850 = vmatpush1.msra.mxu0 0.0
  %851 = vmatprep.subr.mxu0 0.0
  %852 = vmatpush1.msra.mxu0 0.0
  %853 = vmatprep.subr.mxu0 0.0
  %854 = vmatpush1.msra.mxu0 0.0
  %855 = vmatprep.subr.mxu0 0.0
  %856 = vmatpush1.msra.mxu0 0.0
  %857 = vmatprep.subr.mxu0 0.0
  %858 = vmatpush1.msra.mxu0 0.0
  %859 = vmatprep.subr.mxu0 0.0
  %860 = vmatpush1.msra.mxu0 0.0
  %861 = vmatprep.subr.mxu0 0.0
  %862 = vmatpush1.msra.mxu0 0.0
  %863 = vmatprep.subr.mxu0 0.0
  %864 = vmatpush1.msra.mxu0 0.0
  %865 = vmatprep.subr.mxu0 0.0
  %866 = vmatpush1.msra.mxu0 0.0
  %867 = vmatprep.subr.mxu0 0.0
  %868 = vmatpush1.msra.mxu0 0.0
  %869 = vmatprep.subr.mxu0 0.0
  %870 = vmatpush1.msra.mxu0 0.0
  %871 = vmatprep.subr.mxu0 0.0
  %872 = vmatpush1.msra.mxu0 0.0
  %873 = vmatprep.subr.mxu0 0.0
  %874 = vmatpush1.msra.mxu0 0.0
  %875 = vmatprep.subr.mxu0 0.0
  %876 = vmatpush1.msra.mxu0 0.0
  %877 = vmatprep.subr.mxu0 0.0
  %878 = vmatpush1.msra.mxu0 0.0
  %879 = vmatprep.subr.mxu0 0.0
  %880 = vmatpush1.msra.mxu0 0.0
  %881 = vmatprep.subr.mxu0 0.0
  %882 = vmatpush1.msra.mxu0 0.0
  %883 = vmatprep.subr.mxu0 0.0
  %884 = vmatpush1.msra.mxu0 0.0
  %885 = vmatprep.subr.mxu0 0.0
  %886 = vmatpush1.msra.mxu0 0.0
  %887 = vmatprep.subr.mxu0 0.0
  %888 = vmatpush1.msra.mxu0 0.0
  %889 = vmatprep.mubr.f32.mxu0 0.0
  %890 = vmatmul.mubr.f32.gmra.mrb[0].mxu0 %v823
  %v891 = vpop.f32.mrb[0].mxu0
  %v892 = vadd.f32 0.0, %v891
  %v893 = vpop.f32.mrb[0].mxu0
  %894 = vdwg.mxu0
  %v896 = vrot.slane %v892, 6
  %v897 = vrot.slane %v892, 7
  %v898 = vrot.slane %v892, 1
  %v899 = vrot.slane %v892, 2
  %v900 = vrot.slane %v892, 3
  %v901 = vrot.slane %v892, 4
  %v902 = vrot.slane %v892, 5
  %v911 = vadd.f32 %v128, %v896
  %v912 = vadd.f32 %v133, %v897
  %v913 = vadd.f32 %v138, %v892
  %v914 = vadd.f32 %v143, %v898
  %v915 = vadd.f32 %v148, %v899
  %v916 = vadd.f32 %v153, %v900
  %v917 = vadd.f32 %v158, %v901
  %v918 = vadd.f32 %v163, %v902
  %v919 = vxor.u32 %v911, 2147483648
  %v920 = vxor.u32 %v912, 2147483648
  %v921 = vxor.u32 %v913, 2147483648
  %v922 = vxor.u32 %v914, 2147483648
  %v923 = vxor.u32 %v915, 2147483648
  %v924 = vxor.u32 %v916, 2147483648
  %v925 = vxor.u32 %v917, 2147483648
  %v926 = vxor.u32 %v918, 2147483648
  %v927 = vmul.f32 %v919, 1.442695
  %v928 = vpow.pop %v927
  %v929 = vmul.f32 %v920, 1.442695
  %v930 = vpow.pop %v929
  %v931 = vmul.f32 %v921, 1.442695
  %v932 = vpow.pop %v931
  %v933 = vmul.f32 %v922, 1.442695
  %v934 = vpow.pop %v933
  %v935 = vmul.f32 %v923, 1.442695
  %v936 = vpow.pop %v935
  %v937 = vmul.f32 %v924, 1.442695
  %v938 = vpow.pop %v937
  %v939 = vmul.f32 %v925, 1.442695
  %v940 = vpow.pop %v939
  %v941 = vmul.f32 %v926, 1.442695
  %v942 = vpow.pop %v941
  %v943 = vadd.f32 %v928, 1.0
  %v944 = vadd.f32 %v930, 1.0
  %v945 = vadd.f32 %v932, 1.0
  %v946 = vadd.f32 %v934, 1.0
  %v947 = vadd.f32 %v936, 1.0
  %v948 = vadd.f32 %v938, 1.0
  %v949 = vadd.f32 %v940, 1.0
  %v950 = vadd.f32 %v942, 1.0
  %v951 = vrcp.pop %v943
  %v952 = vmul.f32 1.0, %v951
  %v953 = vrcp.pop %v944
  %v954 = vmul.f32 1.0, %v953
  %v955 = vrcp.pop %v945
  %v956 = vmul.f32 1.0, %v955
  %v957 = vrcp.pop %v946
  %v958 = vmul.f32 1.0, %v957
  %v959 = vrcp.pop %v947
  %v960 = vmul.f32 1.0, %v959
  %v961 = vrcp.pop %v948
  %v962 = vmul.f32 1.0, %v961
  %v963 = vrcp.pop %v949
  %v964 = vmul.f32 1.0, %v963
  %v965 = vrcp.pop %v950
  %v966 = vmul.f32 1.0, %v965
  %v967 = vtanh.pop %v911
  %v968 = vtanh.pop %v912
  %v969 = vtanh.pop %v913
  %v970 = vtanh.pop %v914
  %v971 = vtanh.pop %v915
  %v972 = vtanh.pop %v916
  %v973 = vtanh.pop %v917
  %v974 = vtanh.pop %v918
  %v983 = vrot.slane %v743, 7
  %v984 = vrot.slane %v744, 7
  %v985 = vrot.slane %v745, 7
  %v986 = vrot.slane %v746, 7
  %v987 = vrot.slane %v747, 7
  %v988 = vrot.slane %v748, 7
  %v989 = vrot.slane %v749, 7
  %v990 = vrot.slane %v750, 7
  %v999 = vmul.f32 %v952, %v983
  %v1000 = vmul.f32 %v954, %v984
  %v1001 = vmul.f32 %v956, %v985
  %v1002 = vmul.f32 %v958, %v986
  %v1003 = vmul.f32 %v960, %v987
  %v1004 = vmul.f32 %v962, %v988
  %v1005 = vmul.f32 %v964, %v989
  %v1006 = vmul.f32 %v966, %v990
  %1015 = vrot.lane.b32.xlu0 %v967, 112
  %v1016 = vpop.permute.xlu0 %1015
  %1017 = vrot.lane.b32.xlu0 %v968, 112
  %v1018 = vpop.permute.xlu0 %1017
  %1019 = vrot.lane.b32.xlu0 %v969, 112
  %v1020 = vpop.permute.xlu0 %1019
  %1021 = vrot.lane.b32.xlu0 %v970, 112
  %v1022 = vpop.permute.xlu0 %1021
  %1023 = vrot.lane.b32.xlu0 %v971, 112
  %v1024 = vpop.permute.xlu0 %1023
  %1025 = vrot.lane.b32.xlu0 %v972, 112
  %v1026 = vpop.permute.xlu0 %1025
  %1027 = vrot.lane.b32.xlu0 %v973, 112
  %v1028 = vpop.permute.xlu0 %1027
  %1029 = vrot.lane.b32.xlu0 %v974, 112
  %v1030 = vpop.permute.xlu0 %1029
  %v1039 = vmul.f32 %v952, %v1016
  %v1040 = vmul.f32 %v954, %v1018
  %v1041 = vmul.f32 %v956, %v1020
  %v1042 = vmul.f32 %v958, %v1022
  %v1043 = vmul.f32 %v960, %v1024
  %v1044 = vmul.f32 %v962, %v1026
  %v1045 = vmul.f32 %v964, %v1028
  %v1046 = vmul.f32 %v966, %v1030
  %1055 = vrot.lane.b32.xlu0 %v1039, 8
  %v1056 = vpop.permute.xlu0 %1055
  %1057 = vrot.lane.b32.xlu0 %v1040, 8
  %v1058 = vpop.permute.xlu0 %1057
  %1059 = vrot.lane.b32.xlu0 %v1041, 8
  %v1060 = vpop.permute.xlu0 %1059
  %1061 = vrot.lane.b32.xlu0 %v1042, 8
  %v1062 = vpop.permute.xlu0 %1061
  %1063 = vrot.lane.b32.xlu0 %v1043, 8
  %v1064 = vpop.permute.xlu0 %1063
  %1065 = vrot.lane.b32.xlu0 %v1044, 8
  %v1066 = vpop.permute.xlu0 %1065
  %1067 = vrot.lane.b32.xlu0 %v1045, 8
  %v1068 = vpop.permute.xlu0 %1067
  %1069 = vrot.lane.b32.xlu0 %v1046, 8
  %v1070 = vpop.permute.xlu0 %1069
  %v1079 = vadd.f32 %v999, %v1056
  %v1080 = vadd.f32 %v1000, %v1058
  %v1081 = vadd.f32 %v1001, %v1060
  %v1082 = vadd.f32 %v1002, %v1062
  %v1083 = vadd.f32 %v1003, %v1064
  %v1084 = vadd.f32 %v1004, %v1066
  %v1085 = vadd.f32 %v1005, %v1068
  %v1086 = vadd.f32 %v1006, %v1070
  %v1087 = vtanh.pop %v1079
  %v1088 = vtanh.pop %v1080
  %v1089 = vtanh.pop %v1081
  %v1090 = vtanh.pop %v1082
  %v1091 = vtanh.pop %v1083
  %v1092 = vtanh.pop %v1084
  %v1093 = vtanh.pop %v1085
  %v1094 = vtanh.pop %v1086
  %1103 = vrot.lane.b32.xlu0 %v1087, 16
  %v1104 = vpop.permute.xlu0 %1103
  %1105 = vrot.lane.b32.xlu0 %v1088, 16
  %v1106 = vpop.permute.xlu0 %1105
  %1107 = vrot.lane.b32.xlu0 %v1089, 16
  %v1108 = vpop.permute.xlu0 %1107
  %1109 = vrot.lane.b32.xlu0 %v1090, 16
  %v1110 = vpop.permute.xlu0 %1109
  %1111 = vrot.lane.b32.xlu0 %v1091, 16
  %v1112 = vpop.permute.xlu0 %1111
  %1113 = vrot.lane.b32.xlu0 %v1092, 16
  %v1114 = vpop.permute.xlu0 %1113
  %1115 = vrot.lane.b32.xlu0 %v1093, 16
  %v1116 = vpop.permute.xlu0 %1115
  %1117 = vrot.lane.b32.xlu0 %v1094, 16
  %v1118 = vpop.permute.xlu0 %1117
  %v1127 = vmul.f32 %v952, %v1104
  %v1128 = vmul.f32 %v954, %v1106
  %v1129 = vmul.f32 %v956, %v1108
  %v1130 = vmul.f32 %v958, %v1110
  %v1131 = vmul.f32 %v960, %v1112
  %v1132 = vmul.f32 %v962, %v1114
  %v1133 = vmul.f32 %v964, %v1116
  %v1134 = vmul.f32 %v966, %v1118
  %v1143 = vrot.slane %v1127, 2
  %v1144 = vrot.slane %v1128, 1
  %v1145 = vsel %vm465, %v1144, %v1143
  %v1146 = vsel %vm468, %v1129, %v1145
  %v1147 = vrot.slane %v1130, 7
  %v1148 = vsel %vm471, %v1147, %v1146
  %v1149 = vrot.slane %v1131, 6
  %v1150 = vsel %vm474, %v1149, %v1148
  %v1151 = vrot.slane %v1132, 5
  %v1152 = vsel %vm477, %v1151, %v1150
  %v1153 = vrot.slane %v1133, 4
  %v1154 = vsel %vm480, %v1153, %v1152
  %v1155 = vrot.slane %v1134, 3
  %v1156 = vsel %vm483, %v1155, %v1154
  %1157 = vrot.lane.b32.xlu0 %v1156, 104
  %v1158 = vpop.permute.xlu0 %1157
  %v1159 = vsel %vm166, %v1158, 0
  %1161 = vmatprep.subr.mxu0 0.0
  %1162 = vmatpush1.msra.mxu0 %v18
  %1163 = vmatprep.subr.mxu0 0.0
  %1164 = vmatpush1.msra.mxu0 0.0
  %1165 = vmatprep.subr.mxu0 0.0
  %1166 = vmatpush1.msra.mxu0 0.0
  %1167 = vmatprep.subr.mxu0 0.0
  %1168 = vmatpush1.msra.mxu0 0.0
  %1169 = vmatprep.subr.mxu0 0.0
  %1170 = vmatpush1.msra.mxu0 0.0
  %1171 = vmatprep.subr.mxu0 0.0
  %1172 = vmatpush1.msra.mxu0 0.0
  %1173 = vmatprep.subr.mxu0 0.0
  %1174 = vmatpush1.msra.mxu0 0.0
  %1175 = vmatprep.subr.mxu0 0.0
  %1176 = vmatpush1.msra.mxu0 0.0
  %1177 = vmatprep.subr.mxu0 0.0
  %1178 = vmatpush1.msra.mxu0 0.0
  %1179 = vmatprep.subr.mxu0 0.0
  %1180 = vmatpush1.msra.mxu0 0.0
  %1181 = vmatprep.subr.mxu0 0.0
  %1182 = vmatpush1.msra.mxu0 0.0
  %1183 = vmatprep.subr.mxu0 0.0
  %1184 = vmatpush1.msra.mxu0 0.0
  %1185 = vmatprep.subr.mxu0 0.0
  %1186 = vmatpush1.msra.mxu0 0.0
  %1187 = vmatprep.subr.mxu0 0.0
  %1188 = vmatpush1.msra.mxu0 0.0
  %1189 = vmatprep.subr.mxu0 0.0
  %1190 = vmatpush1.msra.mxu0 0.0
  %1191 = vmatprep.subr.mxu0 0.0
  %1192 = vmatpush1.msra.mxu0 0.0
  %1193 = vmatprep.subr.mxu0 0.0
  %1194 = vmatpush1.msra.mxu0 0.0
  %1195 = vmatprep.subr.mxu0 0.0
  %1196 = vmatpush1.msra.mxu0 0.0
  %1197 = vmatprep.subr.mxu0 0.0
  %1198 = vmatpush1.msra.mxu0 0.0
  %1199 = vmatprep.subr.mxu0 0.0
  %1200 = vmatpush1.msra.mxu0 0.0
  %1201 = vmatprep.subr.mxu0 0.0
  %1202 = vmatpush1.msra.mxu0 0.0
  %1203 = vmatprep.subr.mxu0 0.0
  %1204 = vmatpush1.msra.mxu0 0.0
  %1205 = vmatprep.subr.mxu0 0.0
  %1206 = vmatpush1.msra.mxu0 0.0
  %1207 = vmatprep.subr.mxu0 0.0
  %1208 = vmatpush1.msra.mxu0 0.0
  %1209 = vmatprep.subr.mxu0 0.0
  %1210 = vmatpush1.msra.mxu0 0.0
  %1211 = vmatprep.subr.mxu0 0.0
  %1212 = vmatpush1.msra.mxu0 0.0
  %1213 = vmatprep.subr.mxu0 0.0
  %1214 = vmatpush1.msra.mxu0 0.0
  %1215 = vmatprep.subr.mxu0 0.0
  %1216 = vmatpush1.msra.mxu0 0.0
  %1217 = vmatprep.subr.mxu0 0.0
  %1218 = vmatpush1.msra.mxu0 0.0
  %1219 = vmatprep.subr.mxu0 0.0
  %1220 = vmatpush1.msra.mxu0 0.0
  %1221 = vmatprep.subr.mxu0 0.0
  %1222 = vmatpush1.msra.mxu0 0.0
  %1223 = vmatprep.subr.mxu0 0.0
  %1224 = vmatpush1.msra.mxu0 0.0
  %1225 = vmatprep.mubr.f32.mxu0 0.0
  %1226 = vmatmul.mubr.f32.gmra.mrb[0].mxu0 %v1159
  %v1227 = vpop.f32.mrb[0].mxu0
  %v1228 = vadd.f32 0.0, %v1227
  %v1229 = vpop.f32.mrb[0].mxu0
  %1230 = vdwg.mxu0
  %v1232 = vrot.slane %v1228, 5
  %v1233 = vrot.slane %v1228, 6
  %v1234 = vrot.slane %v1228, 7
  %v1235 = vrot.slane %v1228, 1
  %v1236 = vrot.slane %v1228, 2
  %v1237 = vrot.slane %v1228, 3
  %v1238 = vrot.slane %v1228, 4
  %v1247 = vadd.f32 %v128, %v1232
  %v1248 = vadd.f32 %v133, %v1233
  %v1249 = vadd.f32 %v138, %v1234
  %v1250 = vadd.f32 %v143, %v1228
  %v1251 = vadd.f32 %v148, %v1235
  %v1252 = vadd.f32 %v153, %v1236
  %v1253 = vadd.f32 %v158, %v1237
  %v1254 = vadd.f32 %v163, %v1238
  %v1255 = vxor.u32 %v1247, 2147483648
  %v1256 = vxor.u32 %v1248, 2147483648
  %v1257 = vxor.u32 %v1249, 2147483648
  %v1258 = vxor.u32 %v1250, 2147483648
  %v1259 = vxor.u32 %v1251, 2147483648
  %v1260 = vxor.u32 %v1252, 2147483648
  %v1261 = vxor.u32 %v1253, 2147483648
  %v1262 = vxor.u32 %v1254, 2147483648
  %v1263 = vmul.f32 %v1255, 1.442695
  %v1264 = vpow.pop %v1263
  %v1265 = vmul.f32 %v1256, 1.442695
  %v1266 = vpow.pop %v1265
  %v1267 = vmul.f32 %v1257, 1.442695
  %v1268 = vpow.pop %v1267
  %v1269 = vmul.f32 %v1258, 1.442695
  %v1270 = vpow.pop %v1269
  %v1271 = vmul.f32 %v1259, 1.442695
  %v1272 = vpow.pop %v1271
  %v1273 = vmul.f32 %v1260, 1.442695
  %v1274 = vpow.pop %v1273
  %v1275 = vmul.f32 %v1261, 1.442695
  %v1276 = vpow.pop %v1275
  %v1277 = vmul.f32 %v1262, 1.442695
  %v1278 = vpow.pop %v1277
  %v1279 = vadd.f32 %v1264, 1.0
  %v1280 = vadd.f32 %v1266, 1.0
  %v1281 = vadd.f32 %v1268, 1.0
  %v1282 = vadd.f32 %v1270, 1.0
  %v1283 = vadd.f32 %v1272, 1.0
  %v1284 = vadd.f32 %v1274, 1.0
  %v1285 = vadd.f32 %v1276, 1.0
  %v1286 = vadd.f32 %v1278, 1.0
  %v1287 = vrcp.pop %v1279
  %v1288 = vmul.f32 1.0, %v1287
  %v1289 = vrcp.pop %v1280
  %v1290 = vmul.f32 1.0, %v1289
  %v1291 = vrcp.pop %v1281
  %v1292 = vmul.f32 1.0, %v1291
  %v1293 = vrcp.pop %v1282
  %v1294 = vmul.f32 1.0, %v1293
  %v1295 = vrcp.pop %v1283
  %v1296 = vmul.f32 1.0, %v1295
  %v1297 = vrcp.pop %v1284
  %v1298 = vmul.f32 1.0, %v1297
  %v1299 = vrcp.pop %v1285
  %v1300 = vmul.f32 1.0, %v1299
  %v1301 = vrcp.pop %v1286
  %v1302 = vmul.f32 1.0, %v1301
  %v1303 = vtanh.pop %v1247
  %v1304 = vtanh.pop %v1248
  %v1305 = vtanh.pop %v1249
  %v1306 = vtanh.pop %v1250
  %v1307 = vtanh.pop %v1251
  %v1308 = vtanh.pop %v1252
  %v1309 = vtanh.pop %v1253
  %v1310 = vtanh.pop %v1254
  %v1319 = vrot.slane %v1079, 7
  %v1320 = vrot.slane %v1080, 7
  %v1321 = vrot.slane %v1081, 7
  %v1322 = vrot.slane %v1082, 7
  %v1323 = vrot.slane %v1083, 7
  %v1324 = vrot.slane %v1084, 7
  %v1325 = vrot.slane %v1085, 7
  %v1326 = vrot.slane %v1086, 7
  %v1335 = vmul.f32 %v1288, %v1319
  %v1336 = vmul.f32 %v1290, %v1320
  %v1337 = vmul.f32 %v1292, %v1321
  %v1338 = vmul.f32 %v1294, %v1322
  %v1339 = vmul.f32 %v1296, %v1323
  %v1340 = vmul.f32 %v1298, %v1324
  %v1341 = vmul.f32 %v1300, %v1325
  %v1342 = vmul.f32 %v1302, %v1326
  %1351 = vrot.lane.b32.xlu0 %v1303, 112
  %v1352 = vpop.permute.xlu0 %1351
  %1353 = vrot.lane.b32.xlu0 %v1304, 112
  %v1354 = vpop.permute.xlu0 %1353
  %1355 = vrot.lane.b32.xlu0 %v1305, 112
  %v1356 = vpop.permute.xlu0 %1355
  %1357 = vrot.lane.b32.xlu0 %v1306, 112
  %v1358 = vpop.permute.xlu0 %1357
  %1359 = vrot.lane.b32.xlu0 %v1307, 112
  %v1360 = vpop.permute.xlu0 %1359
  %1361 = vrot.lane.b32.xlu0 %v1308, 112
  %v1362 = vpop.permute.xlu0 %1361
  %1363 = vrot.lane.b32.xlu0 %v1309, 112
  %v1364 = vpop.permute.xlu0 %1363
  %1365 = vrot.lane.b32.xlu0 %v1310, 112
  %v1366 = vpop.permute.xlu0 %1365
  %v1375 = vmul.f32 %v1288, %v1352
  %v1376 = vmul.f32 %v1290, %v1354
  %v1377 = vmul.f32 %v1292, %v1356
  %v1378 = vmul.f32 %v1294, %v1358
  %v1379 = vmul.f32 %v1296, %v1360
  %v1380 = vmul.f32 %v1298, %v1362
  %v1381 = vmul.f32 %v1300, %v1364
  %v1382 = vmul.f32 %v1302, %v1366
  %1391 = vrot.lane.b32.xlu0 %v1375, 8
  %v1392 = vpop.permute.xlu0 %1391
  %1393 = vrot.lane.b32.xlu0 %v1376, 8
  %v1394 = vpop.permute.xlu0 %1393
  %1395 = vrot.lane.b32.xlu0 %v1377, 8
  %v1396 = vpop.permute.xlu0 %1395
  %1397 = vrot.lane.b32.xlu0 %v1378, 8
  %v1398 = vpop.permute.xlu0 %1397
  %1399 = vrot.lane.b32.xlu0 %v1379, 8
  %v1400 = vpop.permute.xlu0 %1399
  %1401 = vrot.lane.b32.xlu0 %v1380, 8
  %v1402 = vpop.permute.xlu0 %1401
  %1403 = vrot.lane.b32.xlu0 %v1381, 8
  %v1404 = vpop.permute.xlu0 %1403
  %1405 = vrot.lane.b32.xlu0 %v1382, 8
  %v1406 = vpop.permute.xlu0 %1405
  %v1415 = vadd.f32 %v1335, %v1392
  %v1416 = vadd.f32 %v1336, %v1394
  %v1417 = vadd.f32 %v1337, %v1396
  %v1418 = vadd.f32 %v1338, %v1398
  %v1419 = vadd.f32 %v1339, %v1400
  %v1420 = vadd.f32 %v1340, %v1402
  %v1421 = vadd.f32 %v1341, %v1404
  %v1422 = vadd.f32 %v1342, %v1406
  %v1423 = vtanh.pop %v1415
  %v1424 = vtanh.pop %v1416
  %v1425 = vtanh.pop %v1417
  %v1426 = vtanh.pop %v1418
  %v1427 = vtanh.pop %v1419
  %v1428 = vtanh.pop %v1420
  %v1429 = vtanh.pop %v1421
  %v1430 = vtanh.pop %v1422
  %1439 = vrot.lane.b32.xlu0 %v1423, 16
  %v1440 = vpop.permute.xlu0 %1439
  %1441 = vrot.lane.b32.xlu0 %v1424, 16
  %v1442 = vpop.permute.xlu0 %1441
  %1443 = vrot.lane.b32.xlu0 %v1425, 16
  %v1444 = vpop.permute.xlu0 %1443
  %1445 = vrot.lane.b32.xlu0 %v1426, 16
  %v1446 = vpop.permute.xlu0 %1445
  %1447 = vrot.lane.b32.xlu0 %v1427, 16
  %v1448 = vpop.permute.xlu0 %1447
  %1449 = vrot.lane.b32.xlu0 %v1428, 16
  %v1450 = vpop.permute.xlu0 %1449
  %1451 = vrot.lane.b32.xlu0 %v1429, 16
  %v1452 = vpop.permute.xlu0 %1451
  %1453 = vrot.lane.b32.xlu0 %v1430, 16
  %v1454 = vpop.permute.xlu0 %1453
  %v1463 = vmul.f32 %v1288, %v1440
  %v1464 = vmul.f32 %v1290, %v1442
  %v1465 = vmul.f32 %v1292, %v1444
  %v1466 = vmul.f32 %v1294, %v1446
  %v1467 = vmul.f32 %v1296, %v1448
  %v1468 = vmul.f32 %v1298, %v1450
  %v1469 = vmul.f32 %v1300, %v1452
  %v1470 = vmul.f32 %v1302, %v1454
  %v1479 = vrot.slane %v1463, 3
  %v1480 = vrot.slane %v1464, 2
  %v1481 = vsel %vm465, %v1480, %v1479
  %v1482 = vrot.slane %v1465, 1
  %v1483 = vsel %vm468, %v1482, %v1481
  %v1484 = vsel %vm471, %v1466, %v1483
  %v1485 = vrot.slane %v1467, 7
  %v1486 = vsel %vm474, %v1485, %v1484
  %v1487 = vrot.slane %v1468, 6
  %v1488 = vsel %vm477, %v1487, %v1486
  %v1489 = vrot.slane %v1469, 5
  %v1490 = vsel %vm480, %v1489, %v1488
  %v1491 = vrot.slane %v1470, 4
  %v1492 = vsel %vm483, %v1491, %v1490
  %1493 = vrot.lane.b32.xlu0 %v1492, 104
  %v1494 = vpop.permute.xlu0 %1493
  %v1495 = vsel %vm166, %v1494, 0
  %1497 = vmatprep.subr.mxu0 0.0
  %1498 = vmatpush1.msra.mxu0 %v18
  %1499 = vmatprep.subr.mxu0 0.0
  %1500 = vmatpush1.msra.mxu0 0.0
  %1501 = vmatprep.subr.mxu0 0.0
  %1502 = vmatpush1.msra.mxu0 0.0
  %1503 = vmatprep.subr.mxu0 0.0
  %1504 = vmatpush1.msra.mxu0 0.0
  %1505 = vmatprep.subr.mxu0 0.0
  %1506 = vmatpush1.msra.mxu0 0.0
  %1507 = vmatprep.subr.mxu0 0.0
  %1508 = vmatpush1.msra.mxu0 0.0
  %1509 = vmatprep.subr.mxu0 0.0
  %1510 = vmatpush1.msra.mxu0 0.0
  %1511 = vmatprep.subr.mxu0 0.0
  %1512 = vmatpush1.msra.mxu0 0.0
  %1513 = vmatprep.subr.mxu0 0.0
  %1514 = vmatpush1.msra.mxu0 0.0
  %1515 = vmatprep.subr.mxu0 0.0
  %1516 = vmatpush1.msra.mxu0 0.0
  %1517 = vmatprep.subr.mxu0 0.0
  %1518 = vmatpush1.msra.mxu0 0.0
  %1519 = vmatprep.subr.mxu0 0.0
  %1520 = vmatpush1.msra.mxu0 0.0
  %1521 = vmatprep.subr.mxu0 0.0
  %1522 = vmatpush1.msra.mxu0 0.0
  %1523 = vmatprep.subr.mxu0 0.0
  %1524 = vmatpush1.msra.mxu0 0.0
  %1525 = vmatprep.subr.mxu0 0.0
  %1526 = vmatpush1.msra.mxu0 0.0
  %1527 = vmatprep.subr.mxu0 0.0
  %1528 = vmatpush1.msra.mxu0 0.0
  %1529 = vmatprep.subr.mxu0 0.0
  %1530 = vmatpush1.msra.mxu0 0.0
  %1531 = vmatprep.subr.mxu0 0.0
  %1532 = vmatpush1.msra.mxu0 0.0
  %1533 = vmatprep.subr.mxu0 0.0
  %1534 = vmatpush1.msra.mxu0 0.0
  %1535 = vmatprep.subr.mxu0 0.0
  %1536 = vmatpush1.msra.mxu0 0.0
  %1537 = vmatprep.subr.mxu0 0.0
  %1538 = vmatpush1.msra.mxu0 0.0
  %1539 = vmatprep.subr.mxu0 0.0
  %1540 = vmatpush1.msra.mxu0 0.0
  %1541 = vmatprep.subr.mxu0 0.0
  %1542 = vmatpush1.msra.mxu0 0.0
  %1543 = vmatprep.subr.mxu0 0.0
  %1544 = vmatpush1.msra.mxu0 0.0
  %1545 = vmatprep.subr.mxu0 0.0
  %1546 = vmatpush1.msra.mxu0 0.0
  %1547 = vmatprep.subr.mxu0 0.0
  %1548 = vmatpush1.msra.mxu0 0.0
  %1549 = vmatprep.subr.mxu0 0.0
  %1550 = vmatpush1.msra.mxu0 0.0
  %1551 = vmatprep.subr.mxu0 0.0
  %1552 = vmatpush1.msra.mxu0 0.0
  %1553 = vmatprep.subr.mxu0 0.0
  %1554 = vmatpush1.msra.mxu0 0.0
  %1555 = vmatprep.subr.mxu0 0.0
  %1556 = vmatpush1.msra.mxu0 0.0
  %1557 = vmatprep.subr.mxu0 0.0
  %1558 = vmatpush1.msra.mxu0 0.0
  %1559 = vmatprep.subr.mxu0 0.0
  %1560 = vmatpush1.msra.mxu0 0.0
  %1561 = vmatprep.mubr.f32.mxu0 0.0
  %1562 = vmatmul.mubr.f32.gmra.mrb[0].mxu0 %v1495
  %v1563 = vpop.f32.mrb[0].mxu0
  %v1564 = vadd.f32 0.0, %v1563
  %v1565 = vpop.f32.mrb[0].mxu0
  %1566 = vdwg.mxu0
  %v1568 = vrot.slane %v1564, 4
  %v1569 = vrot.slane %v1564, 5
  %v1570 = vrot.slane %v1564, 6
  %v1571 = vrot.slane %v1564, 7
  %v1572 = vrot.slane %v1564, 1
  %v1573 = vrot.slane %v1564, 2
  %v1574 = vrot.slane %v1564, 3
  %v1583 = vadd.f32 %v128, %v1568
  %v1584 = vadd.f32 %v133, %v1569
  %v1585 = vadd.f32 %v138, %v1570
  %v1586 = vadd.f32 %v143, %v1571
  %v1587 = vadd.f32 %v148, %v1564
  %v1588 = vadd.f32 %v153, %v1572
  %v1589 = vadd.f32 %v158, %v1573
  %v1590 = vadd.f32 %v163, %v1574
  %v1591 = vxor.u32 %v1583, 2147483648
  %v1592 = vxor.u32 %v1584, 2147483648
  %v1593 = vxor.u32 %v1585, 2147483648
  %v1594 = vxor.u32 %v1586, 2147483648
  %v1595 = vxor.u32 %v1587, 2147483648
  %v1596 = vxor.u32 %v1588, 2147483648
  %v1597 = vxor.u32 %v1589, 2147483648
  %v1598 = vxor.u32 %v1590, 2147483648
  %v1599 = vmul.f32 %v1591, 1.442695
  %v1600 = vpow.pop %v1599
  %v1601 = vmul.f32 %v1592, 1.442695
  %v1602 = vpow.pop %v1601
  %v1603 = vmul.f32 %v1593, 1.442695
  %v1604 = vpow.pop %v1603
  %v1605 = vmul.f32 %v1594, 1.442695
  %v1606 = vpow.pop %v1605
  %v1607 = vmul.f32 %v1595, 1.442695
  %v1608 = vpow.pop %v1607
  %v1609 = vmul.f32 %v1596, 1.442695
  %v1610 = vpow.pop %v1609
  %v1611 = vmul.f32 %v1597, 1.442695
  %v1612 = vpow.pop %v1611
  %v1613 = vmul.f32 %v1598, 1.442695
  %v1614 = vpow.pop %v1613
  %v1615 = vadd.f32 %v1600, 1.0
  %v1616 = vadd.f32 %v1602, 1.0
  %v1617 = vadd.f32 %v1604, 1.0
  %v1618 = vadd.f32 %v1606, 1.0
  %v1619 = vadd.f32 %v1608, 1.0
  %v1620 = vadd.f32 %v1610, 1.0
  %v1621 = vadd.f32 %v1612, 1.0
  %v1622 = vadd.f32 %v1614, 1.0
  %v1623 = vrcp.pop %v1615
  %v1624 = vmul.f32 1.0, %v1623
  %v1625 = vrcp.pop %v1616
  %v1626 = vmul.f32 1.0, %v1625
  %v1627 = vrcp.pop %v1617
  %v1628 = vmul.f32 1.0, %v1627
  %v1629 = vrcp.pop %v1618
  %v1630 = vmul.f32 1.0, %v1629
  %v1631 = vrcp.pop %v1619
  %v1632 = vmul.f32 1.0, %v1631
  %v1633 = vrcp.pop %v1620
  %v1634 = vmul.f32 1.0, %v1633
  %v1635 = vrcp.pop %v1621
  %v1636 = vmul.f32 1.0, %v1635
  %v1637 = vrcp.pop %v1622
  %v1638 = vmul.f32 1.0, %v1637
  %v1639 = vtanh.pop %v1583
  %v1640 = vtanh.pop %v1584
  %v1641 = vtanh.pop %v1585
  %v1642 = vtanh.pop %v1586
  %v1643 = vtanh.pop %v1587
  %v1644 = vtanh.pop %v1588
  %v1645 = vtanh.pop %v1589
  %v1646 = vtanh.pop %v1590
  %v1655 = vrot.slane %v1415, 7
  %v1656 = vrot.slane %v1416, 7
  %v1657 = vrot.slane %v1417, 7
  %v1658 = vrot.slane %v1418, 7
  %v1659 = vrot.slane %v1419, 7
  %v1660 = vrot.slane %v1420, 7
  %v1661 = vrot.slane %v1421, 7
  %v1662 = vrot.slane %v1422, 7
  %v1671 = vmul.f32 %v1624, %v1655
  %v1672 = vmul.f32 %v1626, %v1656
  %v1673 = vmul.f32 %v1628, %v1657
  %v1674 = vmul.f32 %v1630, %v1658
  %v1675 = vmul.f32 %v1632, %v1659
  %v1676 = vmul.f32 %v1634, %v1660
  %v1677 = vmul.f32 %v1636, %v1661
  %v1678 = vmul.f32 %v1638, %v1662
  %1687 = vrot.lane.b32.xlu0 %v1639, 112
  %v1688 = vpop.permute.xlu0 %1687
  %1689 = vrot.lane.b32.xlu0 %v1640, 112
  %v1690 = vpop.permute.xlu0 %1689
  %1691 = vrot.lane.b32.xlu0 %v1641, 112
  %v1692 = vpop.permute.xlu0 %1691
  %1693 = vrot.lane.b32.xlu0 %v1642, 112
  %v1694 = vpop.permute.xlu0 %1693
  %1695 = vrot.lane.b32.xlu0 %v1643, 112
  %v1696 = vpop.permute.xlu0 %1695
  %1697 = vrot.lane.b32.xlu0 %v1644, 112
  %v1698 = vpop.permute.xlu0 %1697
  %1699 = vrot.lane.b32.xlu0 %v1645, 112
  %v1700 = vpop.permute.xlu0 %1699
  %1701 = vrot.lane.b32.xlu0 %v1646, 112
  %v1702 = vpop.permute.xlu0 %1701
  %v1711 = vmul.f32 %v1624, %v1688
  %v1712 = vmul.f32 %v1626, %v1690
  %v1713 = vmul.f32 %v1628, %v1692
  %v1714 = vmul.f32 %v1630, %v1694
  %v1715 = vmul.f32 %v1632, %v1696
  %v1716 = vmul.f32 %v1634, %v1698
  %v1717 = vmul.f32 %v1636, %v1700
  %v1718 = vmul.f32 %v1638, %v1702
  %1727 = vrot.lane.b32.xlu0 %v1711, 8
  %v1728 = vpop.permute.xlu0 %1727
  %1729 = vrot.lane.b32.xlu0 %v1712, 8
  %v1730 = vpop.permute.xlu0 %1729
  %1731 = vrot.lane.b32.xlu0 %v1713, 8
  %v1732 = vpop.permute.xlu0 %1731
  %1733 = vrot.lane.b32.xlu0 %v1714, 8
  %v1734 = vpop.permute.xlu0 %1733
  %1735 = vrot.lane.b32.xlu0 %v1715, 8
  %v1736 = vpop.permute.xlu0 %1735
  %1737 = vrot.lane.b32.xlu0 %v1716, 8
  %v1738 = vpop.permute.xlu0 %1737
  %1739 = vrot.lane.b32.xlu0 %v1717, 8
  %v1740 = vpop.permute.xlu0 %1739
  %1741 = vrot.lane.b32.xlu0 %v1718, 8
  %v1742 = vpop.permute.xlu0 %1741
  %v1751 = vadd.f32 %v1671, %v1728
  %v1752 = vadd.f32 %v1672, %v1730
  %v1753 = vadd.f32 %v1673, %v1732
  %v1754 = vadd.f32 %v1674, %v1734
  %v1755 = vadd.f32 %v1675, %v1736
  %v1756 = vadd.f32 %v1676, %v1738
  %v1757 = vadd.f32 %v1677, %v1740
  %v1758 = vadd.f32 %v1678, %v1742
  %v1759 = vtanh.pop %v1751
  %v1760 = vtanh.pop %v1752
  %v1761 = vtanh.pop %v1753
  %v1762 = vtanh.pop %v1754
  %v1763 = vtanh.pop %v1755
  %v1764 = vtanh.pop %v1756
  %v1765 = vtanh.pop %v1757
  %v1766 = vtanh.pop %v1758
  %1775 = vrot.lane.b32.xlu0 %v1759, 16
  %v1776 = vpop.permute.xlu0 %1775
  %1777 = vrot.lane.b32.xlu0 %v1760, 16
  %v1778 = vpop.permute.xlu0 %1777
  %1779 = vrot.lane.b32.xlu0 %v1761, 16
  %v1780 = vpop.permute.xlu0 %1779
  %1781 = vrot.lane.b32.xlu0 %v1762, 16
  %v1782 = vpop.permute.xlu0 %1781
  %1783 = vrot.lane.b32.xlu0 %v1763, 16
  %v1784 = vpop.permute.xlu0 %1783
  %1785 = vrot.lane.b32.xlu0 %v1764, 16
  %v1786 = vpop.permute.xlu0 %1785
  %1787 = vrot.lane.b32.xlu0 %v1765, 16
  %v1788 = vpop.permute.xlu0 %1787
  %1789 = vrot.lane.b32.xlu0 %v1766, 16
  %v1790 = vpop.permute.xlu0 %1789
  %v1799 = vmul.f32 %v1624, %v1776
  %v1800 = vmul.f32 %v1626, %v1778
  %v1801 = vmul.f32 %v1628, %v1780
  %v1802 = vmul.f32 %v1630, %v1782
  %v1803 = vmul.f32 %v1632, %v1784
  %v1804 = vmul.f32 %v1634, %v1786
  %v1805 = vmul.f32 %v1636, %v1788
  %v1806 = vmul.f32 %v1638, %v1790
  %v1815 = vrot.slane %v1799, 4
  %v1816 = vrot.slane %v1800, 3
  %v1817 = vsel %vm465, %v1816, %v1815
  %v1818 = vrot.slane %v1801, 2
  %v1819 = vsel %vm468, %v1818, %v1817
  %v1820 = vrot.slane %v1802, 1
  %v1821 = vsel %vm471, %v1820, %v1819
  %v1822 = vsel %vm474, %v1803, %v1821
  %v1823 = vrot.slane %v1804, 7
  %v1824 = vsel %vm477, %v1823, %v1822
  %v1825 = vrot.slane %v1805, 6
  %v1826 = vsel %vm480, %v1825, %v1824
  %v1827 = vrot.slane %v1806, 5
  %v1828 = vsel %vm483, %v1827, %v1826
  %1829 = vrot.lane.b32.xlu0 %v1828, 104
  %v1830 = vpop.permute.xlu0 %1829
  %v1831 = vsel %vm166, %v1830, 0
  %1833 = vmatprep.subr.mxu0 0.0
  %1834 = vmatpush1.msra.mxu0 %v18
  %1835 = vmatprep.subr.mxu0 0.0
  %1836 = vmatpush1.msra.mxu0 0.0
  %1837 = vmatprep.subr.mxu0 0.0
  %1838 = vmatpush1.msra.mxu0 0.0
  %1839 = vmatprep.subr.mxu0 0.0
  %1840 = vmatpush1.msra.mxu0 0.0
  %1841 = vmatprep.subr.mxu0 0.0
  %1842 = vmatpush1.msra.mxu0 0.0
  %1843 = vmatprep.subr.mxu0 0.0
  %1844 = vmatpush1.msra.mxu0 0.0
  %1845 = vmatprep.subr.mxu0 0.0
  %1846 = vmatpush1.msra.mxu0 0.0
  %1847 = vmatprep.subr.mxu0 0.0
  %1848 = vmatpush1.msra.mxu0 0.0
  %1849 = vmatprep.subr.mxu0 0.0
  %1850 = vmatpush1.msra.mxu0 0.0
  %1851 = vmatprep.subr.mxu0 0.0
  %1852 = vmatpush1.msra.mxu0 0.0
  %1853 = vmatprep.subr.mxu0 0.0
  %1854 = vmatpush1.msra.mxu0 0.0
  %1855 = vmatprep.subr.mxu0 0.0
  %1856 = vmatpush1.msra.mxu0 0.0
  %1857 = vmatprep.subr.mxu0 0.0
  %1858 = vmatpush1.msra.mxu0 0.0
  %1859 = vmatprep.subr.mxu0 0.0
  %1860 = vmatpush1.msra.mxu0 0.0
  %1861 = vmatprep.subr.mxu0 0.0
  %1862 = vmatpush1.msra.mxu0 0.0
  %1863 = vmatprep.subr.mxu0 0.0
  %1864 = vmatpush1.msra.mxu0 0.0
  %1865 = vmatprep.subr.mxu0 0.0
  %1866 = vmatpush1.msra.mxu0 0.0
  %1867 = vmatprep.subr.mxu0 0.0
  %1868 = vmatpush1.msra.mxu0 0.0
  %1869 = vmatprep.subr.mxu0 0.0
  %1870 = vmatpush1.msra.mxu0 0.0
  %1871 = vmatprep.subr.mxu0 0.0
  %1872 = vmatpush1.msra.mxu0 0.0
  %1873 = vmatprep.subr.mxu0 0.0
  %1874 = vmatpush1.msra.mxu0 0.0
  %1875 = vmatprep.subr.mxu0 0.0
  %1876 = vmatpush1.msra.mxu0 0.0
  %1877 = vmatprep.subr.mxu0 0.0
  %1878 = vmatpush1.msra.mxu0 0.0
  %1879 = vmatprep.subr.mxu0 0.0
  %1880 = vmatpush1.msra.mxu0 0.0
  %1881 = vmatprep.subr.mxu0 0.0
  %1882 = vmatpush1.msra.mxu0 0.0
  %1883 = vmatprep.subr.mxu0 0.0
  %1884 = vmatpush1.msra.mxu0 0.0
  %1885 = vmatprep.subr.mxu0 0.0
  %1886 = vmatpush1.msra.mxu0 0.0
  %1887 = vmatprep.subr.mxu0 0.0
  %1888 = vmatpush1.msra.mxu0 0.0
  %1889 = vmatprep.subr.mxu0 0.0
  %1890 = vmatpush1.msra.mxu0 0.0
  %1891 = vmatprep.subr.mxu0 0.0
  %1892 = vmatpush1.msra.mxu0 0.0
  %1893 = vmatprep.subr.mxu0 0.0
  %1894 = vmatpush1.msra.mxu0 0.0
  %1895 = vmatprep.subr.mxu0 0.0
  %1896 = vmatpush1.msra.mxu0 0.0
  %1897 = vmatprep.mubr.f32.mxu0 0.0
  %1898 = vmatmul.mubr.f32.gmra.mrb[0].mxu0 %v1831
  %v1899 = vpop.f32.mrb[0].mxu0
  %v1900 = vadd.f32 0.0, %v1899
  %v1901 = vpop.f32.mrb[0].mxu0
  %1902 = vdwg.mxu0
  %v1904 = vrot.slane %v1900, 3
  %v1905 = vrot.slane %v1900, 4
  %v1906 = vrot.slane %v1900, 5
  %v1907 = vrot.slane %v1900, 6
  %v1908 = vrot.slane %v1900, 7
  %v1909 = vrot.slane %v1900, 1
  %v1910 = vrot.slane %v1900, 2
  %v1919 = vadd.f32 %v128, %v1904
  %v1920 = vadd.f32 %v133, %v1905
  %v1921 = vadd.f32 %v138, %v1906
  %v1922 = vadd.f32 %v143, %v1907
  %v1923 = vadd.f32 %v148, %v1908
  %v1924 = vadd.f32 %v153, %v1900
  %v1925 = vadd.f32 %v158, %v1909
  %v1926 = vadd.f32 %v163, %v1910
  %v1927 = vxor.u32 %v1919, 2147483648
  %v1928 = vxor.u32 %v1920, 2147483648
  %v1929 = vxor.u32 %v1921, 2147483648
  %v1930 = vxor.u32 %v1922, 2147483648
  %v1931 = vxor.u32 %v1923, 2147483648
  %v1932 = vxor.u32 %v1924, 2147483648
  %v1933 = vxor.u32 %v1925, 2147483648
  %v1934 = vxor.u32 %v1926, 2147483648
  %v1935 = vmul.f32 %v1927, 1.442695
  %v1936 = vpow.pop %v1935
  %v1937 = vmul.f32 %v1928, 1.442695
  %v1938 = vpow.pop %v1937
  %v1939 = vmul.f32 %v1929, 1.442695
  %v1940 = vpow.pop %v1939
  %v1941 = vmul.f32 %v1930, 1.442695
  %v1942 = vpow.pop %v1941
  %v1943 = vmul.f32 %v1931, 1.442695
  %v1944 = vpow.pop %v1943
  %v1945 = vmul.f32 %v1932, 1.442695
  %v1946 = vpow.pop %v1945
  %v1947 = vmul.f32 %v1933, 1.442695
  %v1948 = vpow.pop %v1947
  %v1949 = vmul.f32 %v1934, 1.442695
  %v1950 = vpow.pop %v1949
  %v1951 = vadd.f32 %v1936, 1.0
  %v1952 = vadd.f32 %v1938, 1.0
  %v1953 = vadd.f32 %v1940, 1.0
  %v1954 = vadd.f32 %v1942, 1.0
  %v1955 = vadd.f32 %v1944, 1.0
  %v1956 = vadd.f32 %v1946, 1.0
  %v1957 = vadd.f32 %v1948, 1.0
  %v1958 = vadd.f32 %v1950, 1.0
  %v1959 = vrcp.pop %v1951
  %v1960 = vmul.f32 1.0, %v1959
  %v1961 = vrcp.pop %v1952
  %v1962 = vmul.f32 1.0, %v1961
  %v1963 = vrcp.pop %v1953
  %v1964 = vmul.f32 1.0, %v1963
  %v1965 = vrcp.pop %v1954
  %v1966 = vmul.f32 1.0, %v1965
  %v1967 = vrcp.pop %v1955
  %v1968 = vmul.f32 1.0, %v1967
  %v1969 = vrcp.pop %v1956
  %v1970 = vmul.f32 1.0, %v1969
  %v1971 = vrcp.pop %v1957
  %v1972 = vmul.f32 1.0, %v1971
  %v1973 = vrcp.pop %v1958
  %v1974 = vmul.f32 1.0, %v1973
  %v1975 = vtanh.pop %v1919
  %v1976 = vtanh.pop %v1920
  %v1977 = vtanh.pop %v1921
  %v1978 = vtanh.pop %v1922
  %v1979 = vtanh.pop %v1923
  %v1980 = vtanh.pop %v1924
  %v1981 = vtanh.pop %v1925
  %v1982 = vtanh.pop %v1926
  %v1991 = vrot.slane %v1751, 7
  %v1992 = vrot.slane %v1752, 7
  %v1993 = vrot.slane %v1753, 7
  %v1994 = vrot.slane %v1754, 7
  %v1995 = vrot.slane %v1755, 7
  %v1996 = vrot.slane %v1756, 7
  %v1997 = vrot.slane %v1757, 7
  %v1998 = vrot.slane %v1758, 7
  %v2007 = vmul.f32 %v1960, %v1991
  %v2008 = vmul.f32 %v1962, %v1992
  %v2009 = vmul.f32 %v1964, %v1993
  %v2010 = vmul.f32 %v1966, %v1994
  %v2011 = vmul.f32 %v1968, %v1995
  %v2012 = vmul.f32 %v1970, %v1996
  %v2013 = vmul.f32 %v1972, %v1997
  %v2014 = vmul.f32 %v1974, %v1998
  %2023 = vrot.lane.b32.xlu0 %v1975, 112
  %v2024 = vpop.permute.xlu0 %2023
  %2025 = vrot.lane.b32.xlu0 %v1976, 112
  %v2026 = vpop.permute.xlu0 %2025
  %2027 = vrot.lane.b32.xlu0 %v1977, 112
  %v2028 = vpop.permute.xlu0 %2027
  %2029 = vrot.lane.b32.xlu0 %v1978, 112
  %v2030 = vpop.permute.xlu0 %2029
  %2031 = vrot.lane.b32.xlu0 %v1979, 112
  %v2032 = vpop.permute.xlu0 %2031
  %2033 = vrot.lane.b32.xlu0 %v1980, 112
  %v2034 = vpop.permute.xlu0 %2033
  %2035 = vrot.lane.b32.xlu0 %v1981, 112
  %v2036 = vpop.permute.xlu0 %2035
  %2037 = vrot.lane.b32.xlu0 %v1982, 112
  %v2038 = vpop.permute.xlu0 %2037
  %v2047 = vmul.f32 %v1960, %v2024
  %v2048 = vmul.f32 %v1962, %v2026
  %v2049 = vmul.f32 %v1964, %v2028
  %v2050 = vmul.f32 %v1966, %v2030
  %v2051 = vmul.f32 %v1968, %v2032
  %v2052 = vmul.f32 %v1970, %v2034
  %v2053 = vmul.f32 %v1972, %v2036
  %v2054 = vmul.f32 %v1974, %v2038
  %2063 = vrot.lane.b32.xlu0 %v2047, 8
  %v2064 = vpop.permute.xlu0 %2063
  %2065 = vrot.lane.b32.xlu0 %v2048, 8
  %v2066 = vpop.permute.xlu0 %2065
  %2067 = vrot.lane.b32.xlu0 %v2049, 8
  %v2068 = vpop.permute.xlu0 %2067
  %2069 = vrot.lane.b32.xlu0 %v2050, 8
  %v2070 = vpop.permute.xlu0 %2069
  %2071 = vrot.lane.b32.xlu0 %v2051, 8
  %v2072 = vpop.permute.xlu0 %2071
  %2073 = vrot.lane.b32.xlu0 %v2052, 8
  %v2074 = vpop.permute.xlu0 %2073
  %2075 = vrot.lane.b32.xlu0 %v2053, 8
  %v2076 = vpop.permute.xlu0 %2075
  %2077 = vrot.lane.b32.xlu0 %v2054, 8
  %v2078 = vpop.permute.xlu0 %2077
  %v2087 = vadd.f32 %v2007, %v2064
  %v2088 = vadd.f32 %v2008, %v2066
  %v2089 = vadd.f32 %v2009, %v2068
  %v2090 = vadd.f32 %v2010, %v2070
  %v2091 = vadd.f32 %v2011, %v2072
  %v2092 = vadd.f32 %v2012, %v2074
  %v2093 = vadd.f32 %v2013, %v2076
  %v2094 = vadd.f32 %v2014, %v2078
  %v2095 = vtanh.pop %v2087
  %v2096 = vtanh.pop %v2088
  %v2097 = vtanh.pop %v2089
  %v2098 = vtanh.pop %v2090
  %v2099 = vtanh.pop %v2091
  %v2100 = vtanh.pop %v2092
  %v2101 = vtanh.pop %v2093
  %v2102 = vtanh.pop %v2094
  %2111 = vrot.lane.b32.xlu0 %v2095, 16
  %v2112 = vpop.permute.xlu0 %2111
  %2113 = vrot.lane.b32.xlu0 %v2096, 16
  %v2114 = vpop.permute.xlu0 %2113
  %2115 = vrot.lane.b32.xlu0 %v2097, 16
  %v2116 = vpop.permute.xlu0 %2115
  %2117 = vrot.lane.b32.xlu0 %v2098, 16
  %v2118 = vpop.permute.xlu0 %2117
  %2119 = vrot.lane.b32.xlu0 %v2099, 16
  %v2120 = vpop.permute.xlu0 %2119
  %2121 = vrot.lane.b32.xlu0 %v2100, 16
  %v2122 = vpop.permute.xlu0 %2121
  %2123 = vrot.lane.b32.xlu0 %v2101, 16
  %v2124 = vpop.permute.xlu0 %2123
  %2125 = vrot.lane.b32.xlu0 %v2102, 16
  %v2126 = vpop.permute.xlu0 %2125
  %v2135 = vmul.f32 %v1960, %v2112
  %v2136 = vmul.f32 %v1962, %v2114
  %v2137 = vmul.f32 %v1964, %v2116
  %v2138 = vmul.f32 %v1966, %v2118
  %v2139 = vmul.f32 %v1968, %v2120
  %v2140 = vmul.f32 %v1970, %v2122
  %v2141 = vmul.f32 %v1972, %v2124
  %v2142 = vmul.f32 %v1974, %v2126
  %v2151 = vrot.slane %v2135, 5
  %v2152 = vrot.slane %v2136, 4
  %v2153 = vsel %vm465, %v2152, %v2151
  %v2154 = vrot.slane %v2137, 3
  %v2155 = vsel %vm468, %v2154, %v2153
  %v2156 = vrot.slane %v2138, 2
  %v2157 = vsel %vm471, %v2156, %v2155
  %v2158 = vrot.slane %v2139, 1
  %v2159 = vsel %vm474, %v2158, %v2157
  %v2160 = vsel %vm477, %v2140, %v2159
  %v2161 = vrot.slane %v2141, 7
  %v2162 = vsel %vm480, %v2161, %v2160
  %v2163 = vrot.slane %v2142, 6
  %v2164 = vsel %vm483, %v2163, %v2162
  %2165 = vrot.lane.b32.xlu0 %v2164, 104
  %v2166 = vpop.permute.xlu0 %2165
  %v2167 = vsel %vm166, %v2166, 0
  %2169 = vmatprep.subr.mxu0 0.0
  %2170 = vmatpush1.msra.mxu0 %v18
  %2171 = vmatprep.subr.mxu0 0.0
  %2172 = vmatpush1.msra.mxu0 0.0
  %2173 = vmatprep.subr.mxu0 0.0
  %2174 = vmatpush1.msra.mxu0 0.0
  %2175 = vmatprep.subr.mxu0 0.0
  %2176 = vmatpush1.msra.mxu0 0.0
  %2177 = vmatprep.subr.mxu0 0.0
  %2178 = vmatpush1.msra.mxu0 0.0
  %2179 = vmatprep.subr.mxu0 0.0
  %2180 = vmatpush1.msra.mxu0 0.0
  %2181 = vmatprep.subr.mxu0 0.0
  %2182 = vmatpush1.msra.mxu0 0.0
  %2183 = vmatprep.subr.mxu0 0.0
  %2184 = vmatpush1.msra.mxu0 0.0
  %2185 = vmatprep.subr.mxu0 0.0
  %2186 = vmatpush1.msra.mxu0 0.0
  %2187 = vmatprep.subr.mxu0 0.0
  %2188 = vmatpush1.msra.mxu0 0.0
  %2189 = vmatprep.subr.mxu0 0.0
  %2190 = vmatpush1.msra.mxu0 0.0
  %2191 = vmatprep.subr.mxu0 0.0
  %2192 = vmatpush1.msra.mxu0 0.0
  %2193 = vmatprep.subr.mxu0 0.0
  %2194 = vmatpush1.msra.mxu0 0.0
  %2195 = vmatprep.subr.mxu0 0.0
  %2196 = vmatpush1.msra.mxu0 0.0
  %2197 = vmatprep.subr.mxu0 0.0
  %2198 = vmatpush1.msra.mxu0 0.0
  %2199 = vmatprep.subr.mxu0 0.0
  %2200 = vmatpush1.msra.mxu0 0.0
  %2201 = vmatprep.subr.mxu0 0.0
  %2202 = vmatpush1.msra.mxu0 0.0
  %2203 = vmatprep.subr.mxu0 0.0
  %2204 = vmatpush1.msra.mxu0 0.0
  %2205 = vmatprep.subr.mxu0 0.0
  %2206 = vmatpush1.msra.mxu0 0.0
  %2207 = vmatprep.subr.mxu0 0.0
  %2208 = vmatpush1.msra.mxu0 0.0
  %2209 = vmatprep.subr.mxu0 0.0
  %2210 = vmatpush1.msra.mxu0 0.0
  %2211 = vmatprep.subr.mxu0 0.0
  %2212 = vmatpush1.msra.mxu0 0.0
  %2213 = vmatprep.subr.mxu0 0.0
  %2214 = vmatpush1.msra.mxu0 0.0
  %2215 = vmatprep.subr.mxu0 0.0
  %2216 = vmatpush1.msra.mxu0 0.0
  %2217 = vmatprep.subr.mxu0 0.0
  %2218 = vmatpush1.msra.mxu0 0.0
  %2219 = vmatprep.subr.mxu0 0.0
  %2220 = vmatpush1.msra.mxu0 0.0
  %2221 = vmatprep.subr.mxu0 0.0
  %2222 = vmatpush1.msra.mxu0 0.0
  %2223 = vmatprep.subr.mxu0 0.0
  %2224 = vmatpush1.msra.mxu0 0.0
  %2225 = vmatprep.subr.mxu0 0.0
  %2226 = vmatpush1.msra.mxu0 0.0
  %2227 = vmatprep.subr.mxu0 0.0
  %2228 = vmatpush1.msra.mxu0 0.0
  %2229 = vmatprep.subr.mxu0 0.0
  %2230 = vmatpush1.msra.mxu0 0.0
  %2231 = vmatprep.subr.mxu0 0.0
  %2232 = vmatpush1.msra.mxu0 0.0
  %2233 = vmatprep.mubr.f32.mxu0 0.0
  %2234 = vmatmul.mubr.f32.gmra.mrb[0].mxu0 %v2167
  %v2235 = vpop.f32.mrb[0].mxu0
  %v2236 = vadd.f32 0.0, %v2235
  %v2237 = vpop.f32.mrb[0].mxu0
  %2238 = vdwg.mxu0
  %v2240 = vrot.slane %v2236, 2
  %v2241 = vrot.slane %v2236, 3
  %v2242 = vrot.slane %v2236, 4
  %v2243 = vrot.slane %v2236, 5
  %v2244 = vrot.slane %v2236, 6
  %v2245 = vrot.slane %v2236, 7
  %v2246 = vrot.slane %v2236, 1
  %v2255 = vadd.f32 %v128, %v2240
  %v2256 = vadd.f32 %v133, %v2241
  %v2257 = vadd.f32 %v138, %v2242
  %v2258 = vadd.f32 %v143, %v2243
  %v2259 = vadd.f32 %v148, %v2244
  %v2260 = vadd.f32 %v153, %v2245
  %v2261 = vadd.f32 %v158, %v2236
  %v2262 = vadd.f32 %v163, %v2246
  %v2263 = vxor.u32 %v2255, 2147483648
  %v2264 = vxor.u32 %v2256, 2147483648
  %v2265 = vxor.u32 %v2257, 2147483648
  %v2266 = vxor.u32 %v2258, 2147483648
  %v2267 = vxor.u32 %v2259, 2147483648
  %v2268 = vxor.u32 %v2260, 2147483648
  %v2269 = vxor.u32 %v2261, 2147483648
  %v2270 = vxor.u32 %v2262, 2147483648
  %v2271 = vmul.f32 %v2263, 1.442695
  %v2272 = vpow.pop %v2271
  %v2273 = vmul.f32 %v2264, 1.442695
  %v2274 = vpow.pop %v2273
  %v2275 = vmul.f32 %v2265, 1.442695
  %v2276 = vpow.pop %v2275
  %v2277 = vmul.f32 %v2266, 1.442695
  %v2278 = vpow.pop %v2277
  %v2279 = vmul.f32 %v2267, 1.442695
  %v2280 = vpow.pop %v2279
  %v2281 = vmul.f32 %v2268, 1.442695
  %v2282 = vpow.pop %v2281
  %v2283 = vmul.f32 %v2269, 1.442695
  %v2284 = vpow.pop %v2283
  %v2285 = vmul.f32 %v2270, 1.442695
  %v2286 = vpow.pop %v2285
  %v2287 = vadd.f32 %v2272, 1.0
  %v2288 = vadd.f32 %v2274, 1.0
  %v2289 = vadd.f32 %v2276, 1.0
  %v2290 = vadd.f32 %v2278, 1.0
  %v2291 = vadd.f32 %v2280, 1.0
  %v2292 = vadd.f32 %v2282, 1.0
  %v2293 = vadd.f32 %v2284, 1.0
  %v2294 = vadd.f32 %v2286, 1.0
  %v2295 = vrcp.pop %v2287
  %v2296 = vmul.f32 1.0, %v2295
  %v2297 = vrcp.pop %v2288
  %v2298 = vmul.f32 1.0, %v2297
  %v2299 = vrcp.pop %v2289
  %v2300 = vmul.f32 1.0, %v2299
  %v2301 = vrcp.pop %v2290
  %v2302 = vmul.f32 1.0, %v2301
  %v2303 = vrcp.pop %v2291
  %v2304 = vmul.f32 1.0, %v2303
  %v2305 = vrcp.pop %v2292
  %v2306 = vmul.f32 1.0, %v2305
  %v2307 = vrcp.pop %v2293
  %v2308 = vmul.f32 1.0, %v2307
  %v2309 = vrcp.pop %v2294
  %v2310 = vmul.f32 1.0, %v2309
  %v2311 = vtanh.pop %v2255
  %v2312 = vtanh.pop %v2256
  %v2313 = vtanh.pop %v2257
  %v2314 = vtanh.pop %v2258
  %v2315 = vtanh.pop %v2259
  %v2316 = vtanh.pop %v2260
  %v2317 = vtanh.pop %v2261
  %v2318 = vtanh.pop %v2262
  %v2327 = vrot.slane %v2087, 7
  %v2328 = vrot.slane %v2088, 7
  %v2329 = vrot.slane %v2089, 7
  %v2330 = vrot.slane %v2090, 7
  %v2331 = vrot.slane %v2091, 7
  %v2332 = vrot.slane %v2092, 7
  %v2333 = vrot.slane %v2093, 7
  %v2334 = vrot.slane %v2094, 7
  %v2343 = vmul.f32 %v2296, %v2327
  %v2344 = vmul.f32 %v2298, %v2328
  %v2345 = vmul.f32 %v2300, %v2329
  %v2346 = vmul.f32 %v2302, %v2330
  %v2347 = vmul.f32 %v2304, %v2331
  %v2348 = vmul.f32 %v2306, %v2332
  %v2349 = vmul.f32 %v2308, %v2333
  %v2350 = vmul.f32 %v2310, %v2334
  %2359 = vrot.lane.b32.xlu0 %v2311, 112
  %v2360 = vpop.permute.xlu0 %2359
  %2361 = vrot.lane.b32.xlu0 %v2312, 112
  %v2362 = vpop.permute.xlu0 %2361
  %2363 = vrot.lane.b32.xlu0 %v2313, 112
  %v2364 = vpop.permute.xlu0 %2363
  %2365 = vrot.lane.b32.xlu0 %v2314, 112
  %v2366 = vpop.permute.xlu0 %2365
  %2367 = vrot.lane.b32.xlu0 %v2315, 112
  %v2368 = vpop.permute.xlu0 %2367
  %2369 = vrot.lane.b32.xlu0 %v2316, 112
  %v2370 = vpop.permute.xlu0 %2369
  %2371 = vrot.lane.b32.xlu0 %v2317, 112
  %v2372 = vpop.permute.xlu0 %2371
  %2373 = vrot.lane.b32.xlu0 %v2318, 112
  %v2374 = vpop.permute.xlu0 %2373
  %v2383 = vmul.f32 %v2296, %v2360
  %v2384 = vmul.f32 %v2298, %v2362
  %v2385 = vmul.f32 %v2300, %v2364
  %v2386 = vmul.f32 %v2302, %v2366
  %v2387 = vmul.f32 %v2304, %v2368
  %v2388 = vmul.f32 %v2306, %v2370
  %v2389 = vmul.f32 %v2308, %v2372
  %v2390 = vmul.f32 %v2310, %v2374
  %2399 = vrot.lane.b32.xlu0 %v2383, 8
  %v2400 = vpop.permute.xlu0 %2399
  %2401 = vrot.lane.b32.xlu0 %v2384, 8
  %v2402 = vpop.permute.xlu0 %2401
  %2403 = vrot.lane.b32.xlu0 %v2385, 8
  %v2404 = vpop.permute.xlu0 %2403
  %2405 = vrot.lane.b32.xlu0 %v2386, 8
  %v2406 = vpop.permute.xlu0 %2405
  %2407 = vrot.lane.b32.xlu0 %v2387, 8
  %v2408 = vpop.permute.xlu0 %2407
  %2409 = vrot.lane.b32.xlu0 %v2388, 8
  %v2410 = vpop.permute.xlu0 %2409
  %2411 = vrot.lane.b32.xlu0 %v2389, 8
  %v2412 = vpop.permute.xlu0 %2411
  %2413 = vrot.lane.b32.xlu0 %v2390, 8
  %v2414 = vpop.permute.xlu0 %2413
  %v2423 = vadd.f32 %v2343, %v2400
  %v2424 = vadd.f32 %v2344, %v2402
  %v2425 = vadd.f32 %v2345, %v2404
  %v2426 = vadd.f32 %v2346, %v2406
  %v2427 = vadd.f32 %v2347, %v2408
  %v2428 = vadd.f32 %v2348, %v2410
  %v2429 = vadd.f32 %v2349, %v2412
  %v2430 = vadd.f32 %v2350, %v2414
  %v2431 = vtanh.pop %v2423
  %v2432 = vtanh.pop %v2424
  %v2433 = vtanh.pop %v2425
  %v2434 = vtanh.pop %v2426
  %v2435 = vtanh.pop %v2427
  %v2436 = vtanh.pop %v2428
  %v2437 = vtanh.pop %v2429
  %v2438 = vtanh.pop %v2430
  %2447 = vrot.lane.b32.xlu0 %v2431, 16
  %v2448 = vpop.permute.xlu0 %2447
  %2449 = vrot.lane.b32.xlu0 %v2432, 16
  %v2450 = vpop.permute.xlu0 %2449
  %2451 = vrot.lane.b32.xlu0 %v2433, 16
  %v2452 = vpop.permute.xlu0 %2451
  %2453 = vrot.lane.b32.xlu0 %v2434, 16
  %v2454 = vpop.permute.xlu0 %2453
  %2455 = vrot.lane.b32.xlu0 %v2435, 16
  %v2456 = vpop.permute.xlu0 %2455
  %2457 = vrot.lane.b32.xlu0 %v2436, 16
  %v2458 = vpop.permute.xlu0 %2457
  %2459 = vrot.lane.b32.xlu0 %v2437, 16
  %v2460 = vpop.permute.xlu0 %2459
  %2461 = vrot.lane.b32.xlu0 %v2438, 16
  %v2462 = vpop.permute.xlu0 %2461
  %v2471 = vmul.f32 %v2296, %v2448
  %v2472 = vmul.f32 %v2298, %v2450
  %v2473 = vmul.f32 %v2300, %v2452
  %v2474 = vmul.f32 %v2302, %v2454
  %v2475 = vmul.f32 %v2304, %v2456
  %v2476 = vmul.f32 %v2306, %v2458
  %v2477 = vmul.f32 %v2308, %v2460
  %v2478 = vmul.f32 %v2310, %v2462
  %v2487 = vrot.slane %v2471, 6
  %v2488 = vrot.slane %v2472, 5
  %v2489 = vsel %vm465, %v2488, %v2487
  %v2490 = vrot.slane %v2473, 4
  %v2491 = vsel %vm468, %v2490, %v2489
  %v2492 = vrot.slane %v2474, 3
  %v2493 = vsel %vm471, %v2492, %v2491
  %v2494 = vrot.slane %v2475, 2
  %v2495 = vsel %vm474, %v2494, %v2493
  %v2496 = vrot.slane %v2476, 1
  %v2497 = vsel %vm477, %v2496, %v2495
  %v2498 = vsel %vm480, %v2477, %v2497
  %v2499 = vrot.slane %v2478, 7
  %v2500 = vsel %vm483, %v2499, %v2498
  %2501 = vrot.lane.b32.xlu0 %v2500, 104
  %v2502 = vpop.permute.xlu0 %2501
  %v2503 = vsel %vm166, %v2502, 0
  %2505 = vmatprep.subr.mxu0 0.0
  %2506 = vmatpush1.msra.mxu0 %v18
  %2507 = vmatprep.subr.mxu0 0.0
  %2508 = vmatpush1.msra.mxu0 0.0
  %2509 = vmatprep.subr.mxu0 0.0
  %2510 = vmatpush1.msra.mxu0 0.0
  %2511 = vmatprep.subr.mxu0 0.0
  %2512 = vmatpush1.msra.mxu0 0.0
  %2513 = vmatprep.subr.mxu0 0.0
  %2514 = vmatpush1.msra.mxu0 0.0
  %2515 = vmatprep.subr.mxu0 0.0
  %2516 = vmatpush1.msra.mxu0 0.0
  %2517 = vmatprep.subr.mxu0 0.0
  %2518 = vmatpush1.msra.mxu0 0.0
  %2519 = vmatprep.subr.mxu0 0.0
  %2520 = vmatpush1.msra.mxu0 0.0
  %2521 = vmatprep.subr.mxu0 0.0
  %2522 = vmatpush1.msra.mxu0 0.0
  %2523 = vmatprep.subr.mxu0 0.0
  %2524 = vmatpush1.msra.mxu0 0.0
  %2525 = vmatprep.subr.mxu0 0.0
  %2526 = vmatpush1.msra.mxu0 0.0
  %2527 = vmatprep.subr.mxu0 0.0
  %2528 = vmatpush1.msra.mxu0 0.0
  %2529 = vmatprep.subr.mxu0 0.0
  %2530 = vmatpush1.msra.mxu0 0.0
  %2531 = vmatprep.subr.mxu0 0.0
  %2532 = vmatpush1.msra.mxu0 0.0
  %2533 = vmatprep.subr.mxu0 0.0
  %2534 = vmatpush1.msra.mxu0 0.0
  %2535 = vmatprep.subr.mxu0 0.0
  %2536 = vmatpush1.msra.mxu0 0.0
  %2537 = vmatprep.subr.mxu0 0.0
  %2538 = vmatpush1.msra.mxu0 0.0
  %2539 = vmatprep.subr.mxu0 0.0
  %2540 = vmatpush1.msra.mxu0 0.0
  %2541 = vmatprep.subr.mxu0 0.0
  %2542 = vmatpush1.msra.mxu0 0.0
  %2543 = vmatprep.subr.mxu0 0.0
  %2544 = vmatpush1.msra.mxu0 0.0
  %2545 = vmatprep.subr.mxu0 0.0
  %2546 = vmatpush1.msra.mxu0 0.0
  %2547 = vmatprep.subr.mxu0 0.0
  %2548 = vmatpush1.msra.mxu0 0.0
  %2549 = vmatprep.subr.mxu0 0.0
  %2550 = vmatpush1.msra.mxu0 0.0
  %2551 = vmatprep.subr.mxu0 0.0
  %2552 = vmatpush1.msra.mxu0 0.0
  %2553 = vmatprep.subr.mxu0 0.0
  %2554 = vmatpush1.msra.mxu0 0.0
  %2555 = vmatprep.subr.mxu0 0.0
  %2556 = vmatpush1.msra.mxu0 0.0
  %2557 = vmatprep.subr.mxu0 0.0
  %2558 = vmatpush1.msra.mxu0 0.0
  %2559 = vmatprep.subr.mxu0 0.0
  %2560 = vmatpush1.msra.mxu0 0.0
  %2561 = vmatprep.subr.mxu0 0.0
  %2562 = vmatpush1.msra.mxu0 0.0
  %2563 = vmatprep.subr.mxu0 0.0
  %2564 = vmatpush1.msra.mxu0 0.0
  %2565 = vmatprep.subr.mxu0 0.0
  %2566 = vmatpush1.msra.mxu0 0.0
  %2567 = vmatprep.subr.mxu0 0.0
  %2568 = vmatpush1.msra.mxu0 0.0
  %2569 = vmatprep.mubr.f32.mxu0 0.0
  %2570 = vmatmul.mubr.f32.gmra.mrb[0].mxu0 %v2503
  %v2571 = vpop.f32.mrb[0].mxu0
  %v2572 = vadd.f32 0.0, %v2571
  %v2573 = vpop.f32.mrb[0].mxu0
  %2574 = vdwg.mxu0
  %v2576 = vrot.slane %v2572, 1
  %v2577 = vrot.slane %v2572, 2
  %v2578 = vrot.slane %v2572, 3
  %v2579 = vrot.slane %v2572, 4
  %v2580 = vrot.slane %v2572, 5
  %v2581 = vrot.slane %v2572, 6
  %v2582 = vrot.slane %v2572, 7
  %v2591 = vadd.f32 %v128, %v2576
  %v2592 = vadd.f32 %v133, %v2577
  %v2593 = vadd.f32 %v138, %v2578
  %v2594 = vadd.f32 %v143, %v2579
  %v2595 = vadd.f32 %v148, %v2580
  %v2596 = vadd.f32 %v153, %v2581
  %v2597 = vadd.f32 %v158, %v2582
  %v2598 = vadd.f32 %v163, %v2572
  %v2599 = vxor.u32 %v2591, 2147483648
  %v2600 = vxor.u32 %v2592, 2147483648
  %v2601 = vxor.u32 %v2593, 2147483648
  %v2602 = vxor.u32 %v2594, 2147483648
  %v2603 = vxor.u32 %v2595, 2147483648
  %v2604 = vxor.u32 %v2596, 2147483648
  %v2605 = vxor.u32 %v2597, 2147483648
  %v2606 = vxor.u32 %v2598, 2147483648
  %v2607 = vmul.f32 %v2599, 1.442695
  %v2608 = vpow.pop %v2607
  %v2609 = vmul.f32 %v2600, 1.442695
  %v2610 = vpow.pop %v2609
  %v2611 = vmul.f32 %v2601, 1.442695
  %v2612 = vpow.pop %v2611
  %v2613 = vmul.f32 %v2602, 1.442695
  %v2614 = vpow.pop %v2613
  %v2615 = vmul.f32 %v2603, 1.442695
  %v2616 = vpow.pop %v2615
  %v2617 = vmul.f32 %v2604, 1.442695
  %v2618 = vpow.pop %v2617
  %v2619 = vmul.f32 %v2605, 1.442695
  %v2620 = vpow.pop %v2619
  %v2621 = vmul.f32 %v2606, 1.442695
  %v2622 = vpow.pop %v2621
  %v2623 = vadd.f32 %v2608, 1.0
  %v2624 = vadd.f32 %v2610, 1.0
  %v2625 = vadd.f32 %v2612, 1.0
  %v2626 = vadd.f32 %v2614, 1.0
  %v2627 = vadd.f32 %v2616, 1.0
  %v2628 = vadd.f32 %v2618, 1.0
  %v2629 = vadd.f32 %v2620, 1.0
  %v2630 = vadd.f32 %v2622, 1.0
  %v2631 = vrcp.pop %v2623
  %v2632 = vmul.f32 1.0, %v2631
  %v2633 = vrcp.pop %v2624
  %v2634 = vmul.f32 1.0, %v2633
  %v2635 = vrcp.pop %v2625
  %v2636 = vmul.f32 1.0, %v2635
  %v2637 = vrcp.pop %v2626
  %v2638 = vmul.f32 1.0, %v2637
  %v2639 = vrcp.pop %v2627
  %v2640 = vmul.f32 1.0, %v2639
  %v2641 = vrcp.pop %v2628
  %v2642 = vmul.f32 1.0, %v2641
  %v2643 = vrcp.pop %v2629
  %v2644 = vmul.f32 1.0, %v2643
  %v2645 = vrcp.pop %v2630
  %v2646 = vmul.f32 1.0, %v2645
  %v2647 = vtanh.pop %v2591
  %v2648 = vtanh.pop %v2592
  %v2649 = vtanh.pop %v2593
  %v2650 = vtanh.pop %v2594
  %v2651 = vtanh.pop %v2595
  %v2652 = vtanh.pop %v2596
  %v2653 = vtanh.pop %v2597
  %v2654 = vtanh.pop %v2598
  %v2663 = vrot.slane %v2423, 7
  %v2664 = vrot.slane %v2424, 7
  %v2665 = vrot.slane %v2425, 7
  %v2666 = vrot.slane %v2426, 7
  %v2667 = vrot.slane %v2427, 7
  %v2668 = vrot.slane %v2428, 7
  %v2669 = vrot.slane %v2429, 7
  %v2670 = vrot.slane %v2430, 7
  %v2679 = vmul.f32 %v2632, %v2663
  %v2680 = vmul.f32 %v2634, %v2664
  %v2681 = vmul.f32 %v2636, %v2665
  %v2682 = vmul.f32 %v2638, %v2666
  %v2683 = vmul.f32 %v2640, %v2667
  %v2684 = vmul.f32 %v2642, %v2668
  %v2685 = vmul.f32 %v2644, %v2669
  %v2686 = vmul.f32 %v2646, %v2670
  %2695 = vrot.lane.b32.xlu0 %v2647, 112
  %v2696 = vpop.permute.xlu0 %2695
  %2697 = vrot.lane.b32.xlu0 %v2648, 112
  %v2698 = vpop.permute.xlu0 %2697
  %2699 = vrot.lane.b32.xlu0 %v2649, 112
  %v2700 = vpop.permute.xlu0 %2699
  %2701 = vrot.lane.b32.xlu0 %v2650, 112
  %v2702 = vpop.permute.xlu0 %2701
  %2703 = vrot.lane.b32.xlu0 %v2651, 112
  %v2704 = vpop.permute.xlu0 %2703
  %2705 = vrot.lane.b32.xlu0 %v2652, 112
  %v2706 = vpop.permute.xlu0 %2705
  %2707 = vrot.lane.b32.xlu0 %v2653, 112
  %v2708 = vpop.permute.xlu0 %2707
  %2709 = vrot.lane.b32.xlu0 %v2654, 112
  %v2710 = vpop.permute.xlu0 %2709
  %v2719 = vmul.f32 %v2632, %v2696
  %v2720 = vmul.f32 %v2634, %v2698
  %v2721 = vmul.f32 %v2636, %v2700
  %v2722 = vmul.f32 %v2638, %v2702
  %v2723 = vmul.f32 %v2640, %v2704
  %v2724 = vmul.f32 %v2642, %v2706
  %v2725 = vmul.f32 %v2644, %v2708
  %v2726 = vmul.f32 %v2646, %v2710
  %2735 = vrot.lane.b32.xlu0 %v2719, 8
  %v2736 = vpop.permute.xlu0 %2735
  %2737 = vrot.lane.b32.xlu0 %v2720, 8
  %v2738 = vpop.permute.xlu0 %2737
  %2739 = vrot.lane.b32.xlu0 %v2721, 8
  %v2740 = vpop.permute.xlu0 %2739
  %2741 = vrot.lane.b32.xlu0 %v2722, 8
  %v2742 = vpop.permute.xlu0 %2741
  %2743 = vrot.lane.b32.xlu0 %v2723, 8
  %v2744 = vpop.permute.xlu0 %2743
  %2745 = vrot.lane.b32.xlu0 %v2724, 8
  %v2746 = vpop.permute.xlu0 %2745
  %2747 = vrot.lane.b32.xlu0 %v2725, 8
  %v2748 = vpop.permute.xlu0 %2747
  %2749 = vrot.lane.b32.xlu0 %v2726, 8
  %v2750 = vpop.permute.xlu0 %2749
  %v2759 = vadd.f32 %v2679, %v2736
  %v2760 = vadd.f32 %v2680, %v2738
  %v2761 = vadd.f32 %v2681, %v2740
  %v2762 = vadd.f32 %v2682, %v2742
  %v2763 = vadd.f32 %v2683, %v2744
  %v2764 = vadd.f32 %v2684, %v2746
  %v2765 = vadd.f32 %v2685, %v2748
  %v2766 = vadd.f32 %v2686, %v2750
  %v2767 = vtanh.pop %v2759
  %v2768 = vtanh.pop %v2760
  %v2769 = vtanh.pop %v2761
  %v2770 = vtanh.pop %v2762
  %v2771 = vtanh.pop %v2763
  %v2772 = vtanh.pop %v2764
  %v2773 = vtanh.pop %v2765
  %v2774 = vtanh.pop %v2766
  %2783 = vrot.lane.b32.xlu0 %v2767, 16
  %v2784 = vpop.permute.xlu0 %2783
  %2785 = vrot.lane.b32.xlu0 %v2768, 16
  %v2786 = vpop.permute.xlu0 %2785
  %2787 = vrot.lane.b32.xlu0 %v2769, 16
  %v2788 = vpop.permute.xlu0 %2787
  %2789 = vrot.lane.b32.xlu0 %v2770, 16
  %v2790 = vpop.permute.xlu0 %2789
  %2791 = vrot.lane.b32.xlu0 %v2771, 16
  %v2792 = vpop.permute.xlu0 %2791
  %2793 = vrot.lane.b32.xlu0 %v2772, 16
  %v2794 = vpop.permute.xlu0 %2793
  %2795 = vrot.lane.b32.xlu0 %v2773, 16
  %v2796 = vpop.permute.xlu0 %2795
  %2797 = vrot.lane.b32.xlu0 %v2774, 16
  %v2798 = vpop.permute.xlu0 %2797
  %v2807 = vmul.f32 %v2632, %v2784
  %v2808 = vmul.f32 %v2634, %v2786
  %v2809 = vmul.f32 %v2636, %v2788
  %v2810 = vmul.f32 %v2638, %v2790
  %v2811 = vmul.f32 %v2640, %v2792
  %v2812 = vmul.f32 %v2642, %v2794
  %v2813 = vmul.f32 %v2644, %v2796
  %v2814 = vmul.f32 %v2646, %v2798
  %v2815 = vld [vmem:[%s3 + $0x18] sm:$0xff]
  %v2816 = vld [vmem:[%s3 + $0x20] sm:$0x1]
  %v2817 = vld [vmem:[%s3 + $0x28] sm:$0xff]
  %v2818 = vld [vmem:[%s3 + $0x30] sm:$0xff]
  %v2819 = vld [vmem:[%s3 + $0x38] sm:$0x1]
  %v2820 = vld [vmem:[%s3 + $0x40] sm:$0xff]
  %v2821 = vld [vmem:[%s3 + $0x48] sm:$0xff]
  %v2822 = vld [vmem:[%s3 + $0x50] sm:$0x1]
  %v2823 = vlaneseq
  %v2824 = vshrl.u32 %v2823, 7
  %v2825 = vsub.s32 0, %v2824
  %v2826 = vrot.slane %v2816, %v2825
  %v2835 = vrot.slane %v2807, 7
  %v2836 = vrot.slane %v2808, 6
  %v2837 = vsel %vm465, %v2836, %v2835
  %v2838 = vrot.slane %v2809, 5
  %v2839 = vsel %vm468, %v2838, %v2837
  %v2840 = vrot.slane %v2810, 4
  %v2841 = vsel %vm471, %v2840, %v2839
  %v2842 = vrot.slane %v2811, 3
  %v2843 = vsel %vm474, %v2842, %v2841
  %v2844 = vrot.slane %v2812, 2
  %v2845 = vsel %vm477, %v2844, %v2843
  %v2846 = vrot.slane %v2813, 1
  %v2847 = vsel %vm480, %v2846, %v2845
  %v2848 = vsel %vm483, %v2814, %v2847
  %2849 = vrot.lane.b32.xlu0 %v2848, 104
  %v2850 = vpop.permute.xlu0 %2849
  %v2851 = vsel %vm166, %v2850, 0
  %2853 = vmatprep.subr.mxu0 0.0
  %2854 = vmatpush1.msra.mxu0 %v2815
  %2855 = vmatprep.subr.mxu0 0.0
  %2856 = vmatpush1.msra.mxu0 0.0
  %2857 = vmatprep.subr.mxu0 0.0
  %2858 = vmatpush1.msra.mxu0 0.0
  %2859 = vmatprep.subr.mxu0 0.0
  %2860 = vmatpush1.msra.mxu0 0.0
  %2861 = vmatprep.subr.mxu0 0.0
  %2862 = vmatpush1.msra.mxu0 0.0
  %2863 = vmatprep.subr.mxu0 0.0
  %2864 = vmatpush1.msra.mxu0 0.0
  %2865 = vmatprep.subr.mxu0 0.0
  %2866 = vmatpush1.msra.mxu0 0.0
  %2867 = vmatprep.subr.mxu0 0.0
  %2868 = vmatpush1.msra.mxu0 0.0
  %2869 = vmatprep.subr.mxu0 0.0
  %2870 = vmatpush1.msra.mxu0 0.0
  %2871 = vmatprep.subr.mxu0 0.0
  %2872 = vmatpush1.msra.mxu0 0.0
  %2873 = vmatprep.subr.mxu0 0.0
  %2874 = vmatpush1.msra.mxu0 0.0
  %2875 = vmatprep.subr.mxu0 0.0
  %2876 = vmatpush1.msra.mxu0 0.0
  %2877 = vmatprep.subr.mxu0 0.0
  %2878 = vmatpush1.msra.mxu0 0.0
  %2879 = vmatprep.subr.mxu0 0.0
  %2880 = vmatpush1.msra.mxu0 0.0
  %2881 = vmatprep.subr.mxu0 0.0
  %2882 = vmatpush1.msra.mxu0 0.0
  %2883 = vmatprep.subr.mxu0 0.0
  %2884 = vmatpush1.msra.mxu0 0.0
  %2885 = vmatprep.subr.mxu0 0.0
  %2886 = vmatpush1.msra.mxu0 0.0
  %2887 = vmatprep.subr.mxu0 0.0
  %2888 = vmatpush1.msra.mxu0 0.0
  %2889 = vmatprep.subr.mxu0 0.0
  %2890 = vmatpush1.msra.mxu0 0.0
  %2891 = vmatprep.subr.mxu0 0.0
  %2892 = vmatpush1.msra.mxu0 0.0
  %2893 = vmatprep.subr.mxu0 0.0
  %2894 = vmatpush1.msra.mxu0 0.0
  %2895 = vmatprep.subr.mxu0 0.0
  %2896 = vmatpush1.msra.mxu0 0.0
  %2897 = vmatprep.subr.mxu0 0.0
  %2898 = vmatpush1.msra.mxu0 0.0
  %2899 = vmatprep.subr.mxu0 0.0
  %2900 = vmatpush1.msra.mxu0 0.0
  %2901 = vmatprep.subr.mxu0 0.0
  %2902 = vmatpush1.msra.mxu0 0.0
  %2903 = vmatprep.subr.mxu0 0.0
  %2904 = vmatpush1.msra.mxu0 0.0
  %2905 = vmatprep.subr.mxu0 0.0
  %2906 = vmatpush1.msra.mxu0 0.0
  %2907 = vmatprep.subr.mxu0 0.0
  %2908 = vmatpush1.msra.mxu0 0.0
  %2909 = vmatprep.subr.mxu0 0.0
  %2910 = vmatpush1.msra.mxu0 0.0
  %2911 = vmatprep.subr.mxu0 0.0
  %2912 = vmatpush1.msra.mxu0 0.0
  %2913 = vmatprep.subr.mxu0 0.0
  %2914 = vmatpush1.msra.mxu0 0.0
  %2915 = vmatprep.subr.mxu0 0.0
  %2916 = vmatpush1.msra.mxu0 0.0
  %2917 = vmatprep.mubr.f32.mxu0 0.0
  %2918 = vmatmul.mubr.f32.gmra.mrb[0].mxu0 %v2851
  %v2919 = vpop.f32.mrb[0].mxu0
  %v2920 = vadd.f32 %v2826, %v2919
  %v2921 = vpop.f32.mrb[0].mxu0
  %2922 = vdwg.mxu0
  %v2923 = vmax.f32 %v2920, 0.0
  %v2924 = vlaneseq
  %v2925 = vshrl.u32 %v2924, 7
  %v2926 = vsub.s32 0, %v2925
  %v2927 = vrot.slane %v2819, %v2926
  %vm2928 = vcmask 130048
  %v2930 = vsel %vm2928, %v2923, 0
  %2932 = vmatprep.subr.mxu0 0.0
  %2933 = vmatpush1.msra.mxu0 %v2817
  %2934 = vmatprep.subr.mxu0 0.0
  %2935 = vmatpush1.msra.mxu0 %v2818
  %2936 = vmatprep.subr.mxu0 0.0
  %2937 = vmatpush1.msra.mxu0 0.0
  %2938 = vmatprep.subr.mxu0 0.0
  %2939 = vmatpush1.msra.mxu0 0.0
  %2940 = vmatprep.subr.mxu0 0.0
  %2941 = vmatpush1.msra.mxu0 0.0
  %2942 = vmatprep.subr.mxu0 0.0
  %2943 = vmatpush1.msra.mxu0 0.0
  %2944 = vmatprep.subr.mxu0 0.0
  %2945 = vmatpush1.msra.mxu0 0.0
  %2946 = vmatprep.subr.mxu0 0.0
  %2947 = vmatpush1.msra.mxu0 0.0
  %2948 = vmatprep.subr.mxu0 0.0
  %2949 = vmatpush1.msra.mxu0 0.0
  %2950 = vmatprep.subr.mxu0 0.0
  %2951 = vmatpush1.msra.mxu0 0.0
  %2952 = vmatprep.subr.mxu0 0.0
  %2953 = vmatpush1.msra.mxu0 0.0
  %2954 = vmatprep.subr.mxu0 0.0
  %2955 = vmatpush1.msra.mxu0 0.0
  %2956 = vmatprep.subr.mxu0 0.0
  %2957 = vmatpush1.msra.mxu0 0.0
  %2958 = vmatprep.subr.mxu0 0.0
  %2959 = vmatpush1.msra.mxu0 0.0
  %2960 = vmatprep.subr.mxu0 0.0
  %2961 = vmatpush1.msra.mxu0 0.0
  %2962 = vmatprep.subr.mxu0 0.0
  %2963 = vmatpush1.msra.mxu0 0.0
  %2964 = vmatprep.subr.mxu0 0.0
  %2965 = vmatpush1.msra.mxu0 0.0
  %2966 = vmatprep.subr.mxu0 0.0
  %2967 = vmatpush1.msra.mxu0 0.0
  %2968 = vmatprep.subr.mxu0 0.0
  %2969 = vmatpush1.msra.mxu0 0.0
  %2970 = vmatprep.subr.mxu0 0.0
  %2971 = vmatpush1.msra.mxu0 0.0
  %2972 = vmatprep.subr.mxu0 0.0
  %2973 = vmatpush1.msra.mxu0 0.0
  %2974 = vmatprep.subr.mxu0 0.0
  %2975 = vmatpush1.msra.mxu0 0.0
  %2976 = vmatprep.subr.mxu0 0.0
  %2977 = vmatpush1.msra.mxu0 0.0
  %2978 = vmatprep.subr.mxu0 0.0
  %2979 = vmatpush1.msra.mxu0 0.0
  %2980 = vmatprep.subr.mxu0 0.0
  %2981 = vmatpush1.msra.mxu0 0.0
  %2982 = vmatprep.subr.mxu0 0.0
  %2983 = vmatpush1.msra.mxu0 0.0
  %2984 = vmatprep.subr.mxu0 0.0
  %2985 = vmatpush1.msra.mxu0 0.0
  %2986 = vmatprep.subr.mxu0 0.0
  %2987 = vmatpush1.msra.mxu0 0.0
  %2988 = vmatprep.subr.mxu0 0.0
  %2989 = vmatpush1.msra.mxu0 0.0
  %2990 = vmatprep.subr.mxu0 0.0
  %2991 = vmatpush1.msra.mxu0 0.0
  %2992 = vmatprep.subr.mxu0 0.0
  %2993 = vmatpush1.msra.mxu0 0.0
  %2994 = vmatprep.subr.mxu0 0.0
  %2995 = vmatpush1.msra.mxu0 0.0
  %2996 = vmatprep.mubr.f32.mxu0 0.0
  %2997 = vmatmul.mubr.f32.gmra.mrb[0].mxu0 %v2930
  %v2998 = vpop.f32.mrb[0].mxu0
  %v2999 = vadd.f32 %v2927, %v2998
  %v3000 = vpop.f32.mrb[0].mxu0
  %3001 = vdwg.mxu0
  %v3002 = vmax.f32 %v2999, 0.0
  %v3003 = vlaneseq
  %v3004 = vshrl.u32 %v3003, 7
  %v3005 = vsub.s32 0, %v3004
  %v3006 = vrot.slane %v2822, %v3005
  %v3008 = vsel %vm2928, %v3002, 0
  %3010 = vmatprep.subr.mxu0 0.0
  %3011 = vmatpush1.msra.mxu0 %v2820
  %3012 = vmatprep.subr.mxu0 0.0
  %3013 = vmatpush1.msra.mxu0 %v2821
  %3014 = vmatprep.subr.mxu0 0.0
  %3015 = vmatpush1.msra.mxu0 0.0
  %3016 = vmatprep.subr.mxu0 0.0
  %3017 = vmatpush1.msra.mxu0 0.0
  %3018 = vmatprep.subr.mxu0 0.0
  %3019 = vmatpush1.msra.mxu0 0.0
  %3020 = vmatprep.subr.mxu0 0.0
  %3021 = vmatpush1.msra.mxu0 0.0
  %3022 = vmatprep.subr.mxu0 0.0
  %3023 = vmatpush1.msra.mxu0 0.0
  %3024 = vmatprep.subr.mxu0 0.0
  %3025 = vmatpush1.msra.mxu0 0.0
  %3026 = vmatprep.subr.mxu0 0.0
  %3027 = vmatpush1.msra.mxu0 0.0
  %3028 = vmatprep.subr.mxu0 0.0
  %3029 = vmatpush1.msra.mxu0 0.0
  %3030 = vmatprep.subr.mxu0 0.0
  %3031 = vmatpush1.msra.mxu0 0.0
  %3032 = vmatprep.subr.mxu0 0.0
  %3033 = vmatpush1.msra.mxu0 0.0
  %3034 = vmatprep.subr.mxu0 0.0
  %3035 = vmatpush1.msra.mxu0 0.0
  %3036 = vmatprep.subr.mxu0 0.0
  %3037 = vmatpush1.msra.mxu0 0.0
  %3038 = vmatprep.subr.mxu0 0.0
  %3039 = vmatpush1.msra.mxu0 0.0
  %3040 = vmatprep.subr.mxu0 0.0
  %3041 = vmatpush1.msra.mxu0 0.0
  %3042 = vmatprep.subr.mxu0 0.0
  %3043 = vmatpush1.msra.mxu0 0.0
  %3044 = vmatprep.subr.mxu0 0.0
  %3045 = vmatpush1.msra.mxu0 0.0
  %3046 = vmatprep.subr.mxu0 0.0
  %3047 = vmatpush1.msra.mxu0 0.0
  %3048 = vmatprep.subr.mxu0 0.0
  %3049 = vmatpush1.msra.mxu0 0.0
  %3050 = vmatprep.subr.mxu0 0.0
  %3051 = vmatpush1.msra.mxu0 0.0
  %3052 = vmatprep.subr.mxu0 0.0
  %3053 = vmatpush1.msra.mxu0 0.0
  %3054 = vmatprep.subr.mxu0 0.0
  %3055 = vmatpush1.msra.mxu0 0.0
  %3056 = vmatprep.subr.mxu0 0.0
  %3057 = vmatpush1.msra.mxu0 0.0
  %3058 = vmatprep.subr.mxu0 0.0
  %3059 = vmatpush1.msra.mxu0 0.0
  %3060 = vmatprep.subr.mxu0 0.0
  %3061 = vmatpush1.msra.mxu0 0.0
  %3062 = vmatprep.subr.mxu0 0.0
  %3063 = vmatpush1.msra.mxu0 0.0
  %3064 = vmatprep.subr.mxu0 0.0
  %3065 = vmatpush1.msra.mxu0 0.0
  %3066 = vmatprep.subr.mxu0 0.0
  %3067 = vmatpush1.msra.mxu0 0.0
  %3068 = vmatprep.subr.mxu0 0.0
  %3069 = vmatpush1.msra.mxu0 0.0
  %3070 = vmatprep.subr.mxu0 0.0
  %3071 = vmatpush1.msra.mxu0 0.0
  %3072 = vmatprep.subr.mxu0 0.0
  %3073 = vmatpush1.msra.mxu0 0.0
  %3074 = vmatprep.mubr.f32.mxu0 0.0
  %3075 = vmatmul.mubr.f32.gmra.mrb[0].mxu0 %v3008
  %v3076 = vpop.f32.mrb[0].mxu0
  %v3077 = vadd.f32 %v3006, %v3076
  %v3078 = vpop.f32.mrb[0].mxu0
  %3079 = vdwg.mxu0
  %v3080 = vld [vmem:[%s1] sm:$0xff]
  %v3081 = vld [vmem:[%s3 + $0x58] sm:$0xff]
  %v3082 = vld [vmem:[%s3 + $0x60] sm:$0x3]
  %v3083 = vld [vmem:[%s2] sm:$0x3f]
  %v3084 = vld [vmem:[%s2 + $0x8] sm:$0x3f]
  %v3085 = vld [vmem:[%s2 + $0x10] sm:$0x3f]
  %v3086 = vld [vmem:[%s2 + $0x18] sm:$0x3f]
  %v3087 = vld [vmem:[%s2 + $0x20] sm:$0x3f]
  %v3088 = vld [vmem:[%s2 + $0x28] sm:$0x3f]
  %v3089 = vld [vmem:[%s2 + $0x30] sm:$0x3f]
  %v3090 = vld [vmem:[%s2 + $0x38] sm:$0x3f]
  %v3099 = vcombine.high %v3083, %v3083
  %v3101 = vunpack.c.l.s4 1983009808
  %v3102 = vunpack.c.0.s8 %v3101
  %v3103 = vlaneseq
  %v3104 = vshrl.u32 %v3103, 7
  %v3105 = vsub.s32 %v3102, %v3104
  %v3106 = vrot.slane %v3083, %v3105
  %v3108 = vunpack.c.l.s4 1983009808
  %v3109 = vunpack.c.0.s8 %v3108
  %v3110 = vlaneseq
  %v3111 = vshrl.u32 %v3110, 7
  %v3112 = vsub.s32 %v3109, %v3111
  %v3113 = vrot.slane %v3099, %v3112
  %v3114 = vcombine.high %v3106, %v3106
  %v3115 = vcombine.high %v3084, %v3084
  %v3117 = vunpack.c.l.s4 1983009808
  %v3118 = vunpack.c.0.s8 %v3117
  %v3119 = vlaneseq
  %v3120 = vshrl.u32 %v3119, 7
  %v3121 = vsub.s32 %v3118, %v3120
  %v3122 = vrot.slane %v3084, %v3121
  %v3124 = vunpack.c.l.s4 1983009808
  %v3125 = vunpack.c.0.s8 %v3124
  %v3126 = vlaneseq
  %v3127 = vshrl.u32 %v3126, 7
  %v3128 = vsub.s32 %v3125, %v3127
  %v3129 = vrot.slane %v3115, %v3128
  %v3130 = vcombine.high %v3122, %v3122
  %v3131 = vcombine.high %v3085, %v3085
  %v3133 = vunpack.c.l.s4 1983009808
  %v3134 = vunpack.c.0.s8 %v3133
  %v3135 = vlaneseq
  %v3136 = vshrl.u32 %v3135, 7
  %v3137 = vsub.s32 %v3134, %v3136
  %v3138 = vrot.slane %v3085, %v3137
  %v3140 = vunpack.c.l.s4 1983009808
  %v3141 = vunpack.c.0.s8 %v3140
  %v3142 = vlaneseq
  %v3143 = vshrl.u32 %v3142, 7
  %v3144 = vsub.s32 %v3141, %v3143
  %v3145 = vrot.slane %v3131, %v3144
  %v3146 = vcombine.high %v3138, %v3138
  %v3147 = vcombine.high %v3086, %v3086
  %v3149 = vunpack.c.l.s4 1983009808
  %v3150 = vunpack.c.0.s8 %v3149
  %v3151 = vlaneseq
  %v3152 = vshrl.u32 %v3151, 7
  %v3153 = vsub.s32 %v3150, %v3152
  %v3154 = vrot.slane %v3086, %v3153
  %v3156 = vunpack.c.l.s4 1983009808
  %v3157 = vunpack.c.0.s8 %v3156
  %v3158 = vlaneseq
  %v3159 = vshrl.u32 %v3158, 7
  %v3160 = vsub.s32 %v3157, %v3159
  %v3161 = vrot.slane %v3147, %v3160
  %v3162 = vcombine.high %v3154, %v3154
  %v3163 = vcombine.high %v3087, %v3087
  %v3165 = vunpack.c.l.s4 1983009808
  %v3166 = vunpack.c.0.s8 %v3165
  %v3167 = vlaneseq
  %v3168 = vshrl.u32 %v3167, 7
  %v3169 = vsub.s32 %v3166, %v3168
  %v3170 = vrot.slane %v3087, %v3169
  %v3172 = vunpack.c.l.s4 1983009808
  %v3173 = vunpack.c.0.s8 %v3172
  %v3174 = vlaneseq
  %v3175 = vshrl.u32 %v3174, 7
  %v3176 = vsub.s32 %v3173, %v3175
  %v3177 = vrot.slane %v3163, %v3176
  %v3178 = vcombine.high %v3170, %v3170
  %v3179 = vcombine.high %v3088, %v3088
  %v3181 = vunpack.c.l.s4 1983009808
  %v3182 = vunpack.c.0.s8 %v3181
  %v3183 = vlaneseq
  %v3184 = vshrl.u32 %v3183, 7
  %v3185 = vsub.s32 %v3182, %v3184
  %v3186 = vrot.slane %v3088, %v3185
  %v3188 = vunpack.c.l.s4 1983009808
  %v3189 = vunpack.c.0.s8 %v3188
  %v3190 = vlaneseq
  %v3191 = vshrl.u32 %v3190, 7
  %v3192 = vsub.s32 %v3189, %v3191
  %v3193 = vrot.slane %v3179, %v3192
  %v3194 = vcombine.high %v3186, %v3186
  %v3195 = vcombine.high %v3089, %v3089
  %v3197 = vunpack.c.l.s4 1983009808
  %v3198 = vunpack.c.0.s8 %v3197
  %v3199 = vlaneseq
  %v3200 = vshrl.u32 %v3199, 7
  %v3201 = vsub.s32 %v3198, %v3200
  %v3202 = vrot.slane %v3089, %v3201
  %v3204 = vunpack.c.l.s4 1983009808
  %v3205 = vunpack.c.0.s8 %v3204
  %v3206 = vlaneseq
  %v3207 = vshrl.u32 %v3206, 7
  %v3208 = vsub.s32 %v3205, %v3207
  %v3209 = vrot.slane %v3195, %v3208
  %v3210 = vcombine.high %v3202, %v3202
  %v3211 = vcombine.high %v3090, %v3090
  %v3213 = vunpack.c.l.s4 1983009808
  %v3214 = vunpack.c.0.s8 %v3213
  %v3215 = vlaneseq
  %v3216 = vshrl.u32 %v3215, 7
  %v3217 = vsub.s32 %v3214, %v3216
  %v3218 = vrot.slane %v3090, %v3217
  %v3220 = vunpack.c.l.s4 1983009808
  %v3221 = vunpack.c.0.s8 %v3220
  %v3222 = vlaneseq
  %v3223 = vshrl.u32 %v3222, 7
  %v3224 = vsub.s32 %v3221, %v3223
  %v3225 = vrot.slane %v3211, %v3224
  %v3226 = vcombine.high %v3218, %v3218
  %v3227 = vcombine.low %v3106, %v3114
  %v3228 = vcombine.low %v3113, %v3122
  %v3230 = vunpack.c.l.s4 1983009808
  %v3231 = vunpack.c.0.s8 %v3230
  %v3232 = vlaneseq
  %v3233 = vshrl.u32 %v3232, 7
  %v3234 = vsub.s32 %v3231, %v3233
  %v3235 = vrot.slane %v3227, %v3234
  %v3237 = vunpack.c.l.s4 1983009808
  %v3238 = vunpack.c.0.s8 %v3237
  %v3239 = vlaneseq
  %v3240 = vshrl.u32 %v3239, 7
  %v3241 = vsub.s32 %v3238, %v3240
  %v3242 = vrot.slane %v3228, %v3241
  %v3243 = vcombine.low %v3235, %v3242
  %v3244 = vcombine.low %v3130, %v3129
  %v3245 = vcombine.low %v3138, %v3146
  %v3247 = vunpack.c.l.s4 1983009808
  %v3248 = vunpack.c.0.s8 %v3247
  %v3249 = vlaneseq
  %v3250 = vshrl.u32 %v3249, 7
  %v3251 = vsub.s32 %v3248, %v3250
  %v3252 = vrot.slane %v3244, %v3251
  %v3254 = vunpack.c.l.s4 1983009808
  %v3255 = vunpack.c.0.s8 %v3254
  %v3256 = vlaneseq
  %v3257 = vshrl.u32 %v3256, 7
  %v3258 = vsub.s32 %v3255, %v3257
  %v3259 = vrot.slane %v3245, %v3258
  %v3260 = vcombine.low %v3252, %v3259
  %v3261 = vcombine.low %v3145, %v3154
  %v3262 = vcombine.low %v3162, %v3161
  %v3264 = vunpack.c.l.s4 1983009808
  %v3265 = vunpack.c.0.s8 %v3264
  %v3266 = vlaneseq
  %v3267 = vshrl.u32 %v3266, 7
  %v3268 = vsub.s32 %v3265, %v3267
  %v3269 = vrot.slane %v3261, %v3268
  %v3271 = vunpack.c.l.s4 1983009808
  %v3272 = vunpack.c.0.s8 %v3271
  %v3273 = vlaneseq
  %v3274 = vshrl.u32 %v3273, 7
  %v3275 = vsub.s32 %v3272, %v3274
  %v3276 = vrot.slane %v3262, %v3275
  %v3277 = vcombine.low %v3269, %v3276
  %v3278 = vcombine.low %v3170, %v3178
  %v3279 = vcombine.low %v3177, %v3186
  %v3281 = vunpack.c.l.s4 1983009808
  %v3282 = vunpack.c.0.s8 %v3281
  %v3283 = vlaneseq
  %v3284 = vshrl.u32 %v3283, 7
  %v3285 = vsub.s32 %v3282, %v3284
  %v3286 = vrot.slane %v3278, %v3285
  %v3288 = vunpack.c.l.s4 1983009808
  %v3289 = vunpack.c.0.s8 %v3288
  %v3290 = vlaneseq
  %v3291 = vshrl.u32 %v3290, 7
  %v3292 = vsub.s32 %v3289, %v3291
  %v3293 = vrot.slane %v3279, %v3292
  %v3294 = vcombine.low %v3286, %v3293
  %v3295 = vcombine.low %v3194, %v3193
  %v3296 = vcombine.low %v3202, %v3210
  %v3298 = vunpack.c.l.s4 1983009808
  %v3299 = vunpack.c.0.s8 %v3298
  %v3300 = vlaneseq
  %v3301 = vshrl.u32 %v3300, 7
  %v3302 = vsub.s32 %v3299, %v3301
  %v3303 = vrot.slane %v3295, %v3302
  %v3305 = vunpack.c.l.s4 1983009808
  %v3306 = vunpack.c.0.s8 %v3305
  %v3307 = vlaneseq
  %v3308 = vshrl.u32 %v3307, 7
  %v3309 = vsub.s32 %v3306, %v3308
  %v3310 = vrot.slane %v3296, %v3309
  %v3311 = vcombine.low %v3303, %v3310
  %v3312 = vcombine.low %v3209, %v3218
  %v3313 = vcombine.low %v3226, %v3225
  %v3315 = vunpack.c.l.s4 1983009808
  %v3316 = vunpack.c.0.s8 %v3315
  %v3317 = vlaneseq
  %v3318 = vshrl.u32 %v3317, 7
  %v3319 = vsub.s32 %v3316, %v3318
  %v3320 = vrot.slane %v3312, %v3319
  %v3322 = vunpack.c.l.s4 1983009808
  %v3323 = vunpack.c.0.s8 %v3322
  %v3324 = vlaneseq
  %v3325 = vshrl.u32 %v3324, 7
  %v3326 = vsub.s32 %v3323, %v3325
  %v3327 = vrot.slane %v3313, %v3326
  %v3328 = vcombine.low %v3320, %v3327
  %3329 = vrot.lane.b32.xlu0 %v3243, 126
  %v3330 = vpop.permute.xlu0 %3329
  %3331 = vrot.lane.b32.xlu0 %v3260, 126
  %v3332 = vpop.permute.xlu0 %3331
  %3333 = vrot.lane.b32.xlu0 %v3277, 126
  %v3334 = vpop.permute.xlu0 %3333
  %3335 = vrot.lane.b32.xlu0 %v3294, 126
  %v3336 = vpop.permute.xlu0 %3335
  %3337 = vrot.lane.b32.xlu0 %v3311, 126
  %v3338 = vpop.permute.xlu0 %3337
  %3339 = vrot.lane.b32.xlu0 %v3328, 126
  %v3340 = vpop.permute.xlu0 %3339
  %vm3341 = vcmask 15360
  %v3342 = vsel %vm3341, %v3330, 0
  %v3344 = vsel %vm3341, %v3332, 0
  %v3346 = vsel %vm3341, %v3334, 0
  %v3348 = vsel %vm3341, %v3336, 0
  %v3350 = vsel %vm3341, %v3338, 0
  %v3352 = vsel %vm3341, %v3340, 0
  %vm3354 = vcmask 1041408
  %v3356 = vsel %vm3354, %v3082, 0
  %3358 = vmatprep.subr.mxu0 0.0
  %3359 = vmatpush1.msra.mxu0 %v3356
  %3360 = vmatprep.subr.mxu0 0.0
  %3361 = vmatpush1.msra.mxu0 0.0
  %3362 = vmatprep.subr.mxu0 0.0
  %3363 = vmatpush1.msra.mxu0 0.0
  %3364 = vmatprep.subr.mxu0 0.0
  %3365 = vmatpush1.msra.mxu0 0.0
  %3366 = vmatprep.subr.mxu0 0.0
  %3367 = vmatpush1.msra.mxu0 0.0
  %3368 = vmatprep.subr.mxu0 0.0
  %3369 = vmatpush1.msra.mxu0 0.0
  %3370 = vmatprep.subr.mxu0 0.0
  %3371 = vmatpush1.msra.mxu0 0.0
  %3372 = vmatprep.subr.mxu0 0.0
  %3373 = vmatpush1.msra.mxu0 0.0
  %3374 = vmatprep.subr.mxu0 0.0
  %3375 = vmatpush1.msra.mxu0 0.0
  %3376 = vmatprep.subr.mxu0 0.0
  %3377 = vmatpush1.msra.mxu0 0.0
  %3378 = vmatprep.subr.mxu0 0.0
  %3379 = vmatpush1.msra.mxu0 0.0
  %3380 = vmatprep.subr.mxu0 0.0
  %3381 = vmatpush1.msra.mxu0 0.0
  %3382 = vmatprep.subr.mxu0 0.0
  %3383 = vmatpush1.msra.mxu0 0.0
  %3384 = vmatprep.subr.mxu0 0.0
  %3385 = vmatpush1.msra.mxu0 0.0
  %3386 = vmatprep.subr.mxu0 0.0
  %3387 = vmatpush1.msra.mxu0 0.0
  %3388 = vmatprep.subr.mxu0 0.0
  %3389 = vmatpush1.msra.mxu0 0.0
  %3390 = vmatprep.subr.mxu0 0.0
  %3391 = vmatpush1.msra.mxu0 0.0
  %3392 = vmatprep.subr.mxu0 0.0
  %3393 = vmatpush1.msra.mxu0 0.0
  %3394 = vmatprep.subr.mxu0 0.0
  %3395 = vmatpush1.msra.mxu0 0.0
  %3396 = vmatprep.subr.mxu0 0.0
  %3397 = vmatpush1.msra.mxu0 0.0
  %3398 = vmatprep.subr.mxu0 0.0
  %3399 = vmatpush1.msra.mxu0 0.0
  %3400 = vmatprep.subr.mxu0 0.0
  %3401 = vmatpush1.msra.mxu0 0.0
  %3402 = vmatprep.subr.mxu0 0.0
  %3403 = vmatpush1.msra.mxu0 0.0
  %3404 = vmatprep.subr.mxu0 0.0
  %3405 = vmatpush1.msra.mxu0 0.0
  %3406 = vmatprep.subr.mxu0 0.0
  %3407 = vmatpush1.msra.mxu0 0.0
  %3408 = vmatprep.subr.mxu0 0.0
  %3409 = vmatpush1.msra.mxu0 0.0
  %3410 = vmatprep.subr.mxu0 0.0
  %3411 = vmatpush1.msra.mxu0 0.0
  %3412 = vmatprep.subr.mxu0 0.0
  %3413 = vmatpush1.msra.mxu0 0.0
  %3414 = vmatprep.subr.mxu0 0.0
  %3415 = vmatpush1.msra.mxu0 0.0
  %3416 = vmatprep.subr.mxu0 0.0
  %3417 = vmatpush1.msra.mxu0 0.0
  %3418 = vmatprep.subr.mxu0 0.0
  %3419 = vmatpush1.msra.mxu0 0.0
  %3420 = vmatprep.subr.mxu0 0.0
  %3421 = vmatpush1.msra.mxu0 0.0
  %3422 = vmatprep.mubr.f32.mxu0 0.0
  %3423 = vmatmul.mubr.f32.gmra.mrb[0].mxu0 %v3342
  %v3424 = vpop.f32.mrb[0].mxu0
  %v3425 = vadd.f32 0.0, %v3424
  %v3426 = vpop.f32.mrb[0].mxu0
  %3427 = vmatprep.mubr.f32.mxu0 0.0
  %3428 = vmatmul.mubr.f32.gmra.mrb[0].mxu0 %v3344
  %v3429 = vpop.f32.mrb[0].mxu0
  %v3430 = vadd.f32 0.0, %v3429
  %v3431 = vpop.f32.mrb[0].mxu0
  %3432 = vmatprep.mubr.f32.mxu0 0.0
  %3433 = vmatmul.mubr.f32.gmra.mrb[0].mxu0 %v3346
  %v3434 = vpop.f32.mrb[0].mxu0
  %v3435 = vadd.f32 0.0, %v3434
  %v3436 = vpop.f32.mrb[0].mxu0
  %3437 = vmatprep.mubr.f32.mxu0 0.0
  %3438 = vmatmul.mubr.f32.gmra.mrb[0].mxu0 %v3348
  %v3439 = vpop.f32.mrb[0].mxu0
  %v3440 = vadd.f32 0.0, %v3439
  %v3441 = vpop.f32.mrb[0].mxu0
  %3442 = vmatprep.mubr.f32.mxu0 0.0
  %3443 = vmatmul.mubr.f32.gmra.mrb[0].mxu0 %v3350
  %v3444 = vpop.f32.mrb[0].mxu0
  %v3445 = vadd.f32 0.0, %v3444
  %v3446 = vpop.f32.mrb[0].mxu0
  %3447 = vmatprep.mubr.f32.mxu0 0.0
  %3448 = vmatmul.mubr.f32.gmra.mrb[0].mxu0 %v3352
  %v3449 = vpop.f32.mrb[0].mxu0
  %v3450 = vadd.f32 0.0, %v3449
  %v3451 = vpop.f32.mrb[0].mxu0
  %3452 = vdwg.mxu0
  %v3459 = vcombine.high %v3425, %v3425
  %v3461 = vunpack.c.l.s4 1983009808
  %v3462 = vunpack.c.0.s8 %v3461
  %v3463 = vlaneseq
  %v3464 = vshrl.u32 %v3463, 7
  %v3465 = vsub.s32 %v3462, %v3464
  %v3466 = vrot.slane %v3425, %v3465
  %v3468 = vunpack.c.l.s4 1983009808
  %v3469 = vunpack.c.0.s8 %v3468
  %v3470 = vlaneseq
  %v3471 = vshrl.u32 %v3470, 7
  %v3472 = vsub.s32 %v3469, %v3471
  %v3473 = vrot.slane %v3459, %v3472
  %v3474 = vcombine.high %v3466, %v3466
  %v3475 = vcombine.high %v3473, %v3473
  %v3476 = vcombine.high %v3430, %v3430
  %v3478 = vunpack.c.l.s4 1983009808
  %v3479 = vunpack.c.0.s8 %v3478
  %v3480 = vlaneseq
  %v3481 = vshrl.u32 %v3480, 7
  %v3482 = vsub.s32 %v3479, %v3481
  %v3483 = vrot.slane %v3430, %v3482
  %v3485 = vunpack.c.l.s4 1983009808
  %v3486 = vunpack.c.0.s8 %v3485
  %v3487 = vlaneseq
  %v3488 = vshrl.u32 %v3487, 7
  %v3489 = vsub.s32 %v3486, %v3488
  %v3490 = vrot.slane %v3476, %v3489
  %v3491 = vcombine.high %v3483, %v3483
  %v3492 = vcombine.high %v3490, %v3490
  %v3493 = vcombine.high %v3435, %v3435
  %v3495 = vunpack.c.l.s4 1983009808
  %v3496 = vunpack.c.0.s8 %v3495
  %v3497 = vlaneseq
  %v3498 = vshrl.u32 %v3497, 7
  %v3499 = vsub.s32 %v3496, %v3498
  %v3500 = vrot.slane %v3435, %v3499
  %v3502 = vunpack.c.l.s4 1983009808
  %v3503 = vunpack.c.0.s8 %v3502
  %v3504 = vlaneseq
  %v3505 = vshrl.u32 %v3504, 7
  %v3506 = vsub.s32 %v3503, %v3505
  %v3507 = vrot.slane %v3493, %v3506
  %v3508 = vcombine.high %v3500, %v3500
  %v3509 = vcombine.high %v3507, %v3507
  %v3510 = vcombine.high %v3440, %v3440
  %v3512 = vunpack.c.l.s4 1983009808
  %v3513 = vunpack.c.0.s8 %v3512
  %v3514 = vlaneseq
  %v3515 = vshrl.u32 %v3514, 7
  %v3516 = vsub.s32 %v3513, %v3515
  %v3517 = vrot.slane %v3440, %v3516
  %v3519 = vunpack.c.l.s4 1983009808
  %v3520 = vunpack.c.0.s8 %v3519
  %v3521 = vlaneseq
  %v3522 = vshrl.u32 %v3521, 7
  %v3523 = vsub.s32 %v3520, %v3522
  %v3524 = vrot.slane %v3510, %v3523
  %v3525 = vcombine.high %v3517, %v3517
  %v3526 = vcombine.high %v3524, %v3524
  %v3527 = vcombine.high %v3445, %v3445
  %v3529 = vunpack.c.l.s4 1983009808
  %v3530 = vunpack.c.0.s8 %v3529
  %v3531 = vlaneseq
  %v3532 = vshrl.u32 %v3531, 7
  %v3533 = vsub.s32 %v3530, %v3532
  %v3534 = vrot.slane %v3445, %v3533
  %v3536 = vunpack.c.l.s4 1983009808
  %v3537 = vunpack.c.0.s8 %v3536
  %v3538 = vlaneseq
  %v3539 = vshrl.u32 %v3538, 7
  %v3540 = vsub.s32 %v3537, %v3539
  %v3541 = vrot.slane %v3527, %v3540
  %v3542 = vcombine.high %v3534, %v3534
  %v3543 = vcombine.high %v3541, %v3541
  %v3544 = vcombine.high %v3450, %v3450
  %v3546 = vunpack.c.l.s4 1983009808
  %v3547 = vunpack.c.0.s8 %v3546
  %v3548 = vlaneseq
  %v3549 = vshrl.u32 %v3548, 7
  %v3550 = vsub.s32 %v3547, %v3549
  %v3551 = vrot.slane %v3450, %v3550
  %v3553 = vunpack.c.l.s4 1983009808
  %v3554 = vunpack.c.0.s8 %v3553
  %v3555 = vlaneseq
  %v3556 = vshrl.u32 %v3555, 7
  %v3557 = vsub.s32 %v3554, %v3556
  %v3558 = vrot.slane %v3544, %v3557
  %v3559 = vcombine.high %v3551, %v3551
  %v3560 = vcombine.high %v3558, %v3558
  %v3569 = vrot.slane %v2759, 7
  %v3570 = vrot.slane %v2760, 6
  %v3571 = vsel %vm465, %v3570, %v3569
  %v3572 = vrot.slane %v2761, 5
  %v3573 = vsel %vm468, %v3572, %v3571
  %v3574 = vrot.slane %v2762, 4
  %v3575 = vsel %vm471, %v3574, %v3573
  %v3576 = vrot.slane %v2763, 3
  %v3577 = vsel %vm474, %v3576, %v3575
  %v3578 = vrot.slane %v2764, 2
  %v3579 = vsel %vm477, %v3578, %v3577
  %v3580 = vrot.slane %v2765, 1
  %v3581 = vsel %vm480, %v3580, %v3579
  %v3582 = vsel %vm483, %v2766, %v3581
  %3583 = vrot.lane.b32.xlu0 %v3582, 120
  %v3584 = vpop.permute.xlu0 %3583
  %v3585 = vlaneseq
  %v3586 = vshrl.u32 %v3585, 7
  %v3587 = vsub.s32 0, %v3586
  %v3588 = vrot.slane %v3466, %v3587
  %v3589 = vlaneseq
  %v3590 = vshrl.u32 %v3589, 7
  %v3591 = vsub.s32 0, %v3590
  %v3592 = vrot.slane %v3475, %v3591
  %v3593 = vlaneseq
  %v3594 = vshrl.u32 %v3593, 7
  %v3595 = vsub.s32 0, %v3594
  %v3596 = vrot.slane %v3490, %v3595
  %v3597 = vlaneseq
  %v3598 = vshrl.u32 %v3597, 7
  %v3599 = vsub.s32 0, %v3598
  %v3600 = vrot.slane %v3508, %v3599
  %v3601 = vlaneseq
  %v3602 = vshrl.u32 %v3601, 7
  %v3603 = vsub.s32 0, %v3602
  %v3604 = vrot.slane %v3517, %v3603
  %v3605 = vlaneseq
  %v3606 = vshrl.u32 %v3605, 7
  %v3607 = vsub.s32 0, %v3606
  %v3608 = vrot.slane %v3526, %v3607
  %v3609 = vlaneseq
  %v3610 = vshrl.u32 %v3609, 7
  %v3611 = vsub.s32 0, %v3610
  %v3612 = vrot.slane %v3541, %v3611
  %v3613 = vlaneseq
  %v3614 = vshrl.u32 %v3613, 7
  %v3615 = vsub.s32 0, %v3614
  %v3616 = vrot.slane %v3559, %v3615
  %v3617 = vsel %vm465, %v3592, %v3588
  %v3618 = vsel %vm468, %v3596, %v3617
  %v3619 = vsel %vm471, %v3600, %v3618
  %v3620 = vsel %vm474, %v3604, %v3619
  %v3621 = vsel %vm477, %v3608, %v3620
  %v3622 = vsel %vm480, %v3612, %v3621
  %v3623 = vsel %vm483, %v3616, %v3622
  %v3625 = vsel %vm166, %v3584, 0
  %3627 = vmatprep.subr.mxu0 0.0
  %3628 = vmatpush1.msra.mxu0 %v3081
  %3629 = vmatprep.subr.mxu0 0.0
  %3630 = vmatpush1.msra.mxu0 0.0
  %3631 = vmatprep.subr.mxu0 0.0
  %3632 = vmatpush1.msra.mxu0 0.0
  %3633 = vmatprep.subr.mxu0 0.0
  %3634 = vmatpush1.msra.mxu0 0.0
  %3635 = vmatprep.subr.mxu0 0.0
  %3636 = vmatpush1.msra.mxu0 0.0
  %3637 = vmatprep.subr.mxu0 0.0
  %3638 = vmatpush1.msra.mxu0 0.0
  %3639 = vmatprep.subr.mxu0 0.0
  %3640 = vmatpush1.msra.mxu0 0.0
  %3641 = vmatprep.subr.mxu0 0.0
  %3642 = vmatpush1.msra.mxu0 0.0
  %3643 = vmatprep.subr.mxu0 0.0
  %3644 = vmatpush1.msra.mxu0 0.0
  %3645 = vmatprep.subr.mxu0 0.0
  %3646 = vmatpush1.msra.mxu0 0.0
  %3647 = vmatprep.subr.mxu0 0.0
  %3648 = vmatpush1.msra.mxu0 0.0
  %3649 = vmatprep.subr.mxu0 0.0
  %3650 = vmatpush1.msra.mxu0 0.0
  %3651 = vmatprep.subr.mxu0 0.0
  %3652 = vmatpush1.msra.mxu0 0.0
  %3653 = vmatprep.subr.mxu0 0.0
  %3654 = vmatpush1.msra.mxu0 0.0
  %3655 = vmatprep.subr.mxu0 0.0
  %3656 = vmatpush1.msra.mxu0 0.0
  %3657 = vmatprep.subr.mxu0 0.0
  %3658 = vmatpush1.msra.mxu0 0.0
  %3659 = vmatprep.subr.mxu0 0.0
  %3660 = vmatpush1.msra.mxu0 0.0
  %3661 = vmatprep.subr.mxu0 0.0
  %3662 = vmatpush1.msra.mxu0 0.0
  %3663 = vmatprep.subr.mxu0 0.0
  %3664 = vmatpush1.msra.mxu0 0.0
  %3665 = vmatprep.subr.mxu0 0.0
  %3666 = vmatpush1.msra.mxu0 0.0
  %3667 = vmatprep.subr.mxu0 0.0
  %3668 = vmatpush1.msra.mxu0 0.0
  %3669 = vmatprep.subr.mxu0 0.0
  %3670 = vmatpush1.msra.mxu0 0.0
  %3671 = vmatprep.subr.mxu0 0.0
  %3672 = vmatpush1.msra.mxu0 0.0
  %3673 = vmatprep.subr.mxu0 0.0
  %3674 = vmatpush1.msra.mxu0 0.0
  %3675 = vmatprep.subr.mxu0 0.0
  %3676 = vmatpush1.msra.mxu0 0.0
  %3677 = vmatprep.subr.mxu0 0.0
  %3678 = vmatpush1.msra.mxu0 0.0
  %3679 = vmatprep.subr.mxu0 0.0
  %3680 = vmatpush1.msra.mxu0 0.0
  %3681 = vmatprep.subr.mxu0 0.0
  %3682 = vmatpush1.msra.mxu0 0.0
  %3683 = vmatprep.subr.mxu0 0.0
  %3684 = vmatpush1.msra.mxu0 0.0
  %3685 = vmatprep.subr.mxu0 0.0
  %3686 = vmatpush1.msra.mxu0 0.0
  %3687 = vmatprep.subr.mxu0 0.0
  %3688 = vmatpush1.msra.mxu0 0.0
  %3689 = vmatprep.subr.mxu0 0.0
  %3690 = vmatpush1.msra.mxu0 0.0
  %3691 = vmatprep.mubr.f32.mxu0 0.0
  %3692 = vmatmul.mubr.f32.gmra.mrb[0].mxu0 %v3625
  %v3693 = vpop.f32.mrb[0].mxu0
  %v3694 = vadd.f32 %v3623, %v3693
  %v3695 = vpop.f32.mrb[0].mxu0
  %3696 = vdwg.mxu0
  %v3697 = vlaneseq
  %v3698 = vshrl.u32 %v3697, 7
  %v3699 = vsub.s32 1, %v3698
  %v3700 = vrot.slane %v3466, %v3699
  %v3701 = vlaneseq
  %v3702 = vshrl.u32 %v3701, 7
  %v3703 = vsub.s32 1, %v3702
  %v3704 = vrot.slane %v3475, %v3703
  %v3705 = vlaneseq
  %v3706 = vshrl.u32 %v3705, 7
  %v3707 = vsub.s32 1, %v3706
  %v3708 = vrot.slane %v3490, %v3707
  %v3709 = vlaneseq
  %v3710 = vshrl.u32 %v3709, 7
  %v3711 = vsub.s32 1, %v3710
  %v3712 = vrot.slane %v3508, %v3711
  %v3713 = vlaneseq
  %v3714 = vshrl.u32 %v3713, 7
  %v3715 = vsub.s32 1, %v3714
  %v3716 = vrot.slane %v3517, %v3715
  %v3717 = vlaneseq
  %v3718 = vshrl.u32 %v3717, 7
  %v3719 = vsub.s32 1, %v3718
  %v3720 = vrot.slane %v3526, %v3719
  %v3721 = vlaneseq
  %v3722 = vshrl.u32 %v3721, 7
  %v3723 = vsub.s32 1, %v3722
  %v3724 = vrot.slane %v3541, %v3723
  %v3725 = vlaneseq
  %v3726 = vshrl.u32 %v3725, 7
  %v3727 = vsub.s32 1, %v3726
  %v3728 = vrot.slane %v3559, %v3727
  %v3729 = vsel %vm465, %v3704, %v3700
  %v3730 = vsel %vm468, %v3708, %v3729
  %v3731 = vsel %vm471, %v3712, %v3730
  %v3732 = vsel %vm474, %v3716, %v3731
  %v3733 = vsel %vm477, %v3720, %v3732
  %v3734 = vsel %vm480, %v3724, %v3733
  %v3735 = vsel %vm483, %v3728, %v3734
  %v3738 = vsel %vm166, %v3694, 0
  %3740 = vmatprep.subr.mxu0 0.0
  %3741 = vmatpush1.msra.mxu0 %v3081
  %3742 = vmatprep.subr.mxu0 0.0
  %3743 = vmatpush1.msra.mxu0 0.0
  %3744 = vmatprep.subr.mxu0 0.0
  %3745 = vmatpush1.msra.mxu0 0.0
  %3746 = vmatprep.subr.mxu0 0.0
  %3747 = vmatpush1.msra.mxu0 0.0
  %3748 = vmatprep.subr.mxu0 0.0
  %3749 = vmatpush1.msra.mxu0 0.0
  %3750 = vmatprep.subr.mxu0 0.0
  %3751 = vmatpush1.msra.mxu0 0.0
  %3752 = vmatprep.subr.mxu0 0.0
  %3753 = vmatpush1.msra.mxu0 0.0
  %3754 = vmatprep.subr.mxu0 0.0
  %3755 = vmatpush1.msra.mxu0 0.0
  %3756 = vmatprep.subr.mxu0 0.0
  %3757 = vmatpush1.msra.mxu0 0.0
  %3758 = vmatprep.subr.mxu0 0.0
  %3759 = vmatpush1.msra.mxu0 0.0
  %3760 = vmatprep.subr.mxu0 0.0
  %3761 = vmatpush1.msra.mxu0 0.0
  %3762 = vmatprep.subr.mxu0 0.0
  %3763 = vmatpush1.msra.mxu0 0.0
  %3764 = vmatprep.subr.mxu0 0.0
  %3765 = vmatpush1.msra.mxu0 0.0
  %3766 = vmatprep.subr.mxu0 0.0
  %3767 = vmatpush1.msra.mxu0 0.0
  %3768 = vmatprep.subr.mxu0 0.0
  %3769 = vmatpush1.msra.mxu0 0.0
  %3770 = vmatprep.subr.mxu0 0.0
  %3771 = vmatpush1.msra.mxu0 0.0
  %3772 = vmatprep.subr.mxu0 0.0
  %3773 = vmatpush1.msra.mxu0 0.0
  %3774 = vmatprep.subr.mxu0 0.0
  %3775 = vmatpush1.msra.mxu0 0.0
  %3776 = vmatprep.subr.mxu0 0.0
  %3777 = vmatpush1.msra.mxu0 0.0
  %3778 = vmatprep.subr.mxu0 0.0
  %3779 = vmatpush1.msra.mxu0 0.0
  %3780 = vmatprep.subr.mxu0 0.0
  %3781 = vmatpush1.msra.mxu0 0.0
  %3782 = vmatprep.subr.mxu0 0.0
  %3783 = vmatpush1.msra.mxu0 0.0
  %3784 = vmatprep.subr.mxu0 0.0
  %3785 = vmatpush1.msra.mxu0 0.0
  %3786 = vmatprep.subr.mxu0 0.0
  %3787 = vmatpush1.msra.mxu0 0.0
  %3788 = vmatprep.subr.mxu0 0.0
  %3789 = vmatpush1.msra.mxu0 0.0
  %3790 = vmatprep.subr.mxu0 0.0
  %3791 = vmatpush1.msra.mxu0 0.0
  %3792 = vmatprep.subr.mxu0 0.0
  %3793 = vmatpush1.msra.mxu0 0.0
  %3794 = vmatprep.subr.mxu0 0.0
  %3795 = vmatpush1.msra.mxu0 0.0
  %3796 = vmatprep.subr.mxu0 0.0
  %3797 = vmatpush1.msra.mxu0 0.0
  %3798 = vmatprep.subr.mxu0 0.0
  %3799 = vmatpush1.msra.mxu0 0.0
  %3800 = vmatprep.subr.mxu0 0.0
  %3801 = vmatpush1.msra.mxu0 0.0
  %3802 = vmatprep.subr.mxu0 0.0
  %3803 = vmatpush1.msra.mxu0 0.0
  %3804 = vmatprep.mubr.f32.mxu0 0.0
  %3805 = vmatmul.mubr.f32.gmra.mrb[0].mxu0 %v3738
  %v3806 = vpop.f32.mrb[0].mxu0
  %v3807 = vadd.f32 %v3735, %v3806
  %v3808 = vpop.f32.mrb[0].mxu0
  %3809 = vdwg.mxu0
  %v3810 = vlaneseq
  %v3811 = vshrl.u32 %v3810, 7
  %v3812 = vsub.s32 0, %v3811
  %v3813 = vrot.slane %v3474, %v3812
  %v3814 = vlaneseq
  %v3815 = vshrl.u32 %v3814, 7
  %v3816 = vsub.s32 0, %v3815
  %v3817 = vrot.slane %v3483, %v3816
  %v3818 = vlaneseq
  %v3819 = vshrl.u32 %v3818, 7
  %v3820 = vsub.s32 0, %v3819
  %v3821 = vrot.slane %v3492, %v3820
  %v3822 = vlaneseq
  %v3823 = vshrl.u32 %v3822, 7
  %v3824 = vsub.s32 0, %v3823
  %v3825 = vrot.slane %v3507, %v3824
  %v3826 = vlaneseq
  %v3827 = vshrl.u32 %v3826, 7
  %v3828 = vsub.s32 0, %v3827
  %v3829 = vrot.slane %v3525, %v3828
  %v3830 = vlaneseq
  %v3831 = vshrl.u32 %v3830, 7
  %v3832 = vsub.s32 0, %v3831
  %v3833 = vrot.slane %v3534, %v3832
  %v3834 = vlaneseq
  %v3835 = vshrl.u32 %v3834, 7
  %v3836 = vsub.s32 0, %v3835
  %v3837 = vrot.slane %v3543, %v3836
  %v3838 = vlaneseq
  %v3839 = vshrl.u32 %v3838, 7
  %v3840 = vsub.s32 0, %v3839
  %v3841 = vrot.slane %v3558, %v3840
  %v3842 = vsel %vm465, %v3817, %v3813
  %v3843 = vsel %vm468, %v3821, %v3842
  %v3844 = vsel %vm471, %v3825, %v3843
  %v3845 = vsel %vm474, %v3829, %v3844
  %v3846 = vsel %vm477, %v3833, %v3845
  %v3847 = vsel %vm480, %v3837, %v3846
  %v3848 = vsel %vm483, %v3841, %v3847
  %v3851 = vsel %vm166, %v3807, 0
  %3853 = vmatprep.subr.mxu0 0.0
  %3854 = vmatpush1.msra.mxu0 %v3081
  %3855 = vmatprep.subr.mxu0 0.0
  %3856 = vmatpush1.msra.mxu0 0.0
  %3857 = vmatprep.subr.mxu0 0.0
  %3858 = vmatpush1.msra.mxu0 0.0
  %3859 = vmatprep.subr.mxu0 0.0
  %3860 = vmatpush1.msra.mxu0 0.0
  %3861 = vmatprep.subr.mxu0 0.0
  %3862 = vmatpush1.msra.mxu0 0.0
  %3863 = vmatprep.subr.mxu0 0.0
  %3864 = vmatpush1.msra.mxu0 0.0
  %3865 = vmatprep.subr.mxu0 0.0
  %3866 = vmatpush1.msra.mxu0 0.0
  %3867 = vmatprep.subr.mxu0 0.0
  %3868 = vmatpush1.msra.mxu0 0.0
  %3869 = vmatprep.subr.mxu0 0.0
  %3870 = vmatpush1.msra.mxu0 0.0
  %3871 = vmatprep.subr.mxu0 0.0
  %3872 = vmatpush1.msra.mxu0 0.0
  %3873 = vmatprep.subr.mxu0 0.0
  %3874 = vmatpush1.msra.mxu0 0.0
  %3875 = vmatprep.subr.mxu0 0.0
  %3876 = vmatpush1.msra.mxu0 0.0
  %3877 = vmatprep.subr.mxu0 0.0
  %3878 = vmatpush1.msra.mxu0 0.0
  %3879 = vmatprep.subr.mxu0 0.0
  %3880 = vmatpush1.msra.mxu0 0.0
  %3881 = vmatprep.subr.mxu0 0.0
  %3882 = vmatpush1.msra.mxu0 0.0
  %3883 = vmatprep.subr.mxu0 0.0
  %3884 = vmatpush1.msra.mxu0 0.0
  %3885 = vmatprep.subr.mxu0 0.0
  %3886 = vmatpush1.msra.mxu0 0.0
  %3887 = vmatprep.subr.mxu0 0.0
  %3888 = vmatpush1.msra.mxu0 0.0
  %3889 = vmatprep.subr.mxu0 0.0
  %3890 = vmatpush1.msra.mxu0 0.0
  %3891 = vmatprep.subr.mxu0 0.0
  %3892 = vmatpush1.msra.mxu0 0.0
  %3893 = vmatprep.subr.mxu0 0.0
  %3894 = vmatpush1.msra.mxu0 0.0
  %3895 = vmatprep.subr.mxu0 0.0
  %3896 = vmatpush1.msra.mxu0 0.0
  %3897 = vmatprep.subr.mxu0 0.0
  %3898 = vmatpush1.msra.mxu0 0.0
  %3899 = vmatprep.subr.mxu0 0.0
  %3900 = vmatpush1.msra.mxu0 0.0
  %3901 = vmatprep.subr.mxu0 0.0
  %3902 = vmatpush1.msra.mxu0 0.0
  %3903 = vmatprep.subr.mxu0 0.0
  %3904 = vmatpush1.msra.mxu0 0.0
  %3905 = vmatprep.subr.mxu0 0.0
  %3906 = vmatpush1.msra.mxu0 0.0
  %3907 = vmatprep.subr.mxu0 0.0
  %3908 = vmatpush1.msra.mxu0 0.0
  %3909 = vmatprep.subr.mxu0 0.0
  %3910 = vmatpush1.msra.mxu0 0.0
  %3911 = vmatprep.subr.mxu0 0.0
  %3912 = vmatpush1.msra.mxu0 0.0
  %3913 = vmatprep.subr.mxu0 0.0
  %3914 = vmatpush1.msra.mxu0 0.0
  %3915 = vmatprep.subr.mxu0 0.0
  %3916 = vmatpush1.msra.mxu0 0.0
  %3917 = vmatprep.mubr.f32.mxu0 0.0
  %3918 = vmatmul.mubr.f32.gmra.mrb[0].mxu0 %v3851
  %v3919 = vpop.f32.mrb[0].mxu0
  %v3920 = vadd.f32 %v3848, %v3919
  %v3921 = vpop.f32.mrb[0].mxu0
  %3922 = vdwg.mxu0
  %v3923 = vlaneseq
  %v3924 = vshrl.u32 %v3923, 7
  %v3925 = vsub.s32 1, %v3924
  %v3926 = vrot.slane %v3474, %v3925
  %v3927 = vlaneseq
  %v3928 = vshrl.u32 %v3927, 7
  %v3929 = vsub.s32 1, %v3928
  %v3930 = vrot.slane %v3483, %v3929
  %v3931 = vlaneseq
  %v3932 = vshrl.u32 %v3931, 7
  %v3933 = vsub.s32 1, %v3932
  %v3934 = vrot.slane %v3492, %v3933
  %v3935 = vlaneseq
  %v3936 = vshrl.u32 %v3935, 7
  %v3937 = vsub.s32 1, %v3936
  %v3938 = vrot.slane %v3507, %v3937
  %v3939 = vlaneseq
  %v3940 = vshrl.u32 %v3939, 7
  %v3941 = vsub.s32 1, %v3940
  %v3942 = vrot.slane %v3525, %v3941
  %v3943 = vlaneseq
  %v3944 = vshrl.u32 %v3943, 7
  %v3945 = vsub.s32 1, %v3944
  %v3946 = vrot.slane %v3534, %v3945
  %v3947 = vlaneseq
  %v3948 = vshrl.u32 %v3947, 7
  %v3949 = vsub.s32 1, %v3948
  %v3950 = vrot.slane %v3543, %v3949
  %v3951 = vlaneseq
  %v3952 = vshrl.u32 %v3951, 7
  %v3953 = vsub.s32 1, %v3952
  %v3954 = vrot.slane %v3558, %v3953
  %v3955 = vsel %vm465, %v3930, %v3926
  %v3956 = vsel %vm468, %v3934, %v3955
  %v3957 = vsel %vm471, %v3938, %v3956
  %v3958 = vsel %vm474, %v3942, %v3957
  %v3959 = vsel %vm477, %v3946, %v3958
  %v3960 = vsel %vm480, %v3950, %v3959
  %v3961 = vsel %vm483, %v3954, %v3960
  %v3964 = vsel %vm166, %v3920, 0
  %3966 = vmatprep.subr.mxu0 0.0
  %3967 = vmatpush1.msra.mxu0 %v3081
  %3968 = vmatprep.subr.mxu0 0.0
  %3969 = vmatpush1.msra.mxu0 0.0
  %3970 = vmatprep.subr.mxu0 0.0
  %3971 = vmatpush1.msra.mxu0 0.0
  %3972 = vmatprep.subr.mxu0 0.0
  %3973 = vmatpush1.msra.mxu0 0.0
  %3974 = vmatprep.subr.mxu0 0.0
  %3975 = vmatpush1.msra.mxu0 0.0
  %3976 = vmatprep.subr.mxu0 0.0
  %3977 = vmatpush1.msra.mxu0 0.0
  %3978 = vmatprep.subr.mxu0 0.0
  %3979 = vmatpush1.msra.mxu0 0.0
  %3980 = vmatprep.subr.mxu0 0.0
  %3981 = vmatpush1.msra.mxu0 0.0
  %3982 = vmatprep.subr.mxu0 0.0
  %3983 = vmatpush1.msra.mxu0 0.0
  %3984 = vmatprep.subr.mxu0 0.0
  %3985 = vmatpush1.msra.mxu0 0.0
  %3986 = vmatprep.subr.mxu0 0.0
  %3987 = vmatpush1.msra.mxu0 0.0
  %3988 = vmatprep.subr.mxu0 0.0
  %3989 = vmatpush1.msra.mxu0 0.0
  %3990 = vmatprep.subr.mxu0 0.0
  %3991 = vmatpush1.msra.mxu0 0.0
  %3992 = vmatprep.subr.mxu0 0.0
  %3993 = vmatpush1.msra.mxu0 0.0
  %3994 = vmatprep.subr.mxu0 0.0
  %3995 = vmatpush1.msra.mxu0 0.0
  %3996 = vmatprep.subr.mxu0 0.0
  %3997 = vmatpush1.msra.mxu0 0.0
  %3998 = vmatprep.subr.mxu0 0.0
  %3999 = vmatpush1.msra.mxu0 0.0
  %4000 = vmatprep.subr.mxu0 0.0
  %4001 = vmatpush1.msra.mxu0 0.0
  %4002 = vmatprep.subr.mxu0 0.0
  %4003 = vmatpush1.msra.mxu0 0.0
  %4004 = vmatprep.subr.mxu0 0.0
  %4005 = vmatpush1.msra.mxu0 0.0
  %4006 = vmatprep.subr.mxu0 0.0
  %4007 = vmatpush1.msra.mxu0 0.0
  %4008 = vmatprep.subr.mxu0 0.0
  %4009 = vmatpush1.msra.mxu0 0.0
  %4010 = vmatprep.subr.mxu0 0.0
  %4011 = vmatpush1.msra.mxu0 0.0
  %4012 = vmatprep.subr.mxu0 0.0
  %4013 = vmatpush1.msra.mxu0 0.0
  %4014 = vmatprep.subr.mxu0 0.0
  %4015 = vmatpush1.msra.mxu0 0.0
  %4016 = vmatprep.subr.mxu0 0.0
  %4017 = vmatpush1.msra.mxu0 0.0
  %4018 = vmatprep.subr.mxu0 0.0
  %4019 = vmatpush1.msra.mxu0 0.0
  %4020 = vmatprep.subr.mxu0 0.0
  %4021 = vmatpush1.msra.mxu0 0.0
  %4022 = vmatprep.subr.mxu0 0.0
  %4023 = vmatpush1.msra.mxu0 0.0
  %4024 = vmatprep.subr.mxu0 0.0
  %4025 = vmatpush1.msra.mxu0 0.0
  %4026 = vmatprep.subr.mxu0 0.0
  %4027 = vmatpush1.msra.mxu0 0.0
  %4028 = vmatprep.subr.mxu0 0.0
  %4029 = vmatpush1.msra.mxu0 0.0
  %4030 = vmatprep.mubr.f32.mxu0 0.0
  %4031 = vmatmul.mubr.f32.gmra.mrb[0].mxu0 %v3964
  %v4032 = vpop.f32.mrb[0].mxu0
  %v4033 = vadd.f32 %v3961, %v4032
  %v4034 = vpop.f32.mrb[0].mxu0
  %4035 = vdwg.mxu0
  %v4036 = vlaneseq
  %v4037 = vshrl.u32 %v4036, 7
  %v4038 = vsub.s32 0, %v4037
  %v4039 = vrot.slane %v3473, %v4038
  %v4040 = vlaneseq
  %v4041 = vshrl.u32 %v4040, 7
  %v4042 = vsub.s32 0, %v4041
  %v4043 = vrot.slane %v3491, %v4042
  %v4044 = vlaneseq
  %v4045 = vshrl.u32 %v4044, 7
  %v4046 = vsub.s32 0, %v4045
  %v4047 = vrot.slane %v3500, %v4046
  %v4048 = vlaneseq
  %v4049 = vshrl.u32 %v4048, 7
  %v4050 = vsub.s32 0, %v4049
  %v4051 = vrot.slane %v3509, %v4050
  %v4052 = vlaneseq
  %v4053 = vshrl.u32 %v4052, 7
  %v4054 = vsub.s32 0, %v4053
  %v4055 = vrot.slane %v3524, %v4054
  %v4056 = vlaneseq
  %v4057 = vshrl.u32 %v4056, 7
  %v4058 = vsub.s32 0, %v4057
  %v4059 = vrot.slane %v3542, %v4058
  %v4060 = vlaneseq
  %v4061 = vshrl.u32 %v4060, 7
  %v4062 = vsub.s32 0, %v4061
  %v4063 = vrot.slane %v3551, %v4062
  %v4064 = vlaneseq
  %v4065 = vshrl.u32 %v4064, 7
  %v4066 = vsub.s32 0, %v4065
  %v4067 = vrot.slane %v3560, %v4066
  %v4068 = vsel %vm465, %v4043, %v4039
  %v4069 = vsel %vm468, %v4047, %v4068
  %v4070 = vsel %vm471, %v4051, %v4069
  %v4071 = vsel %vm474, %v4055, %v4070
  %v4072 = vsel %vm477, %v4059, %v4071
  %v4073 = vsel %vm480, %v4063, %v4072
  %v4074 = vsel %vm483, %v4067, %v4073
  %v4077 = vsel %vm166, %v4033, 0
  %4079 = vmatprep.subr.mxu0 0.0
  %4080 = vmatpush1.msra.mxu0 %v3081
  %4081 = vmatprep.subr.mxu0 0.0
  %4082 = vmatpush1.msra.mxu0 0.0
  %4083 = vmatprep.subr.mxu0 0.0
  %4084 = vmatpush1.msra.mxu0 0.0
  %4085 = vmatprep.subr.mxu0 0.0
  %4086 = vmatpush1.msra.mxu0 0.0
  %4087 = vmatprep.subr.mxu0 0.0
  %4088 = vmatpush1.msra.mxu0 0.0
  %4089 = vmatprep.subr.mxu0 0.0
  %4090 = vmatpush1.msra.mxu0 0.0
  %4091 = vmatprep.subr.mxu0 0.0
  %4092 = vmatpush1.msra.mxu0 0.0
  %4093 = vmatprep.subr.mxu0 0.0
  %4094 = vmatpush1.msra.mxu0 0.0
  %4095 = vmatprep.subr.mxu0 0.0
  %4096 = vmatpush1.msra.mxu0 0.0
  %4097 = vmatprep.subr.mxu0 0.0
  %4098 = vmatpush1.msra.mxu0 0.0
  %4099 = vmatprep.subr.mxu0 0.0
  %4100 = vmatpush1.msra.mxu0 0.0
  %4101 = vmatprep.subr.mxu0 0.0
  %4102 = vmatpush1.msra.mxu0 0.0
  %4103 = vmatprep.subr.mxu0 0.0
  %4104 = vmatpush1.msra.mxu0 0.0
  %4105 = vmatprep.subr.mxu0 0.0
  %4106 = vmatpush1.msra.mxu0 0.0
  %4107 = vmatprep.subr.mxu0 0.0
  %4108 = vmatpush1.msra.mxu0 0.0
  %4109 = vmatprep.subr.mxu0 0.0
  %4110 = vmatpush1.msra.mxu0 0.0
  %4111 = vmatprep.subr.mxu0 0.0
  %4112 = vmatpush1.msra.mxu0 0.0
  %4113 = vmatprep.subr.mxu0 0.0
  %4114 = vmatpush1.msra.mxu0 0.0
  %4115 = vmatprep.subr.mxu0 0.0
  %4116 = vmatpush1.msra.mxu0 0.0
  %4117 = vmatprep.subr.mxu0 0.0
  %4118 = vmatpush1.msra.mxu0 0.0
  %4119 = vmatprep.subr.mxu0 0.0
  %4120 = vmatpush1.msra.mxu0 0.0
  %4121 = vmatprep.subr.mxu0 0.0
  %4122 = vmatpush1.msra.mxu0 0.0
  %4123 = vmatprep.subr.mxu0 0.0
  %4124 = vmatpush1.msra.mxu0 0.0
  %4125 = vmatprep.subr.mxu0 0.0
  %4126 = vmatpush1.msra.mxu0 0.0
  %4127 = vmatprep.subr.mxu0 0.0
  %4128 = vmatpush1.msra.mxu0 0.0
  %4129 = vmatprep.subr.mxu0 0.0
  %4130 = vmatpush1.msra.mxu0 0.0
  %4131 = vmatprep.subr.mxu0 0.0
  %4132 = vmatpush1.msra.mxu0 0.0
  %4133 = vmatprep.subr.mxu0 0.0
  %4134 = vmatpush1.msra.mxu0 0.0
  %4135 = vmatprep.subr.mxu0 0.0
  %4136 = vmatpush1.msra.mxu0 0.0
  %4137 = vmatprep.subr.mxu0 0.0
  %4138 = vmatpush1.msra.mxu0 0.0
  %4139 = vmatprep.subr.mxu0 0.0
  %4140 = vmatpush1.msra.mxu0 0.0
  %4141 = vmatprep.subr.mxu0 0.0
  %4142 = vmatpush1.msra.mxu0 0.0
  %4143 = vmatprep.mubr.f32.mxu0 0.0
  %4144 = vmatmul.mubr.f32.gmra.mrb[0].mxu0 %v4077
  %v4145 = vpop.f32.mrb[0].mxu0
  %v4146 = vadd.f32 %v4074, %v4145
  %v4147 = vpop.f32.mrb[0].mxu0
  %4148 = vdwg.mxu0
  %v4149 = vlaneseq
  %v4150 = vshrl.u32 %v4149, 7
  %v4151 = vsub.s32 1, %v4150
  %v4152 = vrot.slane %v3473, %v4151
  %v4153 = vlaneseq
  %v4154 = vshrl.u32 %v4153, 7
  %v4155 = vsub.s32 1, %v4154
  %v4156 = vrot.slane %v3491, %v4155
  %v4157 = vlaneseq
  %v4158 = vshrl.u32 %v4157, 7
  %v4159 = vsub.s32 1, %v4158
  %v4160 = vrot.slane %v3500, %v4159
  %v4161 = vlaneseq
  %v4162 = vshrl.u32 %v4161, 7
  %v4163 = vsub.s32 1, %v4162
  %v4164 = vrot.slane %v3509, %v4163
  %v4165 = vlaneseq
  %v4166 = vshrl.u32 %v4165, 7
  %v4167 = vsub.s32 1, %v4166
  %v4168 = vrot.slane %v3524, %v4167
  %v4169 = vlaneseq
  %v4170 = vshrl.u32 %v4169, 7
  %v4171 = vsub.s32 1, %v4170
  %v4172 = vrot.slane %v3542, %v4171
  %v4173 = vlaneseq
  %v4174 = vshrl.u32 %v4173, 7
  %v4175 = vsub.s32 1, %v4174
  %v4176 = vrot.slane %v3551, %v4175
  %v4177 = vlaneseq
  %v4178 = vshrl.u32 %v4177, 7
  %v4179 = vsub.s32 1, %v4178
  %v4180 = vrot.slane %v3560, %v4179
  %v4181 = vsel %vm465, %v4156, %v4152
  %v4182 = vsel %vm468, %v4160, %v4181
  %v4183 = vsel %vm471, %v4164, %v4182
  %v4184 = vsel %vm474, %v4168, %v4183
  %v4185 = vsel %vm477, %v4172, %v4184
  %v4186 = vsel %vm480, %v4176, %v4185
  %v4187 = vsel %vm483, %v4180, %v4186
  %v4190 = vsel %vm166, %v4146, 0
  %4192 = vmatprep.subr.mxu0 0.0
  %4193 = vmatpush1.msra.mxu0 %v3081
  %4194 = vmatprep.subr.mxu0 0.0
  %4195 = vmatpush1.msra.mxu0 0.0
  %4196 = vmatprep.subr.mxu0 0.0
  %4197 = vmatpush1.msra.mxu0 0.0
  %4198 = vmatprep.subr.mxu0 0.0
  %4199 = vmatpush1.msra.mxu0 0.0
  %4200 = vmatprep.subr.mxu0 0.0
  %4201 = vmatpush1.msra.mxu0 0.0
  %4202 = vmatprep.subr.mxu0 0.0
  %4203 = vmatpush1.msra.mxu0 0.0
  %4204 = vmatprep.subr.mxu0 0.0
  %4205 = vmatpush1.msra.mxu0 0.0
  %4206 = vmatprep.subr.mxu0 0.0
  %4207 = vmatpush1.msra.mxu0 0.0
  %4208 = vmatprep.subr.mxu0 0.0
  %4209 = vmatpush1.msra.mxu0 0.0
  %4210 = vmatprep.subr.mxu0 0.0
  %4211 = vmatpush1.msra.mxu0 0.0
  %4212 = vmatprep.subr.mxu0 0.0
  %4213 = vmatpush1.msra.mxu0 0.0
  %4214 = vmatprep.subr.mxu0 0.0
  %4215 = vmatpush1.msra.mxu0 0.0
  %4216 = vmatprep.subr.mxu0 0.0
  %4217 = vmatpush1.msra.mxu0 0.0
  %4218 = vmatprep.subr.mxu0 0.0
  %4219 = vmatpush1.msra.mxu0 0.0
  %4220 = vmatprep.subr.mxu0 0.0
  %4221 = vmatpush1.msra.mxu0 0.0
  %4222 = vmatprep.subr.mxu0 0.0
  %4223 = vmatpush1.msra.mxu0 0.0
  %4224 = vmatprep.subr.mxu0 0.0
  %4225 = vmatpush1.msra.mxu0 0.0
  %4226 = vmatprep.subr.mxu0 0.0
  %4227 = vmatpush1.msra.mxu0 0.0
  %4228 = vmatprep.subr.mxu0 0.0
  %4229 = vmatpush1.msra.mxu0 0.0
  %4230 = vmatprep.subr.mxu0 0.0
  %4231 = vmatpush1.msra.mxu0 0.0
  %4232 = vmatprep.subr.mxu0 0.0
  %4233 = vmatpush1.msra.mxu0 0.0
  %4234 = vmatprep.subr.mxu0 0.0
  %4235 = vmatpush1.msra.mxu0 0.0
  %4236 = vmatprep.subr.mxu0 0.0
  %4237 = vmatpush1.msra.mxu0 0.0
  %4238 = vmatprep.subr.mxu0 0.0
  %4239 = vmatpush1.msra.mxu0 0.0
  %4240 = vmatprep.subr.mxu0 0.0
  %4241 = vmatpush1.msra.mxu0 0.0
  %4242 = vmatprep.subr.mxu0 0.0
  %4243 = vmatpush1.msra.mxu0 0.0
  %4244 = vmatprep.subr.mxu0 0.0
  %4245 = vmatpush1.msra.mxu0 0.0
  %4246 = vmatprep.subr.mxu0 0.0
  %4247 = vmatpush1.msra.mxu0 0.0
  %4248 = vmatprep.subr.mxu0 0.0
  %4249 = vmatpush1.msra.mxu0 0.0
  %4250 = vmatprep.subr.mxu0 0.0
  %4251 = vmatpush1.msra.mxu0 0.0
  %4252 = vmatprep.subr.mxu0 0.0
  %4253 = vmatpush1.msra.mxu0 0.0
  %4254 = vmatprep.subr.mxu0 0.0
  %4255 = vmatpush1.msra.mxu0 0.0
  %4256 = vmatprep.mubr.f32.mxu0 0.0
  %4257 = vmatmul.mubr.f32.gmra.mrb[0].mxu0 %v4190
  %v4258 = vpop.f32.mrb[0].mxu0
  %v4259 = vadd.f32 %v4187, %v4258
  %v4260 = vpop.f32.mrb[0].mxu0
  %4261 = vdwg.mxu0
  %v4262 = vld [vmem:[%s3 + $0x68] sm:$0xff]
  %v4263 = vld [vmem:[%s3 + $0x70] sm:$0x1]
  %v4264 = vld [vmem:[%s3 + $0x78] sm:$0xff]
  %v4265 = vld [vmem:[%s3 + $0x80] sm:$0xff]
  %v4266 = vld [vmem:[%s3 + $0x88] sm:$0x1]
  %v4267 = vld [vmem:[%s3 + $0x90] sm:$0xff]
  %v4268 = vld [vmem:[%s3 + $0x98] sm:$0xff]
  %v4269 = vld [vmem:[%s3 + $0xa0] sm:$0x1]
  %v4270 = vlaneseq
  %v4271 = vshrl.u32 %v4270, 7
  %v4272 = vsub.s32 0, %v4271
  %v4273 = vrot.slane %v4263, %v4272
  %v4275 = vsel %vm166, %v4259, 0
  %4277 = vmatprep.subr.mxu0 0.0
  %4278 = vmatpush1.msra.mxu0 %v4262
  %4279 = vmatprep.subr.mxu0 0.0
  %4280 = vmatpush1.msra.mxu0 0.0
  %4281 = vmatprep.subr.mxu0 0.0
  %4282 = vmatpush1.msra.mxu0 0.0
  %4283 = vmatprep.subr.mxu0 0.0
  %4284 = vmatpush1.msra.mxu0 0.0
  %4285 = vmatprep.subr.mxu0 0.0
  %4286 = vmatpush1.msra.mxu0 0.0
  %4287 = vmatprep.subr.mxu0 0.0
  %4288 = vmatpush1.msra.mxu0 0.0
  %4289 = vmatprep.subr.mxu0 0.0
  %4290 = vmatpush1.msra.mxu0 0.0
  %4291 = vmatprep.subr.mxu0 0.0
  %4292 = vmatpush1.msra.mxu0 0.0
  %4293 = vmatprep.subr.mxu0 0.0
  %4294 = vmatpush1.msra.mxu0 0.0
  %4295 = vmatprep.subr.mxu0 0.0
  %4296 = vmatpush1.msra.mxu0 0.0
  %4297 = vmatprep.subr.mxu0 0.0
  %4298 = vmatpush1.msra.mxu0 0.0
  %4299 = vmatprep.subr.mxu0 0.0
  %4300 = vmatpush1.msra.mxu0 0.0
  %4301 = vmatprep.subr.mxu0 0.0
  %4302 = vmatpush1.msra.mxu0 0.0
  %4303 = vmatprep.subr.mxu0 0.0
  %4304 = vmatpush1.msra.mxu0 0.0
  %4305 = vmatprep.subr.mxu0 0.0
  %4306 = vmatpush1.msra.mxu0 0.0
  %4307 = vmatprep.subr.mxu0 0.0
  %4308 = vmatpush1.msra.mxu0 0.0
  %4309 = vmatprep.subr.mxu0 0.0
  %4310 = vmatpush1.msra.mxu0 0.0
  %4311 = vmatprep.subr.mxu0 0.0
  %4312 = vmatpush1.msra.mxu0 0.0
  %4313 = vmatprep.subr.mxu0 0.0
  %4314 = vmatpush1.msra.mxu0 0.0
  %4315 = vmatprep.subr.mxu0 0.0
  %4316 = vmatpush1.msra.mxu0 0.0
  %4317 = vmatprep.subr.mxu0 0.0
  %4318 = vmatpush1.msra.mxu0 0.0
  %4319 = vmatprep.subr.mxu0 0.0
  %4320 = vmatpush1.msra.mxu0 0.0
  %4321 = vmatprep.subr.mxu0 0.0
  %4322 = vmatpush1.msra.mxu0 0.0
  %4323 = vmatprep.subr.mxu0 0.0
  %4324 = vmatpush1.msra.mxu0 0.0
  %4325 = vmatprep.subr.mxu0 0.0
  %4326 = vmatpush1.msra.mxu0 0.0
  %4327 = vmatprep.subr.mxu0 0.0
  %4328 = vmatpush1.msra.mxu0 0.0
  %4329 = vmatprep.subr.mxu0 0.0
  %4330 = vmatpush1.msra.mxu0 0.0
  %4331 = vmatprep.subr.mxu0 0.0
  %4332 = vmatpush1.msra.mxu0 0.0
  %4333 = vmatprep.subr.mxu0 0.0
  %4334 = vmatpush1.msra.mxu0 0.0
  %4335 = vmatprep.subr.mxu0 0.0
  %4336 = vmatpush1.msra.mxu0 0.0
  %4337 = vmatprep.subr.mxu0 0.0
  %4338 = vmatpush1.msra.mxu0 0.0
  %4339 = vmatprep.subr.mxu0 0.0
  %4340 = vmatpush1.msra.mxu0 0.0
  %4341 = vmatprep.mubr.f32.mxu0 0.0
  %4342 = vmatmul.mubr.f32.gmra.mrb[0].mxu0 %v3738
  %v4343 = vpop.f32.mrb[0].mxu0
  %v4344 = vadd.f32 %v4273, %v4343
  %v4345 = vpop.f32.mrb[0].mxu0
  %4346 = vmatprep.mubr.f32.mxu0 0.0
  %4347 = vmatmul.mubr.f32.gmra.mrb[0].mxu0 %v3851
  %v4348 = vpop.f32.mrb[0].mxu0
  %v4349 = vadd.f32 %v4273, %v4348
  %v4350 = vpop.f32.mrb[0].mxu0
  %4351 = vmatprep.mubr.f32.mxu0 0.0
  %4352 = vmatmul.mubr.f32.gmra.mrb[0].mxu0 %v3964
  %v4353 = vpop.f32.mrb[0].mxu0
  %v4354 = vadd.f32 %v4273, %v4353
  %v4355 = vpop.f32.mrb[0].mxu0
  %4356 = vmatprep.mubr.f32.mxu0 0.0
  %4357 = vmatmul.mubr.f32.gmra.mrb[0].mxu0 %v4077
  %v4358 = vpop.f32.mrb[0].mxu0
  %v4359 = vadd.f32 %v4273, %v4358
  %v4360 = vpop.f32.mrb[0].mxu0
  %4361 = vmatprep.mubr.f32.mxu0 0.0
  %4362 = vmatmul.mubr.f32.gmra.mrb[0].mxu0 %v4190
  %v4363 = vpop.f32.mrb[0].mxu0
  %v4364 = vadd.f32 %v4273, %v4363
  %v4365 = vpop.f32.mrb[0].mxu0
  %4366 = vmatprep.mubr.f32.mxu0 0.0
  %4367 = vmatmul.mubr.f32.gmra.mrb[0].mxu0 %v4275
  %v4368 = vpop.f32.mrb[0].mxu0
  %v4369 = vadd.f32 %v4273, %v4368
  %v4370 = vpop.f32.mrb[0].mxu0
  %4371 = vdwg.mxu0
  %v4372 = vmax.f32 %v4344, 0.0
  %v4373 = vmax.f32 %v4349, 0.0
  %v4374 = vmax.f32 %v4354, 0.0
  %v4375 = vmax.f32 %v4359, 0.0
  %v4376 = vmax.f32 %v4364, 0.0
  %v4377 = vmax.f32 %v4369, 0.0
  %v4378 = vlaneseq
  %v4379 = vshrl.u32 %v4378, 7
  %v4380 = vsub.s32 0, %v4379
  %v4381 = vrot.slane %v4266, %v4380
  %v4383 = vsel %vm2928, %v4372, 0
  %v4386 = vsel %vm2928, %v4373, 0
  %v4389 = vsel %vm2928, %v4374, 0
  %v4392 = vsel %vm2928, %v4375, 0
  %v4395 = vsel %vm2928, %v4376, 0
  %v4398 = vsel %vm2928, %v4377, 0
  %4400 = vmatprep.subr.mxu0 0.0
  %4401 = vmatpush1.msra.mxu0 %v4264
  %4402 = vmatprep.subr.mxu0 0.0
  %4403 = vmatpush1.msra.mxu0 %v4265
  %4404 = vmatprep.subr.mxu0 0.0
  %4405 = vmatpush1.msra.mxu0 0.0
  %4406 = vmatprep.subr.mxu0 0.0
  %4407 = vmatpush1.msra.mxu0 0.0
  %4408 = vmatprep.subr.mxu0 0.0
  %4409 = vmatpush1.msra.mxu0 0.0
  %4410 = vmatprep.subr.mxu0 0.0
  %4411 = vmatpush1.msra.mxu0 0.0
  %4412 = vmatprep.subr.mxu0 0.0
  %4413 = vmatpush1.msra.mxu0 0.0
  %4414 = vmatprep.subr.mxu0 0.0
  %4415 = vmatpush1.msra.mxu0 0.0
  %4416 = vmatprep.subr.mxu0 0.0
  %4417 = vmatpush1.msra.mxu0 0.0
  %4418 = vmatprep.subr.mxu0 0.0
  %4419 = vmatpush1.msra.mxu0 0.0
  %4420 = vmatprep.subr.mxu0 0.0
  %4421 = vmatpush1.msra.mxu0 0.0
  %4422 = vmatprep.subr.mxu0 0.0
  %4423 = vmatpush1.msra.mxu0 0.0
  %4424 = vmatprep.subr.mxu0 0.0
  %4425 = vmatpush1.msra.mxu0 0.0
  %4426 = vmatprep.subr.mxu0 0.0
  %4427 = vmatpush1.msra.mxu0 0.0
  %4428 = vmatprep.subr.mxu0 0.0
  %4429 = vmatpush1.msra.mxu0 0.0
  %4430 = vmatprep.subr.mxu0 0.0
  %4431 = vmatpush1.msra.mxu0 0.0
  %4432 = vmatprep.subr.mxu0 0.0
  %4433 = vmatpush1.msra.mxu0 0.0
  %4434 = vmatprep.subr.mxu0 0.0
  %4435 = vmatpush1.msra.mxu0 0.0
  %4436 = vmatprep.subr.mxu0 0.0
  %4437 = vmatpush1.msra.mxu0 0.0
  %4438 = vmatprep.subr.mxu0 0.0
  %4439 = vmatpush1.msra.mxu0 0.0
  %4440 = vmatprep.subr.mxu0 0.0
  %4441 = vmatpush1.msra.mxu0 0.0
  %4442 = vmatprep.subr.mxu0 0.0
  %4443 = vmatpush1.msra.mxu0 0.0
  %4444 = vmatprep.subr.mxu0 0.0
  %4445 = vmatpush1.msra.mxu0 0.0
  %4446 = vmatprep.subr.mxu0 0.0
  %4447 = vmatpush1.msra.mxu0 0.0
  %4448 = vmatprep.subr.mxu0 0.0
  %4449 = vmatpush1.msra.mxu0 0.0
  %4450 = vmatprep.subr.mxu0 0.0
  %4451 = vmatpush1.msra.mxu0 0.0
  %4452 = vmatprep.subr.mxu0 0.0
  %4453 = vmatpush1.msra.mxu0 0.0
  %4454 = vmatprep.subr.mxu0 0.0
  %4455 = vmatpush1.msra.mxu0 0.0
  %4456 = vmatprep.subr.mxu0 0.0
  %4457 = vmatpush1.msra.mxu0 0.0
  %4458 = vmatprep.subr.mxu0 0.0
  %4459 = vmatpush1.msra.mxu0 0.0
  %4460 = vmatprep.subr.mxu0 0.0
  %4461 = vmatpush1.msra.mxu0 0.0
  %4462 = vmatprep.subr.mxu0 0.0
  %4463 = vmatpush1.msra.mxu0 0.0
  %4464 = vmatprep.mubr.f32.mxu0 0.0
  %4465 = vmatmul.mubr.f32.gmra.mrb[0].mxu0 %v4383
  %v4466 = vpop.f32.mrb[0].mxu0
  %v4467 = vadd.f32 %v4381, %v4466
  %v4468 = vpop.f32.mrb[0].mxu0
  %4469 = vmatprep.mubr.f32.mxu0 0.0
  %4470 = vmatmul.mubr.f32.gmra.mrb[0].mxu0 %v4386
  %v4471 = vpop.f32.mrb[0].mxu0
  %v4472 = vadd.f32 %v4381, %v4471
  %v4473 = vpop.f32.mrb[0].mxu0
  %4474 = vmatprep.mubr.f32.mxu0 0.0
  %4475 = vmatmul.mubr.f32.gmra.mrb[0].mxu0 %v4389
  %v4476 = vpop.f32.mrb[0].mxu0
  %v4477 = vadd.f32 %v4381, %v4476
  %v4478 = vpop.f32.mrb[0].mxu0
  %4479 = vmatprep.mubr.f32.mxu0 0.0
  %4480 = vmatmul.mubr.f32.gmra.mrb[0].mxu0 %v4392
  %v4481 = vpop.f32.mrb[0].mxu0
  %v4482 = vadd.f32 %v4381, %v4481
  %v4483 = vpop.f32.mrb[0].mxu0
  %4484 = vmatprep.mubr.f32.mxu0 0.0
  %4485 = vmatmul.mubr.f32.gmra.mrb[0].mxu0 %v4395
  %v4486 = vpop.f32.mrb[0].mxu0
  %v4487 = vadd.f32 %v4381, %v4486
  %v4488 = vpop.f32.mrb[0].mxu0
  %4489 = vmatprep.mubr.f32.mxu0 0.0
  %4490 = vmatmul.mubr.f32.gmra.mrb[0].mxu0 %v4398
  %v4491 = vpop.f32.mrb[0].mxu0
  %v4492 = vadd.f32 %v4381, %v4491
  %v4493 = vpop.f32.mrb[0].mxu0
  %4494 = vdwg.mxu0
  %v4495 = vmax.f32 %v4467, 0.0
  %v4496 = vmax.f32 %v4472, 0.0
  %v4497 = vmax.f32 %v4477, 0.0
  %v4498 = vmax.f32 %v4482, 0.0
  %v4499 = vmax.f32 %v4487, 0.0
  %v4500 = vmax.f32 %v4492, 0.0
  %v4501 = vlaneseq
  %v4502 = vshrl.u32 %v4501, 7
  %v4503 = vsub.s32 0, %v4502
  %v4504 = vrot.slane %v4269, %v4503
  %v4506 = vsel %vm2928, %v4495, 0
  %v4509 = vsel %vm2928, %v4496, 0
  %v4512 = vsel %vm2928, %v4497, 0
  %v4515 = vsel %vm2928, %v4498, 0
  %v4518 = vsel %vm2928, %v4499, 0
  %v4521 = vsel %vm2928, %v4500, 0
  %4523 = vmatprep.subr.mxu0 0.0
  %4524 = vmatpush1.msra.mxu0 %v4267
  %4525 = vmatprep.subr.mxu0 0.0
  %4526 = vmatpush1.msra.mxu0 %v4268
  %4527 = vmatprep.subr.mxu0 0.0
  %4528 = vmatpush1.msra.mxu0 0.0
  %4529 = vmatprep.subr.mxu0 0.0
  %4530 = vmatpush1.msra.mxu0 0.0
  %4531 = vmatprep.subr.mxu0 0.0
  %4532 = vmatpush1.msra.mxu0 0.0
  %4533 = vmatprep.subr.mxu0 0.0
  %4534 = vmatpush1.msra.mxu0 0.0
  %4535 = vmatprep.subr.mxu0 0.0
  %4536 = vmatpush1.msra.mxu0 0.0
  %4537 = vmatprep.subr.mxu0 0.0
  %4538 = vmatpush1.msra.mxu0 0.0
  %4539 = vmatprep.subr.mxu0 0.0
  %4540 = vmatpush1.msra.mxu0 0.0
  %4541 = vmatprep.subr.mxu0 0.0
  %4542 = vmatpush1.msra.mxu0 0.0
  %4543 = vmatprep.subr.mxu0 0.0
  %4544 = vmatpush1.msra.mxu0 0.0
  %4545 = vmatprep.subr.mxu0 0.0
  %4546 = vmatpush1.msra.mxu0 0.0
  %4547 = vmatprep.subr.mxu0 0.0
  %4548 = vmatpush1.msra.mxu0 0.0
  %4549 = vmatprep.subr.mxu0 0.0
  %4550 = vmatpush1.msra.mxu0 0.0
  %4551 = vmatprep.subr.mxu0 0.0
  %4552 = vmatpush1.msra.mxu0 0.0
  %4553 = vmatprep.subr.mxu0 0.0
  %4554 = vmatpush1.msra.mxu0 0.0
  %4555 = vmatprep.subr.mxu0 0.0
  %4556 = vmatpush1.msra.mxu0 0.0
  %4557 = vmatprep.subr.mxu0 0.0
  %4558 = vmatpush1.msra.mxu0 0.0
  %4559 = vmatprep.subr.mxu0 0.0
  %4560 = vmatpush1.msra.mxu0 0.0
  %4561 = vmatprep.subr.mxu0 0.0
  %4562 = vmatpush1.msra.mxu0 0.0
  %4563 = vmatprep.subr.mxu0 0.0
  %4564 = vmatpush1.msra.mxu0 0.0
  %4565 = vmatprep.subr.mxu0 0.0
  %4566 = vmatpush1.msra.mxu0 0.0
  %4567 = vmatprep.subr.mxu0 0.0
  %4568 = vmatpush1.msra.mxu0 0.0
  %4569 = vmatprep.subr.mxu0 0.0
  %4570 = vmatpush1.msra.mxu0 0.0
  %4571 = vmatprep.subr.mxu0 0.0
  %4572 = vmatpush1.msra.mxu0 0.0
  %4573 = vmatprep.subr.mxu0 0.0
  %4574 = vmatpush1.msra.mxu0 0.0
  %4575 = vmatprep.subr.mxu0 0.0
  %4576 = vmatpush1.msra.mxu0 0.0
  %4577 = vmatprep.subr.mxu0 0.0
  %4578 = vmatpush1.msra.mxu0 0.0
  %4579 = vmatprep.subr.mxu0 0.0
  %4580 = vmatpush1.msra.mxu0 0.0
  %4581 = vmatprep.subr.mxu0 0.0
  %4582 = vmatpush1.msra.mxu0 0.0
  %4583 = vmatprep.subr.mxu0 0.0
  %4584 = vmatpush1.msra.mxu0 0.0
  %4585 = vmatprep.subr.mxu0 0.0
  %4586 = vmatpush1.msra.mxu0 0.0
  %4587 = vmatprep.mubr.f32.mxu0 0.0
  %4588 = vmatmul.mubr.f32.gmra.mrb[0].mxu0 %v4506
  %v4589 = vpop.f32.mrb[0].mxu0
  %v4590 = vadd.f32 %v4504, %v4589
  %v4591 = vpop.f32.mrb[0].mxu0
  %4592 = vmatprep.mubr.f32.mxu0 0.0
  %4593 = vmatmul.mubr.f32.gmra.mrb[0].mxu0 %v4509
  %v4594 = vpop.f32.mrb[0].mxu0
  %v4595 = vadd.f32 %v4504, %v4594
  %v4596 = vpop.f32.mrb[0].mxu0
  %4597 = vmatprep.mubr.f32.mxu0 0.0
  %4598 = vmatmul.mubr.f32.gmra.mrb[0].mxu0 %v4512
  %v4599 = vpop.f32.mrb[0].mxu0
  %v4600 = vadd.f32 %v4504, %v4599
  %v4601 = vpop.f32.mrb[0].mxu0
  %4602 = vmatprep.mubr.f32.mxu0 0.0
  %4603 = vmatmul.mubr.f32.gmra.mrb[0].mxu0 %v4515
  %v4604 = vpop.f32.mrb[0].mxu0
  %v4605 = vadd.f32 %v4504, %v4604
  %v4606 = vpop.f32.mrb[0].mxu0
  %4607 = vmatprep.mubr.f32.mxu0 0.0
  %4608 = vmatmul.mubr.f32.gmra.mrb[0].mxu0 %v4518
  %v4609 = vpop.f32.mrb[0].mxu0
  %v4610 = vadd.f32 %v4504, %v4609
  %v4611 = vpop.f32.mrb[0].mxu0
  %4612 = vmatprep.mubr.f32.mxu0 0.0
  %4613 = vmatmul.mubr.f32.gmra.mrb[0].mxu0 %v4521
  %v4614 = vpop.f32.mrb[0].mxu0
  %v4615 = vadd.f32 %v4504, %v4614
  %v4616 = vpop.f32.mrb[0].mxu0
  %4617 = vdwg.mxu0
  %v4618 = vand.u32 2147483647, %v4590
  %v4619 = vand.u32 2147483647, %v4595
  %v4620 = vand.u32 2147483647, %v4600
  %v4621 = vand.u32 2147483647, %v4605
  %v4622 = vand.u32 2147483647, %v4610
  %v4623 = vand.u32 2147483647, %v4615
  %4625 = vrot.lane.b32.xlu0 %v3080, 19
  %v4626 = vpop.permute.xlu0 %4625
  %v4628 = vmul.f32 %v4618, %v4626
  %4630 = vrot.lane.b32.xlu0 %v4628, 127
  %v4631 = vpop.permute.xlu0 %4630
  %v4633 = vsub.f32 %v4618, %v4631
  %4635 = vrot.lane.b32.xlu0 %v3077, 16
  %v4636 = vpop.permute.xlu0 %4635
  %v4638 = vmul.f32 %v4618, %v4636
  %4640 = vrot.lane.b32.xlu0 %v4638, 126
  %v4641 = vpop.permute.xlu0 %4640
  %v4643 = vsub.f32 %v4633, %v4641
  %4644 = vrot.lane.b32.xlu0 %v3077, 127
  %v4645 = vpop.permute.xlu0 %4644
  %v4647 = vadd.f32 %v3077, %v4645
  %v4648 = vrcp.pop 2.0
  %v4649 = vmul.f32 %v4618, %v4648
  %4651 = vrot.lane.b32.xlu0 %v4649, 1
  %v4652 = vpop.permute.xlu0 %4651
  %v4654 = vsub.f32 %v4618, %v4652
  %4656 = vrot.lane.b32.xlu0 %v4618, 126
  %v4657 = vpop.permute.xlu0 %4656
  %v4659 = vmul.f32 %v4618, %v4657
  %4661 = vrot.lane.b32.xlu0 %v4659, 120
  %v4662 = vpop.permute.xlu0 %4661
  %v4664 = vsub.f32 %v4647, %v4662
  %4666 = vrot.lane.b32.xlu0 %v4664, 6
  %v4667 = vpop.permute.xlu0 %4666
  %v4669 = vmul.f32 %v4618, %v4667
  %v4670 = vtanh.pop %v4669
  %4671 = vrot.lane.b32.xlu0 %v4618, 127
  %v4672 = vpop.permute.xlu0 %4671
  %v4674 = vmul.f32 %v4618, %v4672
  %4676 = vrot.lane.b32.xlu0 %v4674, 119
  %v4677 = vpop.permute.xlu0 %4676
  %v4679 = vsub.f32 %v4647, %v4677
  %4681 = vrot.lane.b32.xlu0 %v4679, 7
  %v4682 = vpop.permute.xlu0 %4681
  %v4684 = vmul.f32 %v4618, %v4682
  %v4685 = vtanh.pop %v4684
  %4687 = vrot.lane.b32.xlu0 %v4685, 127
  %v4688 = vpop.permute.xlu0 %4687
  %v4690 = vsub.f32 %v4670, %v4688
  %v4691 = vadd.f32 %v4690, 2.0
  %4693 = vrot.lane.b32.xlu0 %v4691, 126
  %v4694 = vpop.permute.xlu0 %4693
  %v4696 = vmul.f32 %v4654, %v4694
  %4698 = vrot.lane.b32.xlu0 %v4696, 127
  %v4699 = vpop.permute.xlu0 %4698
  %v4701 = vadd.f32 %v4618, %v4699
  %4702 = vrot.lane.b32.xlu0 %v4618, 7
  %v4703 = vpop.permute.xlu0 %4702
  %v4705 = vmul.f32 %v4618, %v4703
  %4706 = vrot.lane.b32.xlu0 %v3077, 10
  %v4707 = vpop.permute.xlu0 %4706
  %v4709 = vmul.f32 %v4705, %v4707
  %4710 = vrot.lane.b32.xlu0 %v4618, 1
  %v4711 = vpop.permute.xlu0 %4710
  %v4713 = vrcp.pop %v4711
  %v4714 = vmul.f32 %v4709, %v4713
  %4715 = vrot.lane.b32.xlu0 %v3077, 21
  %v4716 = vpop.permute.xlu0 %4715
  %v4718 = vmul.f32 %v4618, %v4716
  %v4719 = vmul.f32 %v4718, %v4657
  %4721 = vrot.lane.b32.xlu0 %v4719, 127
  %v4722 = vpop.permute.xlu0 %4721
  %v4724 = vadd.f32 %v4618, %v4722
  %4725 = vrot.lane.b32.xlu0 %v3077, 23
  %v4726 = vpop.permute.xlu0 %4725
  %v4728 = vmul.f32 %v4724, %v4726
  %v4729 = vand.u32 2147483647, %v3077
  %4731 = vrot.lane.b32.xlu0 %v4729, 25
  %v4732 = vpop.permute.xlu0 %4731
  %v4734 = vadd.f32 %v4618, %v4732
  %4736 = vrot.lane.b32.xlu0 %v4734, 126
  %v4737 = vpop.permute.xlu0 %4736
  %v4739 = vrcp.pop %v4737
  %v4740 = vmul.f32 %v4728, %v4739
  %v4741 = vsub.f32 0.0, %v4618
  %4742 = vrot.lane.b32.xlu0 %v3077, 1
  %v4743 = vpop.permute.xlu0 %4742
  %v4745 = vmul.f32 %v4741, %v4743
  %v4746 = vrot.slane %v3084, 7
  %v4747 = vsel %vm465, %v4746, %v3083
  %v4748 = vrot.slane %v3085, 6
  %v4749 = vsel %vm468, %v4748, %v4747
  %v4750 = vrot.slane %v3086, 5
  %v4751 = vsel %vm471, %v4750, %v4749
  %v4752 = vrot.slane %v3087, 4
  %v4753 = vsel %vm474, %v4752, %v4751
  %v4754 = vrot.slane %v3088, 3
  %v4755 = vsel %vm477, %v4754, %v4753
  %v4756 = vrot.slane %v3089, 2
  %v4757 = vsel %vm480, %v4756, %v4755
  %v4758 = vrot.slane %v3090, 1
  %v4759 = vsel %vm483, %v4758, %v4757
  %4760 = vrot.lane.b32.xlu0 %v4759, 14
  %v4761 = vpop.permute.xlu0 %4760
  %v4763 = vmul.f32 %v4618, %v4761
  %4765 = vrot.lane.b32.xlu0 %v4763, 119
  %v4766 = vpop.permute.xlu0 %4765
  %v4768 = vadd.f32 %v4745, %v4766
  %v4769 = vsub.f32 0.0, %v4701
  %4770 = vrot.lane.b32.xlu0 %v3077, 2
  %v4771 = vpop.permute.xlu0 %4770
  %v4773 = vmul.f32 %v4769, %v4771
  %v4774 = vmul.f32 %v4618, %v4743
  %4776 = vrot.lane.b32.xlu0 %v4774, 2
  %v4777 = vpop.permute.xlu0 %4776
  %v4779 = vadd.f32 %v4773, %v4777
  %4780 = vrot.lane.b32.xlu0 %v3077, 3
  %v4781 = vpop.permute.xlu0 %4780
  %v4783 = vmul.f32 %v4741, %v4781
  %v4784 = vmul.f32 %v4701, %v4771
  %4786 = vrot.lane.b32.xlu0 %v4784, 2
  %v4787 = vpop.permute.xlu0 %4786
  %v4789 = vadd.f32 %v4783, %v4787
  %v4790 = vadd.f32 %v4618, %v4657
  %v4791 = vsub.f32 0.0, %v4790
  %v4792 = vmul.f32 %v4791, %v4771
  %v4793 = vmul.f32 %v4618, %v3077
  %4795 = vrot.lane.b32.xlu0 %v4793, 1
  %v4796 = vpop.permute.xlu0 %4795
  %v4798 = vadd.f32 %v4792, %v4796
  %4799 = vrot.lane.b32.xlu0 %v4759, 3
  %v4800 = vpop.permute.xlu0 %4799
  %v4802 = vadd.f32 %v4798, %v4800
  %v4803 = vmul.f32 %v4791, %v3077
  %v4804 = vmul.f32 %v4618, %v4771
  %4806 = vrot.lane.b32.xlu0 %v4804, 127
  %v4807 = vpop.permute.xlu0 %4806
  %v4809 = vadd.f32 %v4803, %v4807
  %v4810 = vsub.f32 %v3077, %v4781
  %4812 = vrot.lane.b32.xlu0 %v4810, 17
  %v4813 = vpop.permute.xlu0 %4812
  %v4815 = vmul.f32 %v4741, %v4813
  %4816 = vrot.lane.b32.xlu0 %v3077, 24
  %v4817 = vpop.permute.xlu0 %4816
  %v4819 = vmul.f32 %v4741, %v4817
  %4820 = vrot.lane.b32.xlu0 %v3077, 26
  %v4821 = vpop.permute.xlu0 %4820
  %v4823 = vmul.f32 %v4618, %v4821
  %v4824 = vadd.f32 %v4819, %v4823
  %4826 = vrot.lane.b32.xlu0 %v4714, 1
  %v4827 = vpop.permute.xlu0 %4826
  %v4829 = vadd.f32 %v4643, %v4827
  %4830 = vrot.lane.b32.xlu0 %v4618, 124
  %v4831 = vpop.permute.xlu0 %4830
  %v4833 = vsub.f32 %v4829, %v4831
  %v4834 = vmul.f32 %v4618, %v3080
  %4836 = vrot.lane.b32.xlu0 %v4834, 18
  %v4837 = vpop.permute.xlu0 %4836
  %v4839 = vsub.f32 %v4833, %v4837
  %4840 = vrot.lane.b32.xlu0 %v4774, 17
  %v4841 = vpop.permute.xlu0 %4840
  %v4843 = vadd.f32 %v4839, %v4841
  %v4844 = vsub.f32 0.0, %v4740
  %4845 = vrot.lane.b32.xlu0 %v4834, 23
  %v4846 = vpop.permute.xlu0 %4845
  %v4848 = vadd.f32 %v4844, %v4846
  %4849 = vrot.lane.b32.xlu0 %v4774, 22
  %v4850 = vpop.permute.xlu0 %4849
  %v4852 = vsub.f32 %v4848, %v4850
  %4854 = vrot.lane.b32.xlu0 %v4843, 110
  %v4855 = vpop.permute.xlu0 %4854
  %v4857 = vadd.f32 %v3080, %v4855
  %4859 = vrot.lane.b32.xlu0 %v4852, 105
  %v4860 = vpop.permute.xlu0 %4859
  %v4862 = vadd.f32 %v3077, %v4860
  %4864 = vrot.lane.b32.xlu0 %v4802, 126
  %v4865 = vpop.permute.xlu0 %4864
  %v4867 = vadd.f32 %v3077, %v4865
  %v4868 = vadd.f32 %v3077, %v4809
  %4870 = vrot.lane.b32.xlu0 %v4824, 104
  %v4871 = vpop.permute.xlu0 %4870
  %v4873 = vadd.f32 %v3077, %v4871
  %4875 = vrot.lane.b32.xlu0 %v4815, 111
  %v4876 = vpop.permute.xlu0 %4875
  %v4878 = vadd.f32 %v3077, %v4876
  %4880 = vrot.lane.b32.xlu0 %v4768, 127
  %v4881 = vpop.permute.xlu0 %4880
  %v4883 = vadd.f32 %v3077, %v4881
  %4885 = vrot.lane.b32.xlu0 %v4779, 126
  %v4886 = vpop.permute.xlu0 %4885
  %v4888 = vadd.f32 %v3077, %v4886
  %4890 = vrot.lane.b32.xlu0 %v4789, 125
  %v4891 = vpop.permute.xlu0 %4890
  %v4893 = vadd.f32 %v3077, %v4891
  %4895 = vrot.lane.b32.xlu0 %v4857, 19
  %v4896 = vpop.permute.xlu0 %4895
  %v4898 = vmul.f32 %v4619, %v4896
  %4900 = vrot.lane.b32.xlu0 %v4898, 127
  %v4901 = vpop.permute.xlu0 %4900
  %v4903 = vsub.f32 %v4619, %v4901
  %4905 = vrot.lane.b32.xlu0 %v4878, 16
  %v4906 = vpop.permute.xlu0 %4905
  %v4908 = vmul.f32 %v4619, %v4906
  %4910 = vrot.lane.b32.xlu0 %v4908, 126
  %v4911 = vpop.permute.xlu0 %4910
  %v4913 = vsub.f32 %v4903, %v4911
  %4915 = vrot.lane.b32.xlu0 %v4888, 127
  %v4916 = vpop.permute.xlu0 %4915
  %v4918 = vadd.f32 %v4883, %v4916
  %v4919 = vmul.f32 %v4619, %v4648
  %4921 = vrot.lane.b32.xlu0 %v4919, 1
  %v4922 = vpop.permute.xlu0 %4921
  %v4924 = vsub.f32 %v4619, %v4922
  %4926 = vrot.lane.b32.xlu0 %v4619, 126
  %v4927 = vpop.permute.xlu0 %4926
  %v4929 = vmul.f32 %v4619, %v4927
  %4931 = vrot.lane.b32.xlu0 %v4929, 120
  %v4932 = vpop.permute.xlu0 %4931
  %v4934 = vsub.f32 %v4918, %v4932
  %4936 = vrot.lane.b32.xlu0 %v4934, 6
  %v4937 = vpop.permute.xlu0 %4936
  %v4939 = vmul.f32 %v4619, %v4937
  %v4940 = vtanh.pop %v4939
  %4941 = vrot.lane.b32.xlu0 %v4619, 127
  %v4942 = vpop.permute.xlu0 %4941
  %v4944 = vmul.f32 %v4619, %v4942
  %4946 = vrot.lane.b32.xlu0 %v4944, 119
  %v4947 = vpop.permute.xlu0 %4946
  %v4949 = vsub.f32 %v4918, %v4947
  %4951 = vrot.lane.b32.xlu0 %v4949, 7
  %v4952 = vpop.permute.xlu0 %4951
  %v4954 = vmul.f32 %v4619, %v4952
  %v4955 = vtanh.pop %v4954
  %4957 = vrot.lane.b32.xlu0 %v4955, 127
  %v4958 = vpop.permute.xlu0 %4957
  %v4960 = vsub.f32 %v4940, %v4958
  %v4961 = vadd.f32 %v4960, 2.0
  %4963 = vrot.lane.b32.xlu0 %v4961, 126
  %v4964 = vpop.permute.xlu0 %4963
  %v4966 = vmul.f32 %v4924, %v4964
  %4968 = vrot.lane.b32.xlu0 %v4966, 127
  %v4969 = vpop.permute.xlu0 %4968
  %v4971 = vadd.f32 %v4619, %v4969
  %4972 = vrot.lane.b32.xlu0 %v4619, 7
  %v4973 = vpop.permute.xlu0 %4972
  %v4975 = vmul.f32 %v4619, %v4973
  %4977 = vrot.lane.b32.xlu0 %v4893, 10
  %v4978 = vpop.permute.xlu0 %4977
  %v4980 = vmul.f32 %v4975, %v4978
  %4981 = vrot.lane.b32.xlu0 %v4619, 1
  %v4982 = vpop.permute.xlu0 %4981
  %v4984 = vrcp.pop %v4982
  %v4985 = vmul.f32 %v4980, %v4984
  %4987 = vrot.lane.b32.xlu0 %v4873, 21
  %v4988 = vpop.permute.xlu0 %4987
  %v4990 = vmul.f32 %v4619, %v4988
  %v4991 = vmul.f32 %v4990, %v4927
  %4993 = vrot.lane.b32.xlu0 %v4991, 127
  %v4994 = vpop.permute.xlu0 %4993
  %v4996 = vadd.f32 %v4619, %v4994
  %4998 = vrot.lane.b32.xlu0 %v4862, 23
  %v4999 = vpop.permute.xlu0 %4998
  %v5001 = vmul.f32 %v4996, %v4999
  %v5002 = vand.u32 2147483647, %v4862
  %5004 = vrot.lane.b32.xlu0 %v5002, 25
  %v5005 = vpop.permute.xlu0 %5004
  %v5007 = vadd.f32 %v4619, %v5005
  %5009 = vrot.lane.b32.xlu0 %v5007, 126
  %v5010 = vpop.permute.xlu0 %5009
  %v5012 = vrcp.pop %v5010
  %v5013 = vmul.f32 %v5001, %v5012
  %v5014 = vsub.f32 0.0, %v4619
  %5016 = vrot.lane.b32.xlu0 %v4883, 1
  %v5017 = vpop.permute.xlu0 %5016
  %v5019 = vmul.f32 %v5014, %v5017
  %v5020 = vrot.slane %v3083, 1
  %v5021 = vsel %vm465, %v3084, %v5020
  %v5022 = vrot.slane %v3085, 7
  %v5023 = vsel %vm468, %v5022, %v5021
  %v5024 = vrot.slane %v3086, 6
  %v5025 = vsel %vm471, %v5024, %v5023
  %v5026 = vrot.slane %v3087, 5
  %v5027 = vsel %vm474, %v5026, %v5025
  %v5028 = vrot.slane %v3088, 4
  %v5029 = vsel %vm477, %v5028, %v5027
  %v5030 = vrot.slane %v3089, 3
  %v5031 = vsel %vm480, %v5030, %v5029
  %v5032 = vrot.slane %v3090, 2
  %v5033 = vsel %vm483, %v5032, %v5031
  %5034 = vrot.lane.b32.xlu0 %v5033, 14
  %v5035 = vpop.permute.xlu0 %5034
  %v5037 = vmul.f32 %v4619, %v5035
  %5039 = vrot.lane.b32.xlu0 %v5037, 119
  %v5040 = vpop.permute.xlu0 %5039
  %v5042 = vadd.f32 %v5019, %v5040
  %v5043 = vsub.f32 0.0, %v4971
  %5044 = vrot.lane.b32.xlu0 %v4888, 2
  %v5045 = vpop.permute.xlu0 %5044
  %v5047 = vmul.f32 %v5043, %v5045
  %v5048 = vmul.f32 %v4619, %v5017
  %5050 = vrot.lane.b32.xlu0 %v5048, 2
  %v5051 = vpop.permute.xlu0 %5050
  %v5053 = vadd.f32 %v5047, %v5051
  %5054 = vrot.lane.b32.xlu0 %v4893, 3
  %v5055 = vpop.permute.xlu0 %5054
  %v5057 = vmul.f32 %v5014, %v5055
  %v5058 = vmul.f32 %v4971, %v5045
  %5060 = vrot.lane.b32.xlu0 %v5058, 2
  %v5061 = vpop.permute.xlu0 %5060
  %v5063 = vadd.f32 %v5057, %v5061
  %v5064 = vadd.f32 %v4619, %v4927
  %v5065 = vsub.f32 0.0, %v5064
  %5067 = vrot.lane.b32.xlu0 %v4867, 2
  %v5068 = vpop.permute.xlu0 %5067
  %v5070 = vmul.f32 %v5065, %v5068
  %v5071 = vmul.f32 %v4619, %v4868
  %5073 = vrot.lane.b32.xlu0 %v5071, 1
  %v5074 = vpop.permute.xlu0 %5073
  %v5076 = vadd.f32 %v5070, %v5074
  %5077 = vrot.lane.b32.xlu0 %v5033, 3
  %v5078 = vpop.permute.xlu0 %5077
  %v5080 = vadd.f32 %v5076, %v5078
  %v5081 = vmul.f32 %v5065, %v4868
  %v5082 = vmul.f32 %v4619, %v5068
  %5084 = vrot.lane.b32.xlu0 %v5082, 127
  %v5085 = vpop.permute.xlu0 %5084
  %v5087 = vadd.f32 %v5081, %v5085
  %5088 = vrot.lane.b32.xlu0 %v4867, 3
  %v5089 = vpop.permute.xlu0 %5088
  %v5091 = vsub.f32 %v4878, %v5089
  %5093 = vrot.lane.b32.xlu0 %v5091, 17
  %v5094 = vpop.permute.xlu0 %5093
  %v5096 = vmul.f32 %v5014, %v5094
  %5097 = vrot.lane.b32.xlu0 %v4873, 24
  %v5098 = vpop.permute.xlu0 %5097
  %v5100 = vmul.f32 %v5014, %v5098
  %5101 = vrot.lane.b32.xlu0 %v4867, 26
  %v5102 = vpop.permute.xlu0 %5101
  %v5104 = vmul.f32 %v4619, %v5102
  %v5105 = vadd.f32 %v5100, %v5104
  %5107 = vrot.lane.b32.xlu0 %v4985, 1
  %v5108 = vpop.permute.xlu0 %5107
  %v5110 = vadd.f32 %v4913, %v5108
  %5111 = vrot.lane.b32.xlu0 %v4619, 124
  %v5112 = vpop.permute.xlu0 %5111
  %v5114 = vsub.f32 %v5110, %v5112
  %v5115 = vmul.f32 %v4619, %v4857
  %5117 = vrot.lane.b32.xlu0 %v5115, 18
  %v5118 = vpop.permute.xlu0 %5117
  %v5120 = vsub.f32 %v5114, %v5118
  %5121 = vrot.lane.b32.xlu0 %v4862, 1
  %v5122 = vpop.permute.xlu0 %5121
  %v5124 = vmul.f32 %v4619, %v5122
  %5126 = vrot.lane.b32.xlu0 %v5124, 17
  %v5127 = vpop.permute.xlu0 %5126
  %v5129 = vadd.f32 %v5120, %v5127
  %v5130 = vsub.f32 0.0, %v5013
  %5131 = vrot.lane.b32.xlu0 %v5115, 23
  %v5132 = vpop.permute.xlu0 %5131
  %v5134 = vadd.f32 %v5130, %v5132
  %5135 = vrot.lane.b32.xlu0 %v5124, 22
  %v5136 = vpop.permute.xlu0 %5135
  %v5138 = vsub.f32 %v5134, %v5136
  %5140 = vrot.lane.b32.xlu0 %v5129, 110
  %v5141 = vpop.permute.xlu0 %5140
  %v5143 = vadd.f32 %v4857, %v5141
  %5145 = vrot.lane.b32.xlu0 %v5138, 105
  %v5146 = vpop.permute.xlu0 %5145
  %v5148 = vadd.f32 %v4862, %v5146
  %5150 = vrot.lane.b32.xlu0 %v5080, 126
  %v5151 = vpop.permute.xlu0 %5150
  %v5153 = vadd.f32 %v4867, %v5151
  %v5154 = vadd.f32 %v4868, %v5087
  %5156 = vrot.lane.b32.xlu0 %v5105, 104
  %v5157 = vpop.permute.xlu0 %5156
  %v5159 = vadd.f32 %v4873, %v5157
  %5161 = vrot.lane.b32.xlu0 %v5096, 111
  %v5162 = vpop.permute.xlu0 %5161
  %v5164 = vadd.f32 %v4878, %v5162
  %5166 = vrot.lane.b32.xlu0 %v5042, 127
  %v5167 = vpop.permute.xlu0 %5166
  %v5169 = vadd.f32 %v4883, %v5167
  %5171 = vrot.lane.b32.xlu0 %v5053, 126
  %v5172 = vpop.permute.xlu0 %5171
  %v5174 = vadd.f32 %v4888, %v5172
  %5176 = vrot.lane.b32.xlu0 %v5063, 125
  %v5177 = vpop.permute.xlu0 %5176
  %v5179 = vadd.f32 %v4893, %v5177
  %5181 = vrot.lane.b32.xlu0 %v5143, 19
  %v5182 = vpop.permute.xlu0 %5181
  %v5184 = vmul.f32 %v4620, %v5182
  %5186 = vrot.lane.b32.xlu0 %v5184, 127
  %v5187 = vpop.permute.xlu0 %5186
  %v5189 = vsub.f32 %v4620, %v5187
  %5191 = vrot.lane.b32.xlu0 %v5164, 16
  %v5192 = vpop.permute.xlu0 %5191
  %v5194 = vmul.f32 %v4620, %v5192
  %5196 = vrot.lane.b32.xlu0 %v5194, 126
  %v5197 = vpop.permute.xlu0 %5196
  %v5199 = vsub.f32 %v5189, %v5197
  %5201 = vrot.lane.b32.xlu0 %v5174, 127
  %v5202 = vpop.permute.xlu0 %5201
  %v5204 = vadd.f32 %v5169, %v5202
  %v5205 = vmul.f32 %v4620, %v4648
  %5207 = vrot.lane.b32.xlu0 %v5205, 1
  %v5208 = vpop.permute.xlu0 %5207
  %v5210 = vsub.f32 %v4620, %v5208
  %5212 = vrot.lane.b32.xlu0 %v4620, 126
  %v5213 = vpop.permute.xlu0 %5212
  %v5215 = vmul.f32 %v4620, %v5213
  %5217 = vrot.lane.b32.xlu0 %v5215, 120
  %v5218 = vpop.permute.xlu0 %5217
  %v5220 = vsub.f32 %v5204, %v5218
  %5222 = vrot.lane.b32.xlu0 %v5220, 6
  %v5223 = vpop.permute.xlu0 %5222
  %v5225 = vmul.f32 %v4620, %v5223
  %v5226 = vtanh.pop %v5225
  %5227 = vrot.lane.b32.xlu0 %v4620, 127
  %v5228 = vpop.permute.xlu0 %5227
  %v5230 = vmul.f32 %v4620, %v5228
  %5232 = vrot.lane.b32.xlu0 %v5230, 119
  %v5233 = vpop.permute.xlu0 %5232
  %v5235 = vsub.f32 %v5204, %v5233
  %5237 = vrot.lane.b32.xlu0 %v5235, 7
  %v5238 = vpop.permute.xlu0 %5237
  %v5240 = vmul.f32 %v4620, %v5238
  %v5241 = vtanh.pop %v5240
  %5243 = vrot.lane.b32.xlu0 %v5241, 127
  %v5244 = vpop.permute.xlu0 %5243
  %v5246 = vsub.f32 %v5226, %v5244
  %v5247 = vadd.f32 %v5246, 2.0
  %5249 = vrot.lane.b32.xlu0 %v5247, 126
  %v5250 = vpop.permute.xlu0 %5249
  %v5252 = vmul.f32 %v5210, %v5250
  %5254 = vrot.lane.b32.xlu0 %v5252, 127
  %v5255 = vpop.permute.xlu0 %5254
  %v5257 = vadd.f32 %v4620, %v5255
  %5258 = vrot.lane.b32.xlu0 %v4620, 7
  %v5259 = vpop.permute.xlu0 %5258
  %v5261 = vmul.f32 %v4620, %v5259
  %5263 = vrot.lane.b32.xlu0 %v5179, 10
  %v5264 = vpop.permute.xlu0 %5263
  %v5266 = vmul.f32 %v5261, %v5264
  %5267 = vrot.lane.b32.xlu0 %v4620, 1
  %v5268 = vpop.permute.xlu0 %5267
  %v5270 = vrcp.pop %v5268
  %v5271 = vmul.f32 %v5266, %v5270
  %5273 = vrot.lane.b32.xlu0 %v5159, 21
  %v5274 = vpop.permute.xlu0 %5273
  %v5276 = vmul.f32 %v4620, %v5274
  %v5277 = vmul.f32 %v5276, %v5213
  %5279 = vrot.lane.b32.xlu0 %v5277, 127
  %v5280 = vpop.permute.xlu0 %5279
  %v5282 = vadd.f32 %v4620, %v5280
  %5284 = vrot.lane.b32.xlu0 %v5148, 23
  %v5285 = vpop.permute.xlu0 %5284
  %v5287 = vmul.f32 %v5282, %v5285
  %v5288 = vand.u32 2147483647, %v5148
  %5290 = vrot.lane.b32.xlu0 %v5288, 25
  %v5291 = vpop.permute.xlu0 %5290
  %v5293 = vadd.f32 %v4620, %v5291
  %5295 = vrot.lane.b32.xlu0 %v5293, 126
  %v5296 = vpop.permute.xlu0 %5295
  %v5298 = vrcp.pop %v5296
  %v5299 = vmul.f32 %v5287, %v5298
  %v5300 = vsub.f32 0.0, %v4620
  %5302 = vrot.lane.b32.xlu0 %v5169, 1
  %v5303 = vpop.permute.xlu0 %5302
  %v5305 = vmul.f32 %v5300, %v5303
  %v5306 = vrot.slane %v3083, 2
  %v5307 = vrot.slane %v3084, 1
  %v5308 = vsel %vm465, %v5307, %v5306
  %v5309 = vsel %vm468, %v3085, %v5308
  %v5310 = vrot.slane %v3086, 7
  %v5311 = vsel %vm471, %v5310, %v5309
  %v5312 = vrot.slane %v3087, 6
  %v5313 = vsel %vm474, %v5312, %v5311
  %v5314 = vrot.slane %v3088, 5
  %v5315 = vsel %vm477, %v5314, %v5313
  %v5316 = vrot.slane %v3089, 4
  %v5317 = vsel %vm480, %v5316, %v5315
  %v5318 = vrot.slane %v3090, 3
  %v5319 = vsel %vm483, %v5318, %v5317
  %5320 = vrot.lane.b32.xlu0 %v5319, 14
  %v5321 = vpop.permute.xlu0 %5320
  %v5323 = vmul.f32 %v4620, %v5321
  %5325 = vrot.lane.b32.xlu0 %v5323, 119
  %v5326 = vpop.permute.xlu0 %5325
  %v5328 = vadd.f32 %v5305, %v5326
  %v5329 = vsub.f32 0.0, %v5257
  %5330 = vrot.lane.b32.xlu0 %v5174, 2
  %v5331 = vpop.permute.xlu0 %5330
  %v5333 = vmul.f32 %v5329, %v5331
  %v5334 = vmul.f32 %v4620, %v5303
  %5336 = vrot.lane.b32.xlu0 %v5334, 2
  %v5337 = vpop.permute.xlu0 %5336
  %v5339 = vadd.f32 %v5333, %v5337
  %5340 = vrot.lane.b32.xlu0 %v5179, 3
  %v5341 = vpop.permute.xlu0 %5340
  %v5343 = vmul.f32 %v5300, %v5341
  %v5344 = vmul.f32 %v5257, %v5331
  %5346 = vrot.lane.b32.xlu0 %v5344, 2
  %v5347 = vpop.permute.xlu0 %5346
  %v5349 = vadd.f32 %v5343, %v5347
  %v5350 = vadd.f32 %v4620, %v5213
  %v5351 = vsub.f32 0.0, %v5350
  %5353 = vrot.lane.b32.xlu0 %v5153, 2
  %v5354 = vpop.permute.xlu0 %5353
  %v5356 = vmul.f32 %v5351, %v5354
  %v5357 = vmul.f32 %v4620, %v5154
  %5359 = vrot.lane.b32.xlu0 %v5357, 1
  %v5360 = vpop.permute.xlu0 %5359
  %v5362 = vadd.f32 %v5356, %v5360
  %5363 = vrot.lane.b32.xlu0 %v5319, 3
  %v5364 = vpop.permute.xlu0 %5363
  %v5366 = vadd.f32 %v5362, %v5364
  %v5367 = vmul.f32 %v5351, %v5154
  %v5368 = vmul.f32 %v4620, %v5354
  %5370 = vrot.lane.b32.xlu0 %v5368, 127
  %v5371 = vpop.permute.xlu0 %5370
  %v5373 = vadd.f32 %v5367, %v5371
  %5374 = vrot.lane.b32.xlu0 %v5153, 3
  %v5375 = vpop.permute.xlu0 %5374
  %v5377 = vsub.f32 %v5164, %v5375
  %5379 = vrot.lane.b32.xlu0 %v5377, 17
  %v5380 = vpop.permute.xlu0 %5379
  %v5382 = vmul.f32 %v5300, %v5380
  %5383 = vrot.lane.b32.xlu0 %v5159, 24
  %v5384 = vpop.permute.xlu0 %5383
  %v5386 = vmul.f32 %v5300, %v5384
  %5387 = vrot.lane.b32.xlu0 %v5153, 26
  %v5388 = vpop.permute.xlu0 %5387
  %v5390 = vmul.f32 %v4620, %v5388
  %v5391 = vadd.f32 %v5386, %v5390
  %5393 = vrot.lane.b32.xlu0 %v5271, 1
  %v5394 = vpop.permute.xlu0 %5393
  %v5396 = vadd.f32 %v5199, %v5394
  %5397 = vrot.lane.b32.xlu0 %v4620, 124
  %v5398 = vpop.permute.xlu0 %5397
  %v5400 = vsub.f32 %v5396, %v5398
  %v5401 = vmul.f32 %v4620, %v5143
  %5403 = vrot.lane.b32.xlu0 %v5401, 18
  %v5404 = vpop.permute.xlu0 %5403
  %v5406 = vsub.f32 %v5400, %v5404
  %5407 = vrot.lane.b32.xlu0 %v5148, 1
  %v5408 = vpop.permute.xlu0 %5407
  %v5410 = vmul.f32 %v4620, %v5408
  %5412 = vrot.lane.b32.xlu0 %v5410, 17
  %v5413 = vpop.permute.xlu0 %5412
  %v5415 = vadd.f32 %v5406, %v5413
  %v5416 = vsub.f32 0.0, %v5299
  %5417 = vrot.lane.b32.xlu0 %v5401, 23
  %v5418 = vpop.permute.xlu0 %5417
  %v5420 = vadd.f32 %v5416, %v5418
  %5421 = vrot.lane.b32.xlu0 %v5410, 22
  %v5422 = vpop.permute.xlu0 %5421
  %v5424 = vsub.f32 %v5420, %v5422
  %5426 = vrot.lane.b32.xlu0 %v5415, 110
  %v5427 = vpop.permute.xlu0 %5426
  %v5429 = vadd.f32 %v5143, %v5427
  %5431 = vrot.lane.b32.xlu0 %v5424, 105
  %v5432 = vpop.permute.xlu0 %5431
  %v5434 = vadd.f32 %v5148, %v5432
  %5436 = vrot.lane.b32.xlu0 %v5366, 126
  %v5437 = vpop.permute.xlu0 %5436
  %v5439 = vadd.f32 %v5153, %v5437
  %v5440 = vadd.f32 %v5154, %v5373
  %5442 = vrot.lane.b32.xlu0 %v5391, 104
  %v5443 = vpop.permute.xlu0 %5442
  %v5445 = vadd.f32 %v5159, %v5443
  %5447 = vrot.lane.b32.xlu0 %v5382, 111
  %v5448 = vpop.permute.xlu0 %5447
  %v5450 = vadd.f32 %v5164, %v5448
  %5452 = vrot.lane.b32.xlu0 %v5328, 127
  %v5453 = vpop.permute.xlu0 %5452
  %v5455 = vadd.f32 %v5169, %v5453
  %5457 = vrot.lane.b32.xlu0 %v5339, 126
  %v5458 = vpop.permute.xlu0 %5457
  %v5460 = vadd.f32 %v5174, %v5458
  %5462 = vrot.lane.b32.xlu0 %v5349, 125
  %v5463 = vpop.permute.xlu0 %5462
  %v5465 = vadd.f32 %v5179, %v5463
  %5467 = vrot.lane.b32.xlu0 %v5429, 19
  %v5468 = vpop.permute.xlu0 %5467
  %v5470 = vmul.f32 %v4621, %v5468
  %5472 = vrot.lane.b32.xlu0 %v5470, 127
  %v5473 = vpop.permute.xlu0 %5472
  %v5475 = vsub.f32 %v4621, %v5473
  %5477 = vrot.lane.b32.xlu0 %v5450, 16
  %v5478 = vpop.permute.xlu0 %5477
  %v5480 = vmul.f32 %v4621, %v5478
  %5482 = vrot.lane.b32.xlu0 %v5480, 126
  %v5483 = vpop.permute.xlu0 %5482
  %v5485 = vsub.f32 %v5475, %v5483
  %5487 = vrot.lane.b32.xlu0 %v5460, 127
  %v5488 = vpop.permute.xlu0 %5487
  %v5490 = vadd.f32 %v5455, %v5488
  %v5491 = vmul.f32 %v4621, %v4648
  %5493 = vrot.lane.b32.xlu0 %v5491, 1
  %v5494 = vpop.permute.xlu0 %5493
  %v5496 = vsub.f32 %v4621, %v5494
  %5498 = vrot.lane.b32.xlu0 %v4621, 126
  %v5499 = vpop.permute.xlu0 %5498
  %v5501 = vmul.f32 %v4621, %v5499
  %5503 = vrot.lane.b32.xlu0 %v5501, 120
  %v5504 = vpop.permute.xlu0 %5503
  %v5506 = vsub.f32 %v5490, %v5504
  %5508 = vrot.lane.b32.xlu0 %v5506, 6
  %v5509 = vpop.permute.xlu0 %5508
  %v5511 = vmul.f32 %v4621, %v5509
  %v5512 = vtanh.pop %v5511
  %5513 = vrot.lane.b32.xlu0 %v4621, 127
  %v5514 = vpop.permute.xlu0 %5513
  %v5516 = vmul.f32 %v4621, %v5514
  %5518 = vrot.lane.b32.xlu0 %v5516, 119
  %v5519 = vpop.permute.xlu0 %5518
  %v5521 = vsub.f32 %v5490, %v5519
  %5523 = vrot.lane.b32.xlu0 %v5521, 7
  %v5524 = vpop.permute.xlu0 %5523
  %v5526 = vmul.f32 %v4621, %v5524
  %v5527 = vtanh.pop %v5526
  %5529 = vrot.lane.b32.xlu0 %v5527, 127
  %v5530 = vpop.permute.xlu0 %5529
  %v5532 = vsub.f32 %v5512, %v5530
  %v5533 = vadd.f32 %v5532, 2.0
  %5535 = vrot.lane.b32.xlu0 %v5533, 126
  %v5536 = vpop.permute.xlu0 %5535
  %v5538 = vmul.f32 %v5496, %v5536
  %5540 = vrot.lane.b32.xlu0 %v5538, 127
  %v5541 = vpop.permute.xlu0 %5540
  %v5543 = vadd.f32 %v4621, %v5541
  %5544 = vrot.lane.b32.xlu0 %v4621, 7
  %v5545 = vpop.permute.xlu0 %5544
  %v5547 = vmul.f32 %v4621, %v5545
  %5549 = vrot.lane.b32.xlu0 %v5465, 10
  %v5550 = vpop.permute.xlu0 %5549
  %v5552 = vmul.f32 %v5547, %v5550
  %5553 = vrot.lane.b32.xlu0 %v4621, 1
  %v5554 = vpop.permute.xlu0 %5553
  %v5556 = vrcp.pop %v5554
  %v5557 = vmul.f32 %v5552, %v5556
  %5559 = vrot.lane.b32.xlu0 %v5445, 21
  %v5560 = vpop.permute.xlu0 %5559
  %v5562 = vmul.f32 %v4621, %v5560
  %v5563 = vmul.f32 %v5562, %v5499
  %5565 = vrot.lane.b32.xlu0 %v5563, 127
  %v5566 = vpop.permute.xlu0 %5565
  %v5568 = vadd.f32 %v4621, %v5566
  %5570 = vrot.lane.b32.xlu0 %v5434, 23
  %v5571 = vpop.permute.xlu0 %5570
  %v5573 = vmul.f32 %v5568, %v5571
  %v5574 = vand.u32 2147483647, %v5434
  %5576 = vrot.lane.b32.xlu0 %v5574, 25
  %v5577 = vpop.permute.xlu0 %5576
  %v5579 = vadd.f32 %v4621, %v5577
  %5581 = vrot.lane.b32.xlu0 %v5579, 126
  %v5582 = vpop.permute.xlu0 %5581
  %v5584 = vrcp.pop %v5582
  %v5585 = vmul.f32 %v5573, %v5584
  %v5586 = vsub.f32 0.0, %v4621
  %5588 = vrot.lane.b32.xlu0 %v5455, 1
  %v5589 = vpop.permute.xlu0 %5588
  %v5591 = vmul.f32 %v5586, %v5589
  %v5592 = vrot.slane %v3083, 3
  %v5593 = vrot.slane %v3084, 2
  %v5594 = vsel %vm465, %v5593, %v5592
  %v5595 = vrot.slane %v3085, 1
  %v5596 = vsel %vm468, %v5595, %v5594
  %v5597 = vsel %vm471, %v3086, %v5596
  %v5598 = vrot.slane %v3087, 7
  %v5599 = vsel %vm474, %v5598, %v5597
  %v5600 = vrot.slane %v3088, 6
  %v5601 = vsel %vm477, %v5600, %v5599
  %v5602 = vrot.slane %v3089, 5
  %v5603 = vsel %vm480, %v5602, %v5601
  %v5604 = vrot.slane %v3090, 4
  %v5605 = vsel %vm483, %v5604, %v5603
  %5606 = vrot.lane.b32.xlu0 %v5605, 14
  %v5607 = vpop.permute.xlu0 %5606
  %v5609 = vmul.f32 %v4621, %v5607
  %5611 = vrot.lane.b32.xlu0 %v5609, 119
  %v5612 = vpop.permute.xlu0 %5611
  %v5614 = vadd.f32 %v5591, %v5612
  %v5615 = vsub.f32 0.0, %v5543
  %5616 = vrot.lane.b32.xlu0 %v5460, 2
  %v5617 = vpop.permute.xlu0 %5616
  %v5619 = vmul.f32 %v5615, %v5617
  %v5620 = vmul.f32 %v4621, %v5589
  %5622 = vrot.lane.b32.xlu0 %v5620, 2
  %v5623 = vpop.permute.xlu0 %5622
  %v5625 = vadd.f32 %v5619, %v5623
  %5626 = vrot.lane.b32.xlu0 %v5465, 3
  %v5627 = vpop.permute.xlu0 %5626
  %v5629 = vmul.f32 %v5586, %v5627
  %v5630 = vmul.f32 %v5543, %v5617
  %5632 = vrot.lane.b32.xlu0 %v5630, 2
  %v5633 = vpop.permute.xlu0 %5632
  %v5635 = vadd.f32 %v5629, %v5633
  %v5636 = vadd.f32 %v4621, %v5499
  %v5637 = vsub.f32 0.0, %v5636
  %5639 = vrot.lane.b32.xlu0 %v5439, 2
  %v5640 = vpop.permute.xlu0 %5639
  %v5642 = vmul.f32 %v5637, %v5640
  %v5643 = vmul.f32 %v4621, %v5440
  %5645 = vrot.lane.b32.xlu0 %v5643, 1
  %v5646 = vpop.permute.xlu0 %5645
  %v5648 = vadd.f32 %v5642, %v5646
  %5649 = vrot.lane.b32.xlu0 %v5605, 3
  %v5650 = vpop.permute.xlu0 %5649
  %v5652 = vadd.f32 %v5648, %v5650
  %5653 = vrot.lane.b32.xlu0 %v5439, 3
  %v5654 = vpop.permute.xlu0 %5653
  %v5656 = vsub.f32 %v5450, %v5654
  %5658 = vrot.lane.b32.xlu0 %v5656, 17
  %v5659 = vpop.permute.xlu0 %5658
  %v5661 = vmul.f32 %v5586, %v5659
  %5662 = vrot.lane.b32.xlu0 %v5445, 24
  %v5663 = vpop.permute.xlu0 %5662
  %v5665 = vmul.f32 %v5586, %v5663
  %5666 = vrot.lane.b32.xlu0 %v5439, 26
  %v5667 = vpop.permute.xlu0 %5666
  %v5669 = vmul.f32 %v4621, %v5667
  %v5670 = vadd.f32 %v5665, %v5669
  %5672 = vrot.lane.b32.xlu0 %v5557, 1
  %v5673 = vpop.permute.xlu0 %5672
  %v5675 = vadd.f32 %v5485, %v5673
  %5676 = vrot.lane.b32.xlu0 %v4621, 124
  %v5677 = vpop.permute.xlu0 %5676
  %v5679 = vsub.f32 %v5675, %v5677
  %v5680 = vmul.f32 %v4621, %v5429
  %5682 = vrot.lane.b32.xlu0 %v5680, 18
  %v5683 = vpop.permute.xlu0 %5682
  %v5685 = vsub.f32 %v5679, %v5683
  %5686 = vrot.lane.b32.xlu0 %v5434, 1
  %v5687 = vpop.permute.xlu0 %5686
  %v5689 = vmul.f32 %v4621, %v5687
  %5691 = vrot.lane.b32.xlu0 %v5689, 17
  %v5692 = vpop.permute.xlu0 %5691
  %v5694 = vadd.f32 %v5685, %v5692
  %v5695 = vsub.f32 0.0, %v5585
  %5696 = vrot.lane.b32.xlu0 %v5680, 23
  %v5697 = vpop.permute.xlu0 %5696
  %v5699 = vadd.f32 %v5695, %v5697
  %5700 = vrot.lane.b32.xlu0 %v5689, 22
  %v5701 = vpop.permute.xlu0 %5700
  %v5703 = vsub.f32 %v5699, %v5701
  %5705 = vrot.lane.b32.xlu0 %v5694, 110
  %v5706 = vpop.permute.xlu0 %5705
  %v5708 = vadd.f32 %v5429, %v5706
  %5710 = vrot.lane.b32.xlu0 %v5703, 105
  %v5711 = vpop.permute.xlu0 %5710
  %v5713 = vadd.f32 %v5434, %v5711
  %5715 = vrot.lane.b32.xlu0 %v5652, 126
  %v5716 = vpop.permute.xlu0 %5715
  %v5718 = vadd.f32 %v5439, %v5716
  %5720 = vrot.lane.b32.xlu0 %v5670, 104
  %v5721 = vpop.permute.xlu0 %5720
  %v5723 = vadd.f32 %v5445, %v5721
  %5725 = vrot.lane.b32.xlu0 %v5661, 111
  %v5726 = vpop.permute.xlu0 %5725
  %v5728 = vadd.f32 %v5450, %v5726
  %5730 = vrot.lane.b32.xlu0 %v5614, 127
  %v5731 = vpop.permute.xlu0 %5730
  %v5733 = vadd.f32 %v5455, %v5731
  %5735 = vrot.lane.b32.xlu0 %v5625, 126
  %v5736 = vpop.permute.xlu0 %5735
  %v5738 = vadd.f32 %v5460, %v5736
  %5740 = vrot.lane.b32.xlu0 %v5635, 125
  %v5741 = vpop.permute.xlu0 %5740
  %v5743 = vadd.f32 %v5465, %v5741
  %5745 = vrot.lane.b32.xlu0 %v5708, 19
  %v5746 = vpop.permute.xlu0 %5745
  %v5748 = vmul.f32 %v4622, %v5746
  %5750 = vrot.lane.b32.xlu0 %v5748, 127
  %v5751 = vpop.permute.xlu0 %5750
  %v5753 = vsub.f32 %v4622, %v5751
  %5755 = vrot.lane.b32.xlu0 %v5728, 16
  %v5756 = vpop.permute.xlu0 %5755
  %v5758 = vmul.f32 %v4622, %v5756
  %5760 = vrot.lane.b32.xlu0 %v5758, 126
  %v5761 = vpop.permute.xlu0 %5760
  %v5763 = vsub.f32 %v5753, %v5761
  %5765 = vrot.lane.b32.xlu0 %v5738, 127
  %v5766 = vpop.permute.xlu0 %5765
  %v5768 = vadd.f32 %v5733, %v5766
  %v5769 = vmul.f32 %v4622, %v4648
  %5771 = vrot.lane.b32.xlu0 %v5769, 1
  %v5772 = vpop.permute.xlu0 %5771
  %v5774 = vsub.f32 %v4622, %v5772
  %5776 = vrot.lane.b32.xlu0 %v4622, 126
  %v5777 = vpop.permute.xlu0 %5776
  %v5779 = vmul.f32 %v4622, %v5777
  %5781 = vrot.lane.b32.xlu0 %v5779, 120
  %v5782 = vpop.permute.xlu0 %5781
  %v5784 = vsub.f32 %v5768, %v5782
  %5786 = vrot.lane.b32.xlu0 %v5784, 6
  %v5787 = vpop.permute.xlu0 %5786
  %v5789 = vmul.f32 %v4622, %v5787
  %v5790 = vtanh.pop %v5789
  %5791 = vrot.lane.b32.xlu0 %v4622, 127
  %v5792 = vpop.permute.xlu0 %5791
  %v5794 = vmul.f32 %v4622, %v5792
  %5796 = vrot.lane.b32.xlu0 %v5794, 119
  %v5797 = vpop.permute.xlu0 %5796
  %v5799 = vsub.f32 %v5768, %v5797
  %5801 = vrot.lane.b32.xlu0 %v5799, 7
  %v5802 = vpop.permute.xlu0 %5801
  %v5804 = vmul.f32 %v4622, %v5802
  %v5805 = vtanh.pop %v5804
  %5807 = vrot.lane.b32.xlu0 %v5805, 127
  %v5808 = vpop.permute.xlu0 %5807
  %v5810 = vsub.f32 %v5790, %v5808
  %v5811 = vadd.f32 %v5810, 2.0
  %5813 = vrot.lane.b32.xlu0 %v5811, 126
  %v5814 = vpop.permute.xlu0 %5813
  %v5816 = vmul.f32 %v5774, %v5814
  %5818 = vrot.lane.b32.xlu0 %v5816, 127
  %v5819 = vpop.permute.xlu0 %5818
  %v5821 = vadd.f32 %v4622, %v5819
  %5822 = vrot.lane.b32.xlu0 %v4622, 7
  %v5823 = vpop.permute.xlu0 %5822
  %v5825 = vmul.f32 %v4622, %v5823
  %5827 = vrot.lane.b32.xlu0 %v5743, 10
  %v5828 = vpop.permute.xlu0 %5827
  %v5830 = vmul.f32 %v5825, %v5828
  %5831 = vrot.lane.b32.xlu0 %v4622, 1
  %v5832 = vpop.permute.xlu0 %5831
  %v5834 = vrcp.pop %v5832
  %v5835 = vmul.f32 %v5830, %v5834
  %5837 = vrot.lane.b32.xlu0 %v5723, 21
  %v5838 = vpop.permute.xlu0 %5837
  %v5840 = vmul.f32 %v4622, %v5838
  %v5841 = vmul.f32 %v5840, %v5777
  %5843 = vrot.lane.b32.xlu0 %v5841, 127
  %v5844 = vpop.permute.xlu0 %5843
  %v5846 = vadd.f32 %v4622, %v5844
  %5848 = vrot.lane.b32.xlu0 %v5713, 23
  %v5849 = vpop.permute.xlu0 %5848
  %v5851 = vmul.f32 %v5846, %v5849
  %v5852 = vand.u32 2147483647, %v5713
  %5854 = vrot.lane.b32.xlu0 %v5852, 25
  %v5855 = vpop.permute.xlu0 %5854
  %v5857 = vadd.f32 %v4622, %v5855
  %5859 = vrot.lane.b32.xlu0 %v5857, 126
  %v5860 = vpop.permute.xlu0 %5859
  %v5862 = vrcp.pop %v5860
  %v5863 = vmul.f32 %v5851, %v5862
  %v5864 = vsub.f32 0.0, %v4622
  %5865 = vrot.lane.b32.xlu0 %v5743, 3
  %v5866 = vpop.permute.xlu0 %5865
  %v5868 = vmul.f32 %v5864, %v5866
  %5869 = vrot.lane.b32.xlu0 %v5738, 2
  %v5870 = vpop.permute.xlu0 %5869
  %v5872 = vmul.f32 %v5821, %v5870
  %5874 = vrot.lane.b32.xlu0 %v5872, 2
  %v5875 = vpop.permute.xlu0 %5874
  %v5877 = vadd.f32 %v5868, %v5875
  %5879 = vrot.lane.b32.xlu0 %v5718, 3
  %v5880 = vpop.permute.xlu0 %5879
  %v5882 = vsub.f32 %v5728, %v5880
  %5884 = vrot.lane.b32.xlu0 %v5882, 17
  %v5885 = vpop.permute.xlu0 %5884
  %v5887 = vmul.f32 %v5864, %v5885
  %5889 = vrot.lane.b32.xlu0 %v5835, 1
  %v5890 = vpop.permute.xlu0 %5889
  %v5892 = vadd.f32 %v5763, %v5890
  %5893 = vrot.lane.b32.xlu0 %v4622, 124
  %v5894 = vpop.permute.xlu0 %5893
  %v5896 = vsub.f32 %v5892, %v5894
  %v5897 = vmul.f32 %v4622, %v5708
  %5899 = vrot.lane.b32.xlu0 %v5897, 18
  %v5900 = vpop.permute.xlu0 %5899
  %v5902 = vsub.f32 %v5896, %v5900
  %5903 = vrot.lane.b32.xlu0 %v5713, 1
  %v5904 = vpop.permute.xlu0 %5903
  %v5906 = vmul.f32 %v4622, %v5904
  %5908 = vrot.lane.b32.xlu0 %v5906, 17
  %v5909 = vpop.permute.xlu0 %5908
  %v5911 = vadd.f32 %v5902, %v5909
  %v5912 = vsub.f32 0.0, %v5863
  %5913 = vrot.lane.b32.xlu0 %v5897, 23
  %v5914 = vpop.permute.xlu0 %5913
  %v5916 = vadd.f32 %v5912, %v5914
  %5917 = vrot.lane.b32.xlu0 %v5906, 22
  %v5918 = vpop.permute.xlu0 %5917
  %v5920 = vsub.f32 %v5916, %v5918
  %5922 = vrot.lane.b32.xlu0 %v5911, 110
  %v5923 = vpop.permute.xlu0 %5922
  %v5925 = vadd.f32 %v5708, %v5923
  %5927 = vrot.lane.b32.xlu0 %v5920, 105
  %v5928 = vpop.permute.xlu0 %5927
  %v5930 = vadd.f32 %v5713, %v5928
  %5932 = vrot.lane.b32.xlu0 %v5887, 111
  %v5933 = vpop.permute.xlu0 %5932
  %v5935 = vadd.f32 %v5728, %v5933
  %5937 = vrot.lane.b32.xlu0 %v5877, 125
  %v5938 = vpop.permute.xlu0 %5937
  %v5940 = vadd.f32 %v5743, %v5938
  %5942 = vrot.lane.b32.xlu0 %v5925, 19
  %v5943 = vpop.permute.xlu0 %5942
  %v5945 = vmul.f32 %v4623, %v5943
  %5947 = vrot.lane.b32.xlu0 %v5945, 127
  %v5948 = vpop.permute.xlu0 %5947
  %v5950 = vsub.f32 %v4623, %v5948
  %5952 = vrot.lane.b32.xlu0 %v5935, 16
  %v5953 = vpop.permute.xlu0 %5952
  %v5955 = vmul.f32 %v4623, %v5953
  %5957 = vrot.lane.b32.xlu0 %v5955, 126
  %v5958 = vpop.permute.xlu0 %5957
  %v5960 = vsub.f32 %v5950, %v5958
  %5962 = vrot.lane.b32.xlu0 %v4623, 7
  %v5963 = vpop.permute.xlu0 %5962
  %v5965 = vmul.f32 %v4623, %v5963
  %5967 = vrot.lane.b32.xlu0 %v5940, 10
  %v5968 = vpop.permute.xlu0 %5967
  %v5970 = vmul.f32 %v5965, %v5968
  %5971 = vrot.lane.b32.xlu0 %v4623, 1
  %v5972 = vpop.permute.xlu0 %5971
  %v5974 = vrcp.pop %v5972
  %v5975 = vmul.f32 %v5970, %v5974
  %5977 = vrot.lane.b32.xlu0 %v5975, 1
  %v5978 = vpop.permute.xlu0 %5977
  %v5980 = vadd.f32 %v5960, %v5978
  %5981 = vrot.lane.b32.xlu0 %v4623, 124
  %v5982 = vpop.permute.xlu0 %5981
  %v5984 = vsub.f32 %v5980, %v5982
  %v5985 = vmul.f32 %v4623, %v5925
  %5987 = vrot.lane.b32.xlu0 %v5985, 18
  %v5988 = vpop.permute.xlu0 %5987
  %v5990 = vsub.f32 %v5984, %v5988
  %5992 = vrot.lane.b32.xlu0 %v5930, 1
  %v5993 = vpop.permute.xlu0 %5992
  %v5995 = vmul.f32 %v4623, %v5993
  %5997 = vrot.lane.b32.xlu0 %v5995, 17
  %v5998 = vpop.permute.xlu0 %5997
  %v6000 = vadd.f32 %v5990, %v5998
  %6002 = vrot.lane.b32.xlu0 %v6000, 110
  %v6003 = vpop.permute.xlu0 %6002
  %v6005 = vadd.f32 %v5925, %v6003
  %6006 = vrot.lane.b32.xlu0 %v5143, 1
  %v6007 = vpop.permute.xlu0 %6006
  %6009 = vrot.lane.b32.xlu0 %v5429, 2
  %v6010 = vpop.permute.xlu0 %6009
  %6012 = vrot.lane.b32.xlu0 %v5708, 3
  %v6013 = vpop.permute.xlu0 %6012
  %6015 = vrot.lane.b32.xlu0 %v5925, 4
  %v6016 = vpop.permute.xlu0 %6015
  %6019 = vrot.lane.b32.xlu0 %v6005, 5
  %v6020 = vpop.permute.xlu0 %6019
  %vm6022 = vcmask 7168
  %v6023 = vsel %vm6022, %v4857, %v6007
  %v6024 = vsel %vm3341, %v6023, %v6010
  %vm6025 = vcmask 23552
  %v6026 = vsel %vm6025, %v6024, %v6013
  %vm6027 = vcmask 31744
  %v6028 = vsel %vm6027, %v6026, %v6016
  %v6029 = vsel %vm32, %v6028, %v6020
  %vm6030 = vcmask 48128
  %6031 = vst.msk [vmem:[%s4] sm:$0xff] %vm6030, %v6029
  // Predicated region
  $region18: #{dtd_lstm_forward.1} parent=0 // pred_check
    _
  $region19: #{dtd_lstm_forward.1} parent=0 // pred_check_branch
    %6033 = sbr.rel (0) target = $region21
  $region20: #{dtd_lstm_forward.1} parent=0 // pred_region
    _
  $region21: #{dtd_lstm_forward.1} parent=0 // pred_fallthru
    _
  // Predicated region
  $region22: #{dtd_lstm_forward.1} parent=0 // pred_check
    _
  $region23: #{dtd_lstm_forward.1} parent=0 // pred_check_branch
    %6035 = sbr.rel (0) target = $region25
  $region24: #{dtd_lstm_forward.1} parent=0 // pred_region
    _
  $region25: #{dtd_lstm_forward.1} parent=0 // pred_fallthru
    _

</llo_original>
